<compile_context>
chip_gen: v7x
topology: tpu7x:2x2x1
jax: 0.10.0
libtpu: 0.0.40
codegen_flags: <defaults>
</compile_context>

<pallas_src>
import numpy as np
import jax
import jax.numpy as jnp
from jax import lax
from jax.experimental import pallas as pl
from jax.experimental.pallas import tpu as pltpu

BN_EPS = 1e-5


# ---------------------------------------------------------------------------
# Fused residual-block kernel factory (lane-dense, banded-weight matmuls)
# ---------------------------------------------------------------------------
def _make_block_kernel(D, H, W, Cin, Cout, kH, kT, has_proj):
    pH, pT = kH // 2, kT // 2
    Hp, Dp = H + 2 * pH, D + 2 * pT
    KA = W * Cin            # lane width of the (H-padded) input activations
    KB = W * Cout           # lane width of all main-branch activations
    M = D * H
    f32 = jnp.float32

    # Row offsets of each operator's weights inside the packed (R, KB) slab.
    o_w1s = 0
    o_w1t = o_w1s + kH * KA
    o_w2s = o_w1t + kT * KB
    o_w2t = o_w2s + kH * KB
    o_wp = o_w2t + kT * KB
    o_b = o_wp + KA         # 5 bias rows: conv1s, conv1t, conv2s, conv2t, proj

    def kernel(x_ref, w_ref, o_ref, dpad_ref, spad_ref):
        relu = lambda v: jnp.maximum(v, 0.0)

        def bias(k):
            return w_ref[o_b + k:o_b + k + 1, :]                     # (1, KB)

        def spatial_conv(src_ref, koff, kdim):
            # kH matmuls with K=kdim, N=KB; kW taps + W zero-padding + channel
            # mixing are folded into the banded weight, so the MXU is well fed
            # and no per-tap (M, C) reshapes are needed.
            acc = None
            for i in range(kH):
                tap = src_ref[:, i:i + H, :].reshape(M, kdim)
                w = w_ref[koff + i * kdim:koff + (i + 1) * kdim, :]
                part = jnp.dot(tap, w, preferred_element_type=f32)
                acc = part if acc is None else acc + part
            return acc

        def temporal_conv(koff):
            # kT matmuls with block-diagonal (KB, KB) weights; the leading-dim
            # taps of dpad_ref are free slices (no relayout).
            acc = None
            for t in range(kT):
                tap = dpad_ref[t:t + D].reshape(M, KB)
                w = w_ref[koff + t * KB:koff + (t + 1) * KB, :]
                part = jnp.dot(tap, w, preferred_element_type=f32)
                acc = part if acc is None else acc + part
            return acc

        # Zero ONLY the tiny halo borders (not the full buffers).  Done every
        # step (cheap: a few KB) so correctness does not depend on scratch
        # state when the parallel batch axis is sharded across TensorCores.
        if pT > 0:
            z = jnp.zeros((pT, H, KB), f32)
            dpad_ref[0:pT] = z
            dpad_ref[pT + D:Dp] = z
        if pH > 0:
            z = jnp.zeros((D, pH, KB), f32)
            spad_ref[:, 0:pH, :] = z
            spad_ref[:, pH + H:Hp, :] = z

        # ---- conv1: spatial (1,kH,kW) -> BN -> ReLU -------------------------
        y = relu(spatial_conv(x_ref, o_w1s, KA) + bias(0))
        dpad_ref[pT:pT + D] = y.reshape(D, H, KB)

        # ---- conv1: temporal (kT,1,1) -> BN -> ReLU -------------------------
        y = relu(temporal_conv(o_w1t) + bias(1))
        spad_ref[:, pH:pH + H, :] = y.reshape(D, H, KB)

        # ---- conv2: spatial -> BN -> ReLU ------------------------------------
        y = relu(spatial_conv(spad_ref, o_w2s, KB) + bias(2))
        dpad_ref[pT:pT + D] = y.reshape(D, H, KB)

        # ---- conv2: temporal -> BN -> ReLU ------------------------------------
        main = relu(temporal_conv(o_w2t) + bias(3))

        # ---- residual branch (Project 1x1x1 conv + BN, or identity) ----------
        x_int = x_ref[:, pH:pH + H, :].reshape(M, KA)
        if has_proj:
            res = jnp.dot(x_int, w_ref[o_wp:o_wp + KA, :],
                          preferred_element_type=f32) + bias(4)
        else:
            res = x_int        # Cin == Cout, identical lane layout
        o_ref[...] = relu(main + res).reshape(D, H, KB)       # lane-dense store

    return kernel


# ---------------------------------------------------------------------------
# Host-side weight preparation (BN folding + lane-dense banded weights)
# ---------------------------------------------------------------------------
def _fold_bn(w, bnp):
    """Fold inference-mode BatchNorm scale into the conv weight's Cout axis."""
    s = bnp["gamma"] * lax.rsqrt(bnp["var"] + BN_EPS)
    b = bnp["beta"] - bnp["mean"] * s
    return w * s[:, None, None, None, None], b


def _spatial_banded(wf, W):
    """(Cout,Cin,1,kH,kW) folded weight -> (kH*W*Cin, W*Cout) banded matrix.

    Row (i-block, wi*Cin+ci), col (w*Cout+co) holds wf[co,ci,0,i,j] when
    wi == w + j - pW and 0 <= wi < W; i.e. kW taps, the implicit 'same' zero
    padding in W and the channel mixing are all folded into one matmul per
    h-tap.  Built with exact-f32 elementwise ops (no matmul precision loss).
    """
    Cout, Cin, _, kH, kW = wf.shape
    pW = kW // 2
    sel = np.zeros((kW, W, W), np.float32)
    for j in range(kW):
        for w in range(W):
            wi = w + j - pW
            if 0 <= wi < W:
                sel[j, wi, w] = 1.0
    wf2 = wf[:, :, 0].transpose(2, 3, 1, 0)                # (kH, kW, Cin, Cout)
    blk = (wf2[:, :, None, :, None, :] *
           jnp.asarray(sel)[None, :, :, None, :, None]).sum(axis=1)
    return blk.reshape(kH * W * Cin, W * Cout)


def _temporal_blockdiag(wf, W):
    """(Cout,Cout,kT,1,1) folded weight -> (kT*W*Cout, W*Cout) block-diagonal."""
    Cout, kT = wf.shape[0], wf.shape[2]
    wt = wf[:, :, :, 0, 0].transpose(2, 1, 0)              # (kT, Cin=Cout, Cout)
    eye = jnp.eye(W, dtype=jnp.float32)
    blk = wt[:, None, :, None, :] * eye[None, :, None, :, None]
    return blk.reshape(kT * W * Cout, W * Cout)


def _proj_blockdiag(wf, W):
    """(Cout,Cin,1,1,1) folded weight -> (W*Cin, W*Cout) block-diagonal."""
    wp = wf[:, :, 0, 0, 0].T                               # (Cin, Cout)
    Cin, Cout = wp.shape
    eye = jnp.eye(W, dtype=jnp.float32)
    blk = wp[None, :, None, :] * eye[:, None, :, None]     # (W, Cin, W, Cout)
    return blk.reshape(W * Cin, W * Cout)


# ---------------------------------------------------------------------------
# Host-side wrapper: one pallas_call per ResidualBlock forward
# ---------------------------------------------------------------------------
def residual_block_forward(x, p):
    """x: (N, Cin, D, H, W) float32 (PyTorch NCDHW) -> (N, Cout, D, H, W)."""
    N, Cin, D, H, W = x.shape
    w1s = p["conv1"]["w_spatial"]
    Cout, kH = w1s.shape[0], w1s.shape[3]
    kT = p["conv1"]["w_temporal"].shape[2]
    pH, pT = kH // 2, kT // 2
    Hp = H + 2 * pH
    has_proj = "proj" in p
    KA, KB = W * Cin, W * Cout

    # Fold BN, build lane-dense banded / block-diagonal weights, pack all
    # weights + W-tiled biases into a single (R, KB) slab (constant block).
    w1s_f, b1s = _fold_bn(p["conv1"]["w_spatial"], p["conv1"]["bn_spatial"])
    w1t_f, b1t = _fold_bn(p["conv1"]["w_temporal"], p["conv1"]["bn_temporal"])
    w2s_f, b2s = _fold_bn(p["conv2"]["w_spatial"], p["conv2"]["bn_spatial"])
    w2t_f, b2t = _fold_bn(p["conv2"]["w_temporal"], p["conv2"]["bn_temporal"])
    blocks = [_spatial_banded(w1s_f, W), _temporal_blockdiag(w1t_f, W),
              _spatial_banded(w2s_f, W), _temporal_blockdiag(w2t_f, W)]
    if has_proj:
        wp_f, bp = _fold_bn(p["proj"]["w"], p["proj"]["bn"])
        blocks.append(_proj_blockdiag(wp_f, W))
    else:
        bp = jnp.zeros((Cout,), jnp.float32)
        blocks.append(jnp.zeros((KA, KB), jnp.float32))
    blocks.append(jnp.stack([jnp.tile(b, W) for b in (b1s, b1t, b2s, b2t, bp)]))
    wpack = jnp.concatenate([b.astype(jnp.float32) for b in blocks], axis=0)
    R = wpack.shape[0]

    # Single host-side relayout: NCDHW -> NDHWC, zero-pad H only (W padding is
    # folded into the banded weights), collapse (W, Cin) onto the lane axis.
    x_cl = jnp.pad(x.transpose(0, 2, 3, 4, 1),
                   ((0, 0), (0, 0), (pH, pH), (0, 0), (0, 0)))
    x_cl = x_cl.reshape(N, D, Hp, KA)

    kernel = _make_block_kernel(D, H, W, Cin, Cout, kH, kT, has_proj)

    out_flat = pl.pallas_call(
        kernel,
        out_shape=jax.ShapeDtypeStruct((N, D, H, KB), jnp.float32),
        grid=(N,),
        in_specs=[
            pl.BlockSpec((None, D, Hp, KA), lambda n: (n, 0, 0, 0)),
            pl.BlockSpec((R, KB), lambda n: (0, 0)),
        ],
        out_specs=pl.BlockSpec((None, D, H, KB), lambda n: (n, 0, 0, 0)),
        scratch_shapes=[
            pltpu.VMEM((D + 2 * pT, H, KB), jnp.float32),   # D-halo staging
            pltpu.VMEM((D, Hp, KB), jnp.float32),           # H-halo staging
        ],
        compiler_params=pltpu.CompilerParams(
            dimension_semantics=("parallel",),
            vmem_limit_bytes=16 * 1024 * 1024),
    )(x_cl, wpack)

    # lane-dense (N, D, H, W*Cout) -> NCDHW on the host
    return out_flat.reshape(N, D, H, W, Cout).transpose(0, 4, 1, 2, 3)


# ---------------------------------------------------------------------------
# Pure-JAX reference (lax.conv) for correctness checking
# ---------------------------------------------------------------------------
def _conv3d_ref(x, w, padding):
    return lax.conv_general_dilated(
        x, w, window_strides=(1, 1, 1),
        padding=[(pp, pp) for pp in padding],
        dimension_numbers=("NCDHW", "OIDHW", "NCDHW"),
        precision=lax.Precision.HIGHEST)


def residual_block_ref(x, p):
    def bn(h, bnp):
        s = bnp["gamma"] * lax.rsqrt(bnp["var"] + BN_EPS)
        sh = bnp["beta"] - bnp["mean"] * s
        return h * s[None, :, None, None, None] + sh[None, :, None, None, None]

    def c21(h, cp):
        kH, kW = cp["w_spatial"].shape[3], cp["w_spatial"].shape[4]
        h = _conv3d_ref(h, cp["w_spatial"], (0, kH // 2, kW // 2))
        h = jax.nn.relu(bn(h, cp["bn_spatial"]))
        kT = cp["w_temporal"].shape[2]
        h = _conv3d_ref(h, cp["w_temporal"], (kT // 2, 0, 0))
        return jax.nn.relu(bn(h, cp["bn_temporal"]))

    out = c21(c21(x, p["conv1"]), p["conv2"])
    if "proj" in p:
        res = bn(_conv3d_ref(x, p["proj"]["w"], (0, 0, 0)), p["proj"]["bn"])
    else:
        res = x
    return jax.nn.relu(out + res)


# ---------------------------------------------------------------------------
# Deterministic parameter init (shapes from the nn.Module __init__)
# ---------------------------------------------------------------------------
def init_params(key, Cin, Cout, ksize=(3, 3, 3)):
    kT, kH, kW = ksize
    keys = jax.random.split(key, 16)

    def w(k, shape, fan_in):
        return jax.random.normal(k, shape, jnp.float32) / jnp.sqrt(float(fan_in))

    def bn(k1, k2, C):
        return {"gamma": 1.0 + 0.1 * jax.random.normal(k1, (C,), jnp.float32),
                "beta": 0.1 * jax.random.normal(k2, (C,), jnp.float32),
                "mean": jnp.zeros((C,), jnp.float32),
                "var": jnp.ones((C,), jnp.float32)}

    def conv2p1(ks, cin):
        return {"w_spatial": w(ks[0], (Cout, cin, 1, kH, kW), cin * kH * kW),
                "bn_spatial": bn(ks[1], ks[2], Cout),
                "w_temporal": w(ks[3], (Cout, Cout, kT, 1, 1), Cout * kT),
                "bn_temporal": bn(ks[4], ks[5], Cout)}

    p = {"conv1": conv2p1(keys[0:6], Cin),
         "conv2": conv2p1(keys[6:12], Cout)}
    if Cin != Cout:   # ResidualBlock.need_proj
        p["proj"] = {"w": w(keys[12], (Cout, Cin, 1, 1, 1), Cin),
                     "bn": bn(keys[13], keys[14], Cout)}
    return p


if __name__ == "__main__":
    key = jax.random.PRNGKey(0)
    kx, kp, kx2, kp2 = jax.random.split(key, 4)

    fwd = jax.jit(residual_block_forward)

    # --- case 1: Cin != Cout (projection residual), W*Cout = 128 lanes -------
    N, Cin, Cout, D, H, W = 2, 4, 8, 8, 16, 16
    x = jax.random.normal(kx, (N, Cin, D, H, W), jnp.float32)
    params = init_params(kp, Cin, Cout, ksize=(3, 3, 3))
    out = jax.block_until_ready(fwd(x, params))
    assert out.shape == (N, Cout, D, H, W), out.shape
    ref = jax.block_until_ready(residual_block_ref(x, params))
    np.testing.assert_allclose(np.asarray(out), np.asarray(ref),
                               rtol=2e-3, atol=2e-3)

    # --- case 2: Cin == Cout (identity residual) ------------------------------
    Cin2 = Cout2 = 8
    x2 = jax.random.normal(kx2, (N, Cin2, D, H, W), jnp.float32)
    params2 = init_params(kp2, Cin2, Cout2, ksize=(3, 3, 3))
    out2 = jax.block_until_ready(fwd(x2, params2))
    assert out2.shape == (N, Cout2, D, H, W), out2.shape
    ref2 = jax.block_until_ready(residual_block_ref(x2, params2))
    np.testing.assert_allclose(np.asarray(out2), np.asarray(ref2),
                               rtol=2e-3, atol=2e-3)

    print("KERNEL_OK")
</pallas_src>

<mosaic_0001>
module attributes {stable_mosaic.version = 11 : i64} {
  func.func @kernel(%arg0: i32, %arg1: memref<1x8x18x64xf32, #tpu.memory_space<vmem>>, %arg2: memref<1413x128xf32, #tpu.memory_space<vmem>>, %arg3: memref<1x8x16x128xf32, #tpu.memory_space<vmem>>, %arg4: memref<10x16x128xf32, #tpu.memory_space<vmem>>, %arg5: memref<8x18x128xf32, #tpu.memory_space<vmem>>) attributes {dimension_semantics = [#tpu.dimension_semantics<parallel>], iteration_bounds = array<i64: 2>, scalar_prefetch = 0 : i64, scratch_operands = 2 : i64, tpu.core_type = #tpu.core_type<tc>, window_params = [{transform_indices = @transform_0, window_bounds = array<i64: 1, 8, 18, 64>}, {pipeline_mode = #tpu.pipeline_mode<synchronous>, transform_indices = @transform_1, window_bounds = array<i64: 1413, 128>}, {transform_indices = @transform_2, window_bounds = array<i64: 1, 8, 16, 128>}]} {
    %cst = arith.constant 0.000000e+00 : f32
    %0 = vector.broadcast %cst : f32 to vector<1x16x128xf32>
    %c0 = arith.constant 0 : index
    %c0_0 = arith.constant 0 : index
    %c0_1 = arith.constant 0 : index
    %1 = vector.load %arg4[%c0, %c0_0, %c0_1] : memref<10x16x128xf32, #tpu.memory_space<vmem>>, vector<1x16x128xf32>
    tpu.vector_store %arg4[%c0, %c0_0, %c0_1], %0 {strides = array<i32>} : memref<10x16x128xf32, #tpu.memory_space<vmem>>, vector<1x16x128xf32>,
    %c9 = arith.constant 9 : index
    %c0_2 = arith.constant 0 : index
    %c0_3 = arith.constant 0 : index
    %2 = vector.load %arg4[%c9, %c0_2, %c0_3] : memref<10x16x128xf32, #tpu.memory_space<vmem>>, vector<1x16x128xf32>
    tpu.vector_store %arg4[%c9, %c0_2, %c0_3], %0 {strides = array<i32>} : memref<10x16x128xf32, #tpu.memory_space<vmem>>, vector<1x16x128xf32>,
    %cst_4 = arith.constant 0.000000e+00 : f32
    %3 = vector.broadcast %cst_4 : f32 to vector<8x1x128xf32>
    %c0_5 = arith.constant 0 : index
    %c0_6 = arith.constant 0 : index
    %c0_7 = arith.constant 0 : index
    %4 = vector.load %arg5[%c0_5, %c0_6, %c0_7] : memref<8x18x128xf32, #tpu.memory_space<vmem>>, vector<8x1x128xf32>
    tpu.vector_store %arg5[%c0_5, %c0_6, %c0_7], %3 {strides = array<i32>} : memref<8x18x128xf32, #tpu.memory_space<vmem>>, vector<8x1x128xf32>,
    %c0_8 = arith.constant 0 : index
    %c17 = arith.constant 17 : index
    %c0_9 = arith.constant 0 : index
    %5 = vector.load %arg5[%c0_8, %c17, %c0_9] : memref<8x18x128xf32, #tpu.memory_space<vmem>>, vector<8x1x128xf32>
    tpu.vector_store %arg5[%c0_8, %c17, %c0_9], %3 {strides = array<i32>} : memref<8x18x128xf32, #tpu.memory_space<vmem>>, vector<8x1x128xf32>,
    %c0_10 = arith.constant 0 : index
    %c0_11 = arith.constant 0 : index
    %c0_12 = arith.constant 0 : index
    %c0_13 = arith.constant 0 : index
    %6 = vector.load %arg1[%c0_10, %c0_11, %c0_12, %c0_13] : memref<1x8x18x64xf32, #tpu.memory_space<vmem>>, vector<1x8x16x64xf32>
    %7 = vector.shape_cast %6 : vector<1x8x16x64xf32> to vector<8x16x64xf32>
    %8 = vector.shape_cast %7 : vector<8x16x64xf32> to vector<128x64xf32>
    %c0_14 = arith.constant 0 : index
    %c0_15 = arith.constant 0 : index
    %9 = vector.load %arg2[%c0_14, %c0_15] : memref<1413x128xf32, #tpu.memory_space<vmem>>, vector<64x128xf32>
    %cst_16 = arith.constant dense<0.000000e+00> : vector<128x128xf32>
    %10 = tpu.matmul %8, %9, %cst_16 {dimension_numbers = #tpu.dot_dimension_numbers<[1], [0], [0], [1], [0, 0, 1, 1], [], []>} : vector<128x64xf32>, vector<64x128xf32>, vector<128x128xf32> -> vector<128x128xf32>
    %c0_17 = arith.constant 0 : index
    %c0_18 = arith.constant 0 : index
    %c1 = arith.constant 1 : index
    %c0_19 = arith.constant 0 : index
    %11 = vector.load %arg1[%c0_17, %c0_18, %c1, %c0_19] : memref<1x8x18x64xf32, #tpu.memory_space<vmem>>, vector<1x8x16x64xf32>
    %12 = vector.shape_cast %11 : vector<1x8x16x64xf32> to vector<8x16x64xf32>
    %13 = vector.shape_cast %12 : vector<8x16x64xf32> to vector<128x64xf32>
    %c64 = arith.constant 64 : index
    %c0_20 = arith.constant 0 : index
    %14 = vector.load %arg2[%c64, %c0_20] : memref<1413x128xf32, #tpu.memory_space<vmem>>, vector<64x128xf32>
    %cst_21 = arith.constant dense<0.000000e+00> : vector<128x128xf32>
    %15 = tpu.matmul %13, %14, %cst_21 {dimension_numbers = #tpu.dot_dimension_numbers<[1], [0], [0], [1], [0, 0, 1, 1], [], []>} : vector<128x64xf32>, vector<64x128xf32>, vector<128x128xf32> -> vector<128x128xf32>
    %16 = arith.addf %10, %15 : vector<128x128xf32>
    %c0_22 = arith.constant 0 : index
    %c0_23 = arith.constant 0 : index
    %c2 = arith.constant 2 : index
    %c0_24 = arith.constant 0 : index
    %17 = vector.load %arg1[%c0_22, %c0_23, %c2, %c0_24] : memref<1x8x18x64xf32, #tpu.memory_space<vmem>>, vector<1x8x16x64xf32>
    %18 = vector.shape_cast %17 : vector<1x8x16x64xf32> to vector<8x16x64xf32>
    %19 = vector.shape_cast %18 : vector<8x16x64xf32> to vector<128x64xf32>
    %c128 = arith.constant 128 : index
    %c0_25 = arith.constant 0 : index
    %20 = vector.load %arg2[%c128, %c0_25] : memref<1413x128xf32, #tpu.memory_space<vmem>>, vector<64x128xf32>
    %cst_26 = arith.constant dense<0.000000e+00> : vector<128x128xf32>
    %21 = tpu.matmul %19, %20, %cst_26 {dimension_numbers = #tpu.dot_dimension_numbers<[1], [0], [0], [1], [0, 0, 1, 1], [], []>} : vector<128x64xf32>, vector<64x128xf32>, vector<128x128xf32> -> vector<128x128xf32>
    %22 = arith.addf %16, %21 : vector<128x128xf32>
    %c1408 = arith.constant 1408 : index
    %c0_27 = arith.constant 0 : index
    %23 = vector.load %arg2[%c1408, %c0_27] : memref<1413x128xf32, #tpu.memory_space<vmem>>, vector<1x128xf32>
    %24 = vector.broadcast %23 : vector<1x128xf32> to vector<128x128xf32>
    %25 = arith.addf %22, %24 : vector<128x128xf32>
    %cst_28 = arith.constant 0.000000e+00 : f32
    %26 = vector.broadcast %cst_28 : f32 to vector<128x128xf32>
    %27 = arith.maximumf %25, %26 : vector<128x128xf32>
    %28 = vector.shape_cast %27 : vector<128x128xf32> to vector<8x16x128xf32>
    %c1_29 = arith.constant 1 : index
    %c0_30 = arith.constant 0 : index
    %c0_31 = arith.constant 0 : index
    %29 = vector.load %arg4[%c1_29, %c0_30, %c0_31] : memref<10x16x128xf32, #tpu.memory_space<vmem>>, vector<8x16x128xf32>
    tpu.vector_store %arg4[%c1_29, %c0_30, %c0_31], %28 {strides = array<i32>} : memref<10x16x128xf32, #tpu.memory_space<vmem>>, vector<8x16x128xf32>,
    %c0_32 = arith.constant 0 : index
    %c0_33 = arith.constant 0 : index
    %c0_34 = arith.constant 0 : index
    %30 = vector.load %arg4[%c0_32, %c0_33, %c0_34] : memref<10x16x128xf32, #tpu.memory_space<vmem>>, vector<8x16x128xf32>
    %31 = vector.shape_cast %30 : vector<8x16x128xf32> to vector<128x128xf32>
    %c192 = arith.constant 192 : index
    %c0_35 = arith.constant 0 : index
    %32 = vector.load %arg2[%c192, %c0_35] : memref<1413x128xf32, #tpu.memory_space<vmem>>, vector<128x128xf32>
    %cst_36 = arith.constant dense<0.000000e+00> : vector<128x128xf32>
    %33 = tpu.matmul %31, %32, %cst_36 {dimension_numbers = #tpu.dot_dimension_numbers<[1], [0], [0], [1], [0, 0, 1, 1], [], []>} : vector<128x128xf32>, vector<128x128xf32>, vector<128x128xf32> -> vector<128x128xf32>
    %c1_37 = arith.constant 1 : index
    %c0_38 = arith.constant 0 : index
    %c0_39 = arith.constant 0 : index
    %34 = vector.load %arg4[%c1_37, %c0_38, %c0_39] : memref<10x16x128xf32, #tpu.memory_space<vmem>>, vector<8x16x128xf32>
    %35 = vector.shape_cast %34 : vector<8x16x128xf32> to vector<128x128xf32>
    %c320 = arith.constant 320 : index
    %c0_40 = arith.constant 0 : index
    %36 = vector.load %arg2[%c320, %c0_40] : memref<1413x128xf32, #tpu.memory_space<vmem>>, vector<128x128xf32>
    %cst_41 = arith.constant dense<0.000000e+00> : vector<128x128xf32>
    %37 = tpu.matmul %35, %36, %cst_41 {dimension_numbers = #tpu.dot_dimension_numbers<[1], [0], [0], [1], [0, 0, 1, 1], [], []>} : vector<128x128xf32>, vector<128x128xf32>, vector<128x128xf32> -> vector<128x128xf32>
    %38 = arith.addf %33, %37 : vector<128x128xf32>
    %c2_42 = arith.constant 2 : index
    %c0_43 = arith.constant 0 : index
    %c0_44 = arith.constant 0 : index
    %39 = vector.load %arg4[%c2_42, %c0_43, %c0_44] : memref<10x16x128xf32, #tpu.memory_space<vmem>>, vector<8x16x128xf32>
    %40 = vector.shape_cast %39 : vector<8x16x128xf32> to vector<128x128xf32>
    %c448 = arith.constant 448 : index
    %c0_45 = arith.constant 0 : index
    %41 = vector.load %arg2[%c448, %c0_45] : memref<1413x128xf32, #tpu.memory_space<vmem>>, vector<128x128xf32>
    %cst_46 = arith.constant dense<0.000000e+00> : vector<128x128xf32>
    %42 = tpu.matmul %40, %41, %cst_46 {dimension_numbers = #tpu.dot_dimension_numbers<[1], [0], [0], [1], [0, 0, 1, 1], [], []>} : vector<128x128xf32>, vector<128x128xf32>, vector<128x128xf32> -> vector<128x128xf32>
    %43 = arith.addf %38, %42 : vector<128x128xf32>
    %c1409 = arith.constant 1409 : index
    %c0_47 = arith.constant 0 : index
    %44 = vector.load %arg2[%c1409, %c0_47] : memref<1413x128xf32, #tpu.memory_space<vmem>>, vector<1x128xf32>
    %45 = vector.broadcast %44 : vector<1x128xf32> to vector<128x128xf32>
    %46 = arith.addf %43, %45 : vector<128x128xf32>
    %cst_48 = arith.constant 0.000000e+00 : f32
    %47 = vector.broadcast %cst_48 : f32 to vector<128x128xf32>
    %48 = arith.maximumf %46, %47 : vector<128x128xf32>
    %49 = vector.shape_cast %48 : vector<128x128xf32> to vector<8x16x128xf32>
    %c0_49 = arith.constant 0 : index
    %c1_50 = arith.constant 1 : index
    %c0_51 = arith.constant 0 : index
    %50 = vector.load %arg5[%c0_49, %c1_50, %c0_51] : memref<8x18x128xf32, #tpu.memory_space<vmem>>, vector<8x16x128xf32>
    tpu.vector_store %arg5[%c0_49, %c1_50, %c0_51], %49 {strides = array<i32>} : memref<8x18x128xf32, #tpu.memory_space<vmem>>, vector<8x16x128xf32>,
    %c0_52 = arith.constant 0 : index
    %c0_53 = arith.constant 0 : index
    %c0_54 = arith.constant 0 : index
    %51 = vector.load %arg5[%c0_52, %c0_53, %c0_54] : memref<8x18x128xf32, #tpu.memory_space<vmem>>, vector<8x16x128xf32>
    %52 = vector.shape_cast %51 : vector<8x16x128xf32> to vector<128x128xf32>
    %c576 = arith.constant 576 : index
    %c0_55 = arith.constant 0 : index
    %53 = vector.load %arg2[%c576, %c0_55] : memref<1413x128xf32, #tpu.memory_space<vmem>>, vector<128x128xf32>
    %cst_56 = arith.constant dense<0.000000e+00> : vector<128x128xf32>
    %54 = tpu.matmul %52, %53, %cst_56 {dimension_numbers = #tpu.dot_dimension_numbers<[1], [0], [0], [1], [0, 0, 1, 1], [], []>} : vector<128x128xf32>, vector<128x128xf32>, vector<128x128xf32> -> vector<128x128xf32>
    %c0_57 = arith.constant 0 : index
    %c1_58 = arith.constant 1 : index
    %c0_59 = arith.constant 0 : index
    %55 = vector.load %arg5[%c0_57, %c1_58, %c0_59] : memref<8x18x128xf32, #tpu.memory_space<vmem>>, vector<8x16x128xf32>
    %56 = vector.shape_cast %55 : vector<8x16x128xf32> to vector<128x128xf32>
    %c704 = arith.constant 704 : index
    %c0_60 = arith.constant 0 : index
    %57 = vector.load %arg2[%c704, %c0_60] : memref<1413x128xf32, #tpu.memory_space<vmem>>, vector<128x128xf32>
    %cst_61 = arith.constant dense<0.000000e+00> : vector<128x128xf32>
    %58 = tpu.matmul %56, %57, %cst_61 {dimension_numbers = #tpu.dot_dimension_numbers<[1], [0], [0], [1], [0, 0, 1, 1], [], []>} : vector<128x128xf32>, vector<128x128xf32>, vector<128x128xf32> -> vector<128x128xf32>
    %59 = arith.addf %54, %58 : vector<128x128xf32>
    %c0_62 = arith.constant 0 : index
    %c2_63 = arith.constant 2 : index
    %c0_64 = arith.constant 0 : index
    %60 = vector.load %arg5[%c0_62, %c2_63, %c0_64] : memref<8x18x128xf32, #tpu.memory_space<vmem>>, vector<8x16x128xf32>
    %61 = vector.shape_cast %60 : vector<8x16x128xf32> to vector<128x128xf32>
    %c832 = arith.constant 832 : index
    %c0_65 = arith.constant 0 : index
    %62 = vector.load %arg2[%c832, %c0_65] : memref<1413x128xf32, #tpu.memory_space<vmem>>, vector<128x128xf32>
    %cst_66 = arith.constant dense<0.000000e+00> : vector<128x128xf32>
    %63 = tpu.matmul %61, %62, %cst_66 {dimension_numbers = #tpu.dot_dimension_numbers<[1], [0], [0], [1], [0, 0, 1, 1], [], []>} : vector<128x128xf32>, vector<128x128xf32>, vector<128x128xf32> -> vector<128x128xf32>
    %64 = arith.addf %59, %63 : vector<128x128xf32>
    %c1410 = arith.constant 1410 : index
    %c0_67 = arith.constant 0 : index
    %65 = vector.load %arg2[%c1410, %c0_67] : memref<1413x128xf32, #tpu.memory_space<vmem>>, vector<1x128xf32>
    %66 = vector.broadcast %65 : vector<1x128xf32> to vector<128x128xf32>
    %67 = arith.addf %64, %66 : vector<128x128xf32>
    %cst_68 = arith.constant 0.000000e+00 : f32
    %68 = vector.broadcast %cst_68 : f32 to vector<128x128xf32>
    %69 = arith.maximumf %67, %68 : vector<128x128xf32>
    %70 = vector.shape_cast %69 : vector<128x128xf32> to vector<8x16x128xf32>
    %c1_69 = arith.constant 1 : index
    %c0_70 = arith.constant 0 : index
    %c0_71 = arith.constant 0 : index
    %71 = vector.load %arg4[%c1_69, %c0_70, %c0_71] : memref<10x16x128xf32, #tpu.memory_space<vmem>>, vector<8x16x128xf32>
    tpu.vector_store %arg4[%c1_69, %c0_70, %c0_71], %70 {strides = array<i32>} : memref<10x16x128xf32, #tpu.memory_space<vmem>>, vector<8x16x128xf32>,
    %c0_72 = arith.constant 0 : index
    %c0_73 = arith.constant 0 : index
    %c0_74 = arith.constant 0 : index
    %72 = vector.load %arg4[%c0_72, %c0_73, %c0_74] : memref<10x16x128xf32, #tpu.memory_space<vmem>>, vector<8x16x128xf32>
    %73 = vector.shape_cast %72 : vector<8x16x128xf32> to vector<128x128xf32>
    %c960 = arith.constant 960 : index
    %c0_75 = arith.constant 0 : index
    %74 = vector.load %arg2[%c960, %c0_75] : memref<1413x128xf32, #tpu.memory_space<vmem>>, vector<128x128xf32>
    %cst_76 = arith.constant dense<0.000000e+00> : vector<128x128xf32>
    %75 = tpu.matmul %73, %74, %cst_76 {dimension_numbers = #tpu.dot_dimension_numbers<[1], [0], [0], [1], [0, 0, 1, 1], [], []>} : vector<128x128xf32>, vector<128x128xf32>, vector<128x128xf32> -> vector<128x128xf32>
    %c1_77 = arith.constant 1 : index
    %c0_78 = arith.constant 0 : index
    %c0_79 = arith.constant 0 : index
    %76 = vector.load %arg4[%c1_77, %c0_78, %c0_79] : memref<10x16x128xf32, #tpu.memory_space<vmem>>, vector<8x16x128xf32>
    %77 = vector.shape_cast %76 : vector<8x16x128xf32> to vector<128x128xf32>
    %c1088 = arith.constant 1088 : index
    %c0_80 = arith.constant 0 : index
    %78 = vector.load %arg2[%c1088, %c0_80] : memref<1413x128xf32, #tpu.memory_space<vmem>>, vector<128x128xf32>
    %cst_81 = arith.constant dense<0.000000e+00> : vector<128x128xf32>
    %79 = tpu.matmul %77, %78, %cst_81 {dimension_numbers = #tpu.dot_dimension_numbers<[1], [0], [0], [1], [0, 0, 1, 1], [], []>} : vector<128x128xf32>, vector<128x128xf32>, vector<128x128xf32> -> vector<128x128xf32>
    %80 = arith.addf %75, %79 : vector<128x128xf32>
    %c2_82 = arith.constant 2 : index
    %c0_83 = arith.constant 0 : index
    %c0_84 = arith.constant 0 : index
    %81 = vector.load %arg4[%c2_82, %c0_83, %c0_84] : memref<10x16x128xf32, #tpu.memory_space<vmem>>, vector<8x16x128xf32>
    %82 = vector.shape_cast %81 : vector<8x16x128xf32> to vector<128x128xf32>
    %c1216 = arith.constant 1216 : index
    %c0_85 = arith.constant 0 : index
    %83 = vector.load %arg2[%c1216, %c0_85] : memref<1413x128xf32, #tpu.memory_space<vmem>>, vector<128x128xf32>
    %cst_86 = arith.constant dense<0.000000e+00> : vector<128x128xf32>
    %84 = tpu.matmul %82, %83, %cst_86 {dimension_numbers = #tpu.dot_dimension_numbers<[1], [0], [0], [1], [0, 0, 1, 1], [], []>} : vector<128x128xf32>, vector<128x128xf32>, vector<128x128xf32> -> vector<128x128xf32>
    %85 = arith.addf %80, %84 : vector<128x128xf32>
    %c1411 = arith.constant 1411 : index
    %c0_87 = arith.constant 0 : index
    %86 = vector.load %arg2[%c1411, %c0_87] : memref<1413x128xf32, #tpu.memory_space<vmem>>, vector<1x128xf32>
    %87 = vector.broadcast %86 : vector<1x128xf32> to vector<128x128xf32>
    %88 = arith.addf %85, %87 : vector<128x128xf32>
    %cst_88 = arith.constant 0.000000e+00 : f32
    %89 = vector.broadcast %cst_88 : f32 to vector<128x128xf32>
    %90 = arith.maximumf %88, %89 : vector<128x128xf32>
    %c0_89 = arith.constant 0 : index
    %c0_90 = arith.constant 0 : index
    %c1_91 = arith.constant 1 : index
    %c0_92 = arith.constant 0 : index
    %91 = vector.load %arg1[%c0_89, %c0_90, %c1_91, %c0_92] : memref<1x8x18x64xf32, #tpu.memory_space<vmem>>, vector<1x8x16x64xf32>
    %92 = vector.shape_cast %91 : vector<1x8x16x64xf32> to vector<8x16x64xf32>
    %93 = vector.shape_cast %92 : vector<8x16x64xf32> to vector<128x64xf32>
    %c1344 = arith.constant 1344 : index
    %c0_93 = arith.constant 0 : index
    %94 = vector.load %arg2[%c1344, %c0_93] : memref<1413x128xf32, #tpu.memory_space<vmem>>, vector<64x128xf32>
    %cst_94 = arith.constant dense<0.000000e+00> : vector<128x128xf32>
    %95 = tpu.matmul %93, %94, %cst_94 {dimension_numbers = #tpu.dot_dimension_numbers<[1], [0], [0], [1], [0, 0, 1, 1], [], []>} : vector<128x64xf32>, vector<64x128xf32>, vector<128x128xf32> -> vector<128x128xf32>
    %c1412 = arith.constant 1412 : index
    %c0_95 = arith.constant 0 : index
    %96 = vector.load %arg2[%c1412, %c0_95] : memref<1413x128xf32, #tpu.memory_space<vmem>>, vector<1x128xf32>
    %97 = vector.broadcast %96 : vector<1x128xf32> to vector<128x128xf32>
    %98 = arith.addf %95, %97 : vector<128x128xf32>
    %99 = arith.addf %90, %98 : vector<128x128xf32>
    %cst_96 = arith.constant 0.000000e+00 : f32
    %100 = vector.broadcast %cst_96 : f32 to vector<128x128xf32>
    %101 = arith.maximumf %99, %100 : vector<128x128xf32>
    %102 = vector.shape_cast %101 : vector<128x128xf32> to vector<8x16x128xf32>
    %c0_97 = arith.constant 0 : index
    %c0_98 = arith.constant 0 : index
    %c0_99 = arith.constant 0 : index
    %c0_100 = arith.constant 0 : index
    %103 = vector.load %arg3[%c0_97, %c0_98, %c0_99, %c0_100] : memref<1x8x16x128xf32, #tpu.memory_space<vmem>>, vector<1x8x16x128xf32>
    %104 = vector.shape_cast %103 : vector<1x8x16x128xf32> to vector<8x16x128xf32>
    %105 = vector.shape_cast %102 : vector<8x16x128xf32> to vector<1x8x16x128xf32>
    tpu.vector_store %arg3[%c0_97, %c0_98, %c0_99, %c0_100], %105 {strides = array<i32>} : memref<1x8x16x128xf32, #tpu.memory_space<vmem>>, vector<1x8x16x128xf32>,
    return
  }
  func.func @transform_0(%arg0: i32) -> (i32, i32, i32, i32) {
    %c0_i32 = arith.constant 0 : i32
    %c0_i32_0 = arith.constant 0 : i32
    %c0_i32_1 = arith.constant 0 : i32
    %c0_i32_2 = arith.constant 0 : i32
    return %arg0, %c0_i32, %c0_i32_0, %c0_i32_1 : i32, i32, i32, i32
  }
  func.func @transform_1(%arg0: i32) -> (i32, i32) {
    %c0_i32 = arith.constant 0 : i32
    %c0_i32_0 = arith.constant 0 : i32
    %c0_i32_1 = arith.constant 0 : i32
    return %c0_i32, %c0_i32_0 : i32, i32
  }
  func.func @transform_2(%arg0: i32) -> (i32, i32, i32, i32) {
    %c0_i32 = arith.constant 0 : i32
    %c0_i32_0 = arith.constant 0 : i32
    %c0_i32_1 = arith.constant 0 : i32
    %c0_i32_2 = arith.constant 0 : i32
    return %arg0, %c0_i32, %c0_i32_0, %c0_i32_1 : i32, i32, i32, i32
  }
}

</mosaic_0001>

<llo_original>
// kernel: tile.28
$region0: #{tile.28}
  #allocation0 [shape = 's32[1]{0}', space=sflag, size = 0x4, scoped, tag = 'scoped memory for tile.28']
  %s0 = inlined_call_operand.vmem [shape: f32[8], index: 0, kind: input, shape index: {}]
  %s1 = inlined_call_operand.vmem [shape: f32[16,8], index: 1, kind: output, shape index: {}]
  // Predicated region
  $region2: #{tile.28} parent=0 // pred_check
    _
  $region3: #{tile.28} parent=0 // pred_check_branch
    %3 = sbr.rel (0) target = $region5
  $region4: #{tile.28} parent=0 // pred_region
    _
  $region5: #{tile.28} parent=0 // pred_fallthru
    _
  %v4 = vld [vmem:[%s0] ss:$0 sm:$0xff]
  %5 = vst [vmem:[%s1] sm:$0xff] %v4
  %s6 = scalar_lea.vmem %s1, 8
  %7 = vst [vmem:[%s6] sm:$0xff] %v4

// kernel: tile.45
$region0: #{tile.45}
  %s0 = inlined_call_operand.vmem [shape: f32[16,8], index: 0, kind: input, shape index: {}]
  %s1 = inlined_call_operand.vmem [shape: f32[1,128], index: 1, kind: output, shape index: {}]
  $region1: #{tile.45} parent=0
    #allocation0 [shape = 'u8[4096]{0}', space=vmem, size = 0x1000, scoped, tag = 'scoped mem for output reshape']
    %v2 = vld [vmem:[%s0] sm:$0x1]
    %vm3 = vcmask 64512
    %4 = vst.msk [vmem:[#allocation0] sm:$0x1] %vm3, %v2
    %s5 = scalar_lea.vmem %s0, 15
    %v6 = vld [vmem:[%s5] sm:$0x1]
    %7 = vrot.lane.b32.xlu0 %v6, 120
    %v8 = vpop.permute.xlu0 %7
    %vm9 = vcmask 1048512
    %10 = vst.msk [vmem:[#allocation0] sm:$0x1] %vm9, %v8
    %s11 = scalar_lea.vmem %s0, 14
    %v12 = vld [vmem:[%s11] sm:$0x1]
    %13 = vrot.lane.b32.xlu0 %v12, 112
    %v14 = vpop.permute.xlu0 %13
    %vm15 = vcmask 982912
    %16 = vst.msk [vmem:[#allocation0] sm:$0x1] %vm15, %v14
    %s17 = scalar_lea.vmem %s0, 13
    %v18 = vld [vmem:[%s17] sm:$0x1]
    %19 = vrot.lane.b32.xlu0 %v18, 104
    %v20 = vpop.permute.xlu0 %19
    %vm21 = vcmask 917312
    %22 = vst.msk [vmem:[#allocation0] sm:$0x1] %vm21, %v20
    %s23 = scalar_lea.vmem %s0, 12
    %v24 = vld [vmem:[%s23] sm:$0x1]
    %25 = vrot.lane.b32.xlu0 %v24, 96
    %v26 = vpop.permute.xlu0 %25
    %vm27 = vcmask 851712
    %28 = vst.msk [vmem:[#allocation0] sm:$0x1] %vm27, %v26
    %s29 = scalar_lea.vmem %s0, 11
    %v30 = vld [vmem:[%s29] sm:$0x1]
    %31 = vrot.lane.b32.xlu0 %v30, 88
    %v32 = vpop.permute.xlu0 %31
    %vm33 = vcmask 786112
    %34 = vst.msk [vmem:[#allocation0] sm:$0x1] %vm33, %v32
    %s35 = scalar_lea.vmem %s0, 10
    %v36 = vld [vmem:[%s35] sm:$0x1]
    %37 = vrot.lane.b32.xlu0 %v36, 80
    %v38 = vpop.permute.xlu0 %37
    %vm39 = vcmask 720512
    %40 = vst.msk [vmem:[#allocation0] sm:$0x1] %vm39, %v38
    %s41 = scalar_lea.vmem %s0, 9
    %v42 = vld [vmem:[%s41] sm:$0x1]
    %43 = vrot.lane.b32.xlu0 %v42, 72
    %v44 = vpop.permute.xlu0 %43
    %vm45 = vcmask 654912
    %46 = vst.msk [vmem:[#allocation0] sm:$0x1] %vm45, %v44
    %s47 = scalar_lea.vmem %s0, 8
    %v48 = vld [vmem:[%s47] sm:$0x1]
    %49 = vrot.lane.b32.xlu0 %v48, 64
    %v50 = vpop.permute.xlu0 %49
    %vm51 = vcmask 589312
    %52 = vst.msk [vmem:[#allocation0] sm:$0x1] %vm51, %v50
    %s53 = scalar_lea.vmem %s0, 7
    %v54 = vld [vmem:[%s53] sm:$0x1]
    %55 = vrot.lane.b32.xlu0 %v54, 56
    %v56 = vpop.permute.xlu0 %55
    %vm57 = vcmask 523712
    %58 = vst.msk [vmem:[#allocation0] sm:$0x1] %vm57, %v56
    %s59 = scalar_lea.vmem %s0, 6
    %v60 = vld [vmem:[%s59] sm:$0x1]
    %61 = vrot.lane.b32.xlu0 %v60, 48
    %v62 = vpop.permute.xlu0 %61
    %vm63 = vcmask 458112
    %64 = vst.msk [vmem:[#allocation0] sm:$0x1] %vm63, %v62
    %s65 = scalar_lea.vmem %s0, 5
    %v66 = vld [vmem:[%s65] sm:$0x1]
    %67 = vrot.lane.b32.xlu0 %v66, 40
    %v68 = vpop.permute.xlu0 %67
    %vm69 = vcmask 392512
    %70 = vst.msk [vmem:[#allocation0] sm:$0x1] %vm69, %v68
    %s71 = scalar_lea.vmem %s0, 4
    %v72 = vld [vmem:[%s71] sm:$0x1]
    %73 = vrot.lane.b32.xlu0 %v72, 32
    %v74 = vpop.permute.xlu0 %73
    %vm75 = vcmask 326912
    %76 = vst.msk [vmem:[#allocation0] sm:$0x1] %vm75, %v74
    %s77 = scalar_lea.vmem %s0, 3
    %v78 = vld [vmem:[%s77] sm:$0x1]
    %79 = vrot.lane.b32.xlu0 %v78, 24
    %v80 = vpop.permute.xlu0 %79
    %vm81 = vcmask 261312
    %82 = vst.msk [vmem:[#allocation0] sm:$0x1] %vm81, %v80
    %s83 = scalar_lea.vmem %s0, 2
    %v84 = vld [vmem:[%s83] sm:$0x1]
    %85 = vrot.lane.b32.xlu0 %v84, 16
    %v86 = vpop.permute.xlu0 %85
    %vm87 = vcmask 195712
    %88 = vst.msk [vmem:[#allocation0] sm:$0x1] %vm87, %v86
    %s89 = scalar_lea.vmem %s0, 1
    %v90 = vld [vmem:[%s89] sm:$0x1]
    %91 = vrot.lane.b32.xlu0 %v90, 8
    %v92 = vpop.permute.xlu0 %91
    %vm93 = vcmask 130112
    %94 = vst.msk [vmem:[#allocation0] sm:$0x1] %vm93, %v92
    %s96 = sshllo.u32 0, 1
    %v98 = vld [vmem:[#allocation0] sm:%s96]
    %s99 = sshllo.u32 0, 1
    %100 = vst [vmem:[%s1] sm:%s99] %v98

// kernel: residual_block_forward.1
$region0: #{residual_block_forward.1}
  #allocation0 [shape = 'u32[]', space=smem, size = 0x4, offset = 0x4, fixed_abs, tag = 'smem constant byte address 0x4 - core index']
  #allocation1 [shape = 'u32[144,128]{1,0:T(1,128)}', space=vmem, size = 0x12000, scoped, tag = 'internal scratch']
  #allocation2 [shape = 'f32[10,16,128]{2,1,0:T(8,128)}', space=vmem, size = 0x14000, scoped, tag = 'scratch operand']
  #allocation3 [shape = 'f32[8,18,128]{2,1,0:T(8,128)}', space=vmem, size = 0x18000, scoped, tag = 'scratch operand']
  %s0 = inlined_call_operand.vmem [shape: f32[2,8,18,64], index: 0, kind: input, shape index: {}]
  %s1 = inlined_call_operand.vmem [shape: f32[1413,128], index: 1, kind: input, shape index: {}]
  %s2 = inlined_call_operand.vmem [shape: f32[2,8,16,128], index: 2, kind: output, shape index: {}]
  %s3 = sld [smem:[#allocation0]]
  $region41: #{residual_block_forward.1} parent=0
    _
  %s5 = ssub.s32 1, %s3
  %s6 = scalar_select 0, %s5, %s3
  loop: start=0, step=1, limit=4
  $region2: #{residual_block_forward.1} parent=0 // loop_pre_header
    _
  $region3: #{residual_block_forward.1} parent=0 // loop_header
    %s8 = sphi 0, %s12
    %p9 = scmp.ge.s32.totalorder %s8, 4
    %s18 = sphi 0, %s20
    %s21 = sphi 0, %s18
    %s22 = sphi 0, %s21
    %s38 = sphi 0, %s22
    %s42 = sphi 0, %s42
    %s44 = sphi 0, %s42
    %s45 = sphi 0, %s44
    %s59 = sphi 0, %s45
    %s65 = sphi 0, %s67
    %s68 = sphi 0, %s65
    %s69 = sphi 0, %s68
    %s85 = sphi 0, %s69
  $region4: #{residual_block_forward.1} parent=0 // loop_header_branch
    %11 = sbr.rel (%p9) target = $region8
  $region5: #{residual_block_forward.1} parent=0 // loop_body
    %s13 = ssub.s32 %s8, 1
    %s14 = ssub.s32 %s8, 2
    %s15 = sadd.s32 %s8, 1
    %s16 = ssub.s32 %s8, %s15
    %p17 = scmp.eq.s32.totalorder %s16, 0
    %s19 = sadd.s32 %s18, 1
    %s20 = scalar_select %p17, %s18, %s19
    %p23 = pneg %p17
    %p24 = scmp.eq.s32.totalorder %s8, 1
    %p25 = por %p23, %p24
    %p26 = scmp.ne.s32.totalorder %s18, %s21
    %p27 = scmp.eq.s32.totalorder %s8, 0
    %p28 = por %p26, %p27
    %p29 = scmp.ne.s32.totalorder %s18, %s21
    %p30 = scmp.eq.s32.totalorder %s13, 1
    %p31 = por %p29, %p30
    %p32 = scmp.ne.s32.totalorder %s21, %s22
    %p33 = scmp.eq.s32.totalorder %s13, 0
    %p34 = por %p32, %p33
    %p35 = scmp.ne.s32.totalorder %s21, %s22
    %p36 = scmp.eq.s32.totalorder %s14, 1
    %p37 = por %p35, %p36
    %p39 = scmp.ne.s32.totalorder %s22, %s38
    %p40 = scmp.eq.s32.totalorder %s14, 0
    %p41 = por %p39, %p40
    %s43 = sadd.s32 %s42, 1
    %p46 = scmp.eq.s32.totalorder %s8, 1
    %p47 = scmp.ne.s32.totalorder %s42, %s44
    %p48 = scmp.eq.s32.totalorder %s8, 0
    %p49 = por %p47, %p48
    %p50 = scmp.ne.s32.totalorder %s42, %s44
    %p51 = scmp.eq.s32.totalorder %s13, 1
    %p52 = por %p50, %p51
    %p53 = scmp.ne.s32.totalorder %s44, %s45
    %p54 = scmp.eq.s32.totalorder %s13, 0
    %p55 = por %p53, %p54
    %p56 = scmp.ne.s32.totalorder %s44, %s45
    %p57 = scmp.eq.s32.totalorder %s14, 1
    %p58 = por %p56, %p57
    %p60 = scmp.ne.s32.totalorder %s45, %s59
    %p61 = scmp.eq.s32.totalorder %s14, 0
    %p62 = por %p60, %p61
    %s63 = ssub.s32 %s8, %s15
    %p64 = scmp.eq.s32.totalorder %s63, 0
    %s66 = sadd.s32 %s65, 1
    %s67 = scalar_select %p64, %s65, %s66
    %p70 = pneg %p64
    %p71 = scmp.eq.s32.totalorder %s8, 1
    %p72 = por %p70, %p71
    %p73 = scmp.ne.s32.totalorder %s65, %s68
    %p74 = scmp.eq.s32.totalorder %s8, 0
    %p75 = por %p73, %p74
    %p76 = scmp.ne.s32.totalorder %s65, %s68
    %p77 = scmp.eq.s32.totalorder %s13, 1
    %p78 = por %p76, %p77
    %p79 = scmp.ne.s32.totalorder %s68, %s69
    %p80 = scmp.eq.s32.totalorder %s13, 0
    %p81 = por %p79, %p80
    %p82 = scmp.ne.s32.totalorder %s68, %s69
    %p83 = scmp.eq.s32.totalorder %s14, 1
    %p84 = por %p82, %p83
    %p86 = scmp.ne.s32.totalorder %s69, %s85
    %p87 = scmp.eq.s32.totalorder %s14, 0
    %p88 = por %p86, %p87
    %p89 = scmp.le.s32.totalorder 1, %s8
    %p90 = scmp.lt.s32.totalorder %s8, 3
    %p91 = pnand %p89, %p90
    %p92 = pneg %p91
    // Predicated region
    $region9: #{residual_block_forward.1} parent=5 // pred_check
      _
    $region10: #{residual_block_forward.1} parent=5 // pred_check_branch
      %94 = sbr.rel (%p91) target = $region12
    $region11: #{residual_block_forward.1} parent=5 // pred_region
      %s95 = ssub.s32 %s8, 1
      // Predicated region
      $region13: #{residual_block_forward.1} parent=11 // pred_check
        %p96 = pneg %p55
      $region14: #{residual_block_forward.1} parent=11 // pred_check_branch
        %98 = sbr.rel (%p96) target = $region16
      $region15: #{residual_block_forward.1} parent=11 // pred_region
        _
      $region16: #{residual_block_forward.1} parent=11 // pred_fallthru
        _
    $region12: #{residual_block_forward.1} parent=5 // pred_fallthru
      _
    %p99 = scmp.lt.s32.totalorder %s8, 2
    // Predicated region
    $region17: #{residual_block_forward.1} parent=5 // pred_check
      %p100 = pneg %p99
    $region18: #{residual_block_forward.1} parent=5 // pred_check_branch
      %102 = sbr.rel (%p100) target = $region20
    $region19: #{residual_block_forward.1} parent=5 // pred_region
      // Predicated region
      $region21: #{residual_block_forward.1} parent=19 // pred_check
        %p103 = pneg %p28
      $region22: #{residual_block_forward.1} parent=19 // pred_check_branch
        %105 = sbr.rel (%p103) target = $region24
      $region23: #{residual_block_forward.1} parent=19 // pred_region
        %p106 = scmp.lt.s32.totalorder %s8, 1
        %s107 = scalar_select %p106, %s8, 1
        %s108 = smul.addr %s107, 24
        %s109 = smul.addr %s108, 8
        %s110 = scalar_lea.vmem %s0, %s109
      $region24: #{residual_block_forward.1} parent=19 // pred_fallthru
        _
    $region20: #{residual_block_forward.1} parent=5 // pred_fallthru
      _
    %p111 = scmp.le.s32.totalorder 1, %s8
    %p112 = scmp.lt.s32.totalorder %s8, 3
    %p113 = pnand %p111, %p112
    %p114 = pneg %p113
    // Predicated region
    $region25: #{residual_block_forward.1} parent=5 // pred_check
      _
    $region26: #{residual_block_forward.1} parent=5 // pred_check_branch
      %116 = sbr.rel (%p113) target = $region28
    $region27: #{residual_block_forward.1} parent=5 // pred_region
      %s117 = ssub.s32 %s8, 1
      %p118 = scmp.lt.s32.totalorder %s13, 1
      %s119 = scalar_select %p118, %s13, 1
      %s120 = smul.addr %s119, 24
      %s121 = smul.addr %s120, 8
      %s122 = scalar_lea.vmem %s0, %s121
      %p123 = pneg %p34
      %p124 = pneg %p31
      %p125 = pneg %p55
      %p126 = pneg %p52
      %p127 = pneg %p81
      %p128 = pneg %p78
      %p129 = scmp.lt.s32.totalorder %s13, 1
      %s130 = scalar_select %p129, %s13, 1
      %s131 = smul.addr %s130, 16
      %s132 = smul.addr %s131, 8
      %s133 = scalar_lea.vmem %s2, %s132
      %p134 = scmp.lt.s32.totalorder %s13, 1
      %s135 = scalar_select %p134, %s13, 1
      %s136 = smul.addr %s135, 24
      %s137 = smul.addr %s136, 8
      %s138 = scalar_lea.vmem %s0, %s137
      %p139 = scmp.lt.s32.totalorder %s13, 1
      %s140 = scalar_select %p139, %s13, 1
      %s141 = smul.addr %s140, 16
      %s142 = smul.addr %s141, 8
      %s143 = scalar_lea.vmem %s2, %s142
      %144 = vst [vmem:[#allocation2] sm:$0xff] 0.0
      %145 = vst [vmem:[#allocation2 + $0x8] sm:$0xff] 0.0
      %s146 = scalar_lea.vmem [#allocation2], 144
      %147 = vst [vmem:[%s146] sm:$0xff] 0.0
      %148 = vst [vmem:[%s146 + $0x8] sm:$0xff] 0.0
      %149 = vst [vmem:[#allocation3] sm:$0x1] 0.0
      %150 = vst [vmem:[#allocation3 + $0x18] sm:$0x1] 0.0
      %151 = vst [vmem:[#allocation3 + $0x30] sm:$0x1] 0.0
      %152 = vst [vmem:[#allocation3 + $0x48] sm:$0x1] 0.0
      %153 = vst [vmem:[#allocation3 + $0x60] sm:$0x1] 0.0
      %154 = vst [vmem:[#allocation3 + $0x78] sm:$0x1] 0.0
      %155 = vst [vmem:[#allocation3 + $0x90] sm:$0x1] 0.0
      %156 = vst [vmem:[#allocation3 + $0xa8] sm:$0x1] 0.0
      %157 = vst [vmem:[#allocation3 + $0x11] sm:$0x1] 0.0
      %158 = vst [vmem:[#allocation3 + $0x29] sm:$0x1] 0.0
      %159 = vst [vmem:[#allocation3 + $0x41] sm:$0x1] 0.0
      %160 = vst [vmem:[#allocation3 + $0x59] sm:$0x1] 0.0
      %161 = vst [vmem:[#allocation3 + $0x71] sm:$0x1] 0.0
      %162 = vst [vmem:[#allocation3 + $0x89] sm:$0x1] 0.0
      %163 = vst [vmem:[#allocation3 + $0xa1] sm:$0x1] 0.0
      %164 = vst [vmem:[#allocation3 + $0xb9] sm:$0x1] 0.0
      %v165 = vld [vmem:[%s138] sm:$0xff]
      %v166 = vld [vmem:[%s138 + $0x8] sm:$0xff]
      %v167 = vld [vmem:[%s138 + $0x18] sm:$0xff]
      %v168 = vld [vmem:[%s138 + $0x20] sm:$0xff]
      %v169 = vld [vmem:[%s138 + $0x30] sm:$0xff]
      %v170 = vld [vmem:[%s138 + $0x38] sm:$0xff]
      %v171 = vld [vmem:[%s138 + $0x48] sm:$0xff]
      %v172 = vld [vmem:[%s138 + $0x50] sm:$0xff]
      %v173 = vld [vmem:[%s138 + $0x60] sm:$0xff]
      %v174 = vld [vmem:[%s138 + $0x68] sm:$0xff]
      %v175 = vld [vmem:[%s138 + $0x78] sm:$0xff]
      %v176 = vld [vmem:[%s138 + $0x80] sm:$0xff]
      %v177 = vld [vmem:[%s138 + $0x90] sm:$0xff]
      %v178 = vld [vmem:[%s138 + $0x98] sm:$0xff]
      %v179 = vld [vmem:[%s138 + $0xa8] sm:$0xff]
      %v180 = vld [vmem:[%s138 + $0xb0] sm:$0xff]
      %v181 = vld [vmem:[%s1] sm:$0xff]
      %v182 = vld [vmem:[%s1 + $0x8] sm:$0xff]
      %v183 = vld [vmem:[%s1 + $0x10] sm:$0xff]
      %v184 = vld [vmem:[%s1 + $0x18] sm:$0xff]
      %v185 = vld [vmem:[%s1 + $0x20] sm:$0xff]
      %v186 = vld [vmem:[%s1 + $0x28] sm:$0xff]
      %v187 = vld [vmem:[%s1 + $0x30] sm:$0xff]
      %v188 = vld [vmem:[%s1 + $0x38] sm:$0xff]
      %v189 = vld [vmem:[%s138 + $0x1] sm:$0xff]
      %v190 = vld [vmem:[%s138 + $0x9] sm:$0xff]
      %v191 = vld [vmem:[%s138 + $0x19] sm:$0xff]
      %v192 = vld [vmem:[%s138 + $0x21] sm:$0xff]
      %v193 = vld [vmem:[%s138 + $0x31] sm:$0xff]
      %v194 = vld [vmem:[%s138 + $0x39] sm:$0xff]
      %v195 = vld [vmem:[%s138 + $0x49] sm:$0xff]
      %v196 = vld [vmem:[%s138 + $0x51] sm:$0xff]
      %v197 = vld [vmem:[%s138 + $0x61] sm:$0xff]
      %v198 = vld [vmem:[%s138 + $0x69] sm:$0xff]
      %v199 = vld [vmem:[%s138 + $0x79] sm:$0xff]
      %v200 = vld [vmem:[%s138 + $0x81] sm:$0xff]
      %v201 = vld [vmem:[%s138 + $0x91] sm:$0xff]
      %v202 = vld [vmem:[%s138 + $0x99] sm:$0xff]
      %v203 = vld [vmem:[%s138 + $0xa9] sm:$0xff]
      %v204 = vld [vmem:[%s138 + $0xb1] sm:$0xff]
      %v205 = vld [vmem:[%s1 + $0x40] sm:$0xff]
      %v206 = vld [vmem:[%s1 + $0x48] sm:$0xff]
      %v207 = vld [vmem:[%s1 + $0x50] sm:$0xff]
      %v208 = vld [vmem:[%s1 + $0x58] sm:$0xff]
      %v209 = vld [vmem:[%s1 + $0x60] sm:$0xff]
      %v210 = vld [vmem:[%s1 + $0x68] sm:$0xff]
      %v211 = vld [vmem:[%s1 + $0x70] sm:$0xff]
      %v212 = vld [vmem:[%s1 + $0x78] sm:$0xff]
      %vm213 = vcmask 523264
      %v215 = vsel %vm213, %v189, 0
      %v218 = vsel %vm213, %v190, 0
      %v221 = vsel %vm213, %v191, 0
      %v224 = vsel %vm213, %v192, 0
      %v227 = vsel %vm213, %v193, 0
      %v230 = vsel %vm213, %v194, 0
      %v233 = vsel %vm213, %v195, 0
      %v236 = vsel %vm213, %v196, 0
      %v239 = vsel %vm213, %v197, 0
      %v242 = vsel %vm213, %v198, 0
      %v245 = vsel %vm213, %v199, 0
      %v248 = vsel %vm213, %v200, 0
      %v251 = vsel %vm213, %v201, 0
      %v254 = vsel %vm213, %v202, 0
      %v257 = vsel %vm213, %v203, 0
      %v260 = vsel %vm213, %v204, 0
      %262 = vmatprep.subr.mxu0 0.0
      %263 = vmatpush1.msra.mxu0 %v205
      %264 = vmatprep.subr.mxu0 0.0
      %265 = vmatpush1.msra.mxu0 %v206
      %266 = vmatprep.subr.mxu0 0.0
      %267 = vmatpush1.msra.mxu0 %v207
      %268 = vmatprep.subr.mxu0 0.0
      %269 = vmatpush1.msra.mxu0 %v208
      %270 = vmatprep.subr.mxu0 0.0
      %271 = vmatpush1.msra.mxu0 %v209
      %272 = vmatprep.subr.mxu0 0.0
      %273 = vmatpush1.msra.mxu0 %v210
      %274 = vmatprep.subr.mxu0 0.0
      %275 = vmatpush1.msra.mxu0 %v211
      %276 = vmatprep.subr.mxu0 0.0
      %277 = vmatpush1.msra.mxu0 %v212
      %278 = vmatprep.subr.mxu0 0.0
      %279 = vmatpush1.msra.mxu0 0.0
      %280 = vmatprep.subr.mxu0 0.0
      %281 = vmatpush1.msra.mxu0 0.0
      %282 = vmatprep.subr.mxu0 0.0
      %283 = vmatpush1.msra.mxu0 0.0
      %284 = vmatprep.subr.mxu0 0.0
      %285 = vmatpush1.msra.mxu0 0.0
      %286 = vmatprep.subr.mxu0 0.0
      %287 = vmatpush1.msra.mxu0 0.0
      %288 = vmatprep.subr.mxu0 0.0
      %289 = vmatpush1.msra.mxu0 0.0
      %290 = vmatprep.subr.mxu0 0.0
      %291 = vmatpush1.msra.mxu0 0.0
      %292 = vmatprep.subr.mxu0 0.0
      %293 = vmatpush1.msra.mxu0 0.0
      %294 = vmatprep.subr.mxu0 0.0
      %295 = vmatpush1.msra.mxu0 0.0
      %296 = vmatprep.subr.mxu0 0.0
      %297 = vmatpush1.msra.mxu0 0.0
      %298 = vmatprep.subr.mxu0 0.0
      %299 = vmatpush1.msra.mxu0 0.0
      %300 = vmatprep.subr.mxu0 0.0
      %301 = vmatpush1.msra.mxu0 0.0
      %302 = vmatprep.subr.mxu0 0.0
      %303 = vmatpush1.msra.mxu0 0.0
      %304 = vmatprep.subr.mxu0 0.0
      %305 = vmatpush1.msra.mxu0 0.0
      %306 = vmatprep.subr.mxu0 0.0
      %307 = vmatpush1.msra.mxu0 0.0
      %308 = vmatprep.subr.mxu0 0.0
      %309 = vmatpush1.msra.mxu0 0.0
      %310 = vmatprep.subr.mxu0 0.0
      %311 = vmatpush1.msra.mxu0 0.0
      %312 = vmatprep.subr.mxu0 0.0
      %313 = vmatpush1.msra.mxu0 0.0
      %314 = vmatprep.subr.mxu0 0.0
      %315 = vmatpush1.msra.mxu0 0.0
      %316 = vmatprep.subr.mxu0 0.0
      %317 = vmatpush1.msra.mxu0 0.0
      %318 = vmatprep.subr.mxu0 0.0
      %319 = vmatpush1.msra.mxu0 0.0
      %320 = vmatprep.subr.mxu0 0.0
      %321 = vmatpush1.msra.mxu0 0.0
      %322 = vmatprep.subr.mxu0 0.0
      %323 = vmatpush1.msra.mxu0 0.0
      %324 = vmatprep.subr.mxu0 0.0
      %325 = vmatpush1.msra.mxu0 0.0
      %326 = vmatprep.mubr.f32.mxu0 0.0
      %327 = vmatmul.mubr.f32.gmra.mrb[0].mxu0 %v215
      %v328 = vpop.f32.mrb[0].mxu0
      %v329 = vadd.f32 0.0, %v328
      %v330 = vpop.f32.mrb[0].mxu0
      %331 = vmatprep.mubr.f32.mxu0 0.0
      %332 = vmatmul.mubr.f32.gmra.mrb[0].mxu0 %v218
      %v333 = vpop.f32.mrb[0].mxu0
      %v334 = vadd.f32 0.0, %v333
      %v335 = vpop.f32.mrb[0].mxu0
      %336 = vmatprep.mubr.f32.mxu0 0.0
      %337 = vmatmul.mubr.f32.gmra.mrb[0].mxu0 %v221
      %v338 = vpop.f32.mrb[0].mxu0
      %v339 = vadd.f32 0.0, %v338
      %v340 = vpop.f32.mrb[0].mxu0
      %341 = vmatprep.mubr.f32.mxu0 0.0
      %342 = vmatmul.mubr.f32.gmra.mrb[0].mxu0 %v224
      %v343 = vpop.f32.mrb[0].mxu0
      %v344 = vadd.f32 0.0, %v343
      %v345 = vpop.f32.mrb[0].mxu0
      %346 = vmatprep.mubr.f32.mxu0 0.0
      %347 = vmatmul.mubr.f32.gmra.mrb[0].mxu0 %v227
      %v348 = vpop.f32.mrb[0].mxu0
      %v349 = vadd.f32 0.0, %v348
      %v350 = vpop.f32.mrb[0].mxu0
      %351 = vmatprep.mubr.f32.mxu0 0.0
      %352 = vmatmul.mubr.f32.gmra.mrb[0].mxu0 %v230
      %v353 = vpop.f32.mrb[0].mxu0
      %v354 = vadd.f32 0.0, %v353
      %v355 = vpop.f32.mrb[0].mxu0
      %356 = vmatprep.mubr.f32.mxu0 0.0
      %357 = vmatmul.mubr.f32.gmra.mrb[0].mxu0 %v233
      %v358 = vpop.f32.mrb[0].mxu0
      %v359 = vadd.f32 0.0, %v358
      %v360 = vpop.f32.mrb[0].mxu0
      %361 = vmatprep.mubr.f32.mxu0 0.0
      %362 = vmatmul.mubr.f32.gmra.mrb[0].mxu0 %v236
      %v363 = vpop.f32.mrb[0].mxu0
      %v364 = vadd.f32 0.0, %v363
      %v365 = vpop.f32.mrb[0].mxu0
      %366 = vmatprep.mubr.f32.mxu0 0.0
      %367 = vmatmul.mubr.f32.gmra.mrb[0].mxu0 %v239
      %v368 = vpop.f32.mrb[0].mxu0
      %v369 = vadd.f32 0.0, %v368
      %v370 = vpop.f32.mrb[0].mxu0
      %371 = vmatprep.mubr.f32.mxu0 0.0
      %372 = vmatmul.mubr.f32.gmra.mrb[0].mxu0 %v242
      %v373 = vpop.f32.mrb[0].mxu0
      %v374 = vadd.f32 0.0, %v373
      %v375 = vpop.f32.mrb[0].mxu0
      %376 = vmatprep.mubr.f32.mxu0 0.0
      %377 = vmatmul.mubr.f32.gmra.mrb[0].mxu0 %v245
      %v378 = vpop.f32.mrb[0].mxu0
      %v379 = vadd.f32 0.0, %v378
      %v380 = vpop.f32.mrb[0].mxu0
      %381 = vmatprep.mubr.f32.mxu0 0.0
      %382 = vmatmul.mubr.f32.gmra.mrb[0].mxu0 %v248
      %v383 = vpop.f32.mrb[0].mxu0
      %v384 = vadd.f32 0.0, %v383
      %v385 = vpop.f32.mrb[0].mxu0
      %386 = vmatprep.mubr.f32.mxu0 0.0
      %387 = vmatmul.mubr.f32.gmra.mrb[0].mxu0 %v251
      %v388 = vpop.f32.mrb[0].mxu0
      %v389 = vadd.f32 0.0, %v388
      %v390 = vpop.f32.mrb[0].mxu0
      %391 = vmatprep.mubr.f32.mxu0 0.0
      %392 = vmatmul.mubr.f32.gmra.mrb[0].mxu0 %v254
      %v393 = vpop.f32.mrb[0].mxu0
      %v394 = vadd.f32 0.0, %v393
      %v395 = vpop.f32.mrb[0].mxu0
      %396 = vmatprep.mubr.f32.mxu0 0.0
      %397 = vmatmul.mubr.f32.gmra.mrb[0].mxu0 %v257
      %v398 = vpop.f32.mrb[0].mxu0
      %v399 = vadd.f32 0.0, %v398
      %v400 = vpop.f32.mrb[0].mxu0
      %401 = vmatprep.mubr.f32.mxu0 0.0
      %402 = vmatmul.mubr.f32.gmra.mrb[0].mxu0 %v260
      %v403 = vpop.f32.mrb[0].mxu0
      %v404 = vadd.f32 0.0, %v403
      %v405 = vpop.f32.mrb[0].mxu0
      %406 = vdwg.mxu0
      %v408 = vsel %vm213, %v165, 0
      %v411 = vsel %vm213, %v166, 0
      %v414 = vsel %vm213, %v167, 0
      %v417 = vsel %vm213, %v168, 0
      %v420 = vsel %vm213, %v169, 0
      %v423 = vsel %vm213, %v170, 0
      %v426 = vsel %vm213, %v171, 0
      %v429 = vsel %vm213, %v172, 0
      %v432 = vsel %vm213, %v173, 0
      %v435 = vsel %vm213, %v174, 0
      %v438 = vsel %vm213, %v175, 0
      %v441 = vsel %vm213, %v176, 0
      %v444 = vsel %vm213, %v177, 0
      %v447 = vsel %vm213, %v178, 0
      %v450 = vsel %vm213, %v179, 0
      %v453 = vsel %vm213, %v180, 0
      %455 = vmatprep.subr.mxu0 0.0
      %456 = vmatpush1.msra.mxu0 %v181
      %457 = vmatprep.subr.mxu0 0.0
      %458 = vmatpush1.msra.mxu0 %v182
      %459 = vmatprep.subr.mxu0 0.0
      %460 = vmatpush1.msra.mxu0 %v183
      %461 = vmatprep.subr.mxu0 0.0
      %462 = vmatpush1.msra.mxu0 %v184
      %463 = vmatprep.subr.mxu0 0.0
      %464 = vmatpush1.msra.mxu0 %v185
      %465 = vmatprep.subr.mxu0 0.0
      %466 = vmatpush1.msra.mxu0 %v186
      %467 = vmatprep.subr.mxu0 0.0
      %468 = vmatpush1.msra.mxu0 %v187
      %469 = vmatprep.subr.mxu0 0.0
      %470 = vmatpush1.msra.mxu0 %v188
      %471 = vmatprep.subr.mxu0 0.0
      %472 = vmatpush1.msra.mxu0 0.0
      %473 = vmatprep.subr.mxu0 0.0
      %474 = vmatpush1.msra.mxu0 0.0
      %475 = vmatprep.subr.mxu0 0.0
      %476 = vmatpush1.msra.mxu0 0.0
      %477 = vmatprep.subr.mxu0 0.0
      %478 = vmatpush1.msra.mxu0 0.0
      %479 = vmatprep.subr.mxu0 0.0
      %480 = vmatpush1.msra.mxu0 0.0
      %481 = vmatprep.subr.mxu0 0.0
      %482 = vmatpush1.msra.mxu0 0.0
      %483 = vmatprep.subr.mxu0 0.0
      %484 = vmatpush1.msra.mxu0 0.0
      %485 = vmatprep.subr.mxu0 0.0
      %486 = vmatpush1.msra.mxu0 0.0
      %487 = vmatprep.subr.mxu0 0.0
      %488 = vmatpush1.msra.mxu0 0.0
      %489 = vmatprep.subr.mxu0 0.0
      %490 = vmatpush1.msra.mxu0 0.0
      %491 = vmatprep.subr.mxu0 0.0
      %492 = vmatpush1.msra.mxu0 0.0
      %493 = vmatprep.subr.mxu0 0.0
      %494 = vmatpush1.msra.mxu0 0.0
      %495 = vmatprep.subr.mxu0 0.0
      %496 = vmatpush1.msra.mxu0 0.0
      %497 = vmatprep.subr.mxu0 0.0
      %498 = vmatpush1.msra.mxu0 0.0
      %499 = vmatprep.subr.mxu0 0.0
      %500 = vmatpush1.msra.mxu0 0.0
      %501 = vmatprep.subr.mxu0 0.0
      %502 = vmatpush1.msra.mxu0 0.0
      %503 = vmatprep.subr.mxu0 0.0
      %504 = vmatpush1.msra.mxu0 0.0
      %505 = vmatprep.subr.mxu0 0.0
      %506 = vmatpush1.msra.mxu0 0.0
      %507 = vmatprep.subr.mxu0 0.0
      %508 = vmatpush1.msra.mxu0 0.0
      %509 = vmatprep.subr.mxu0 0.0
      %510 = vmatpush1.msra.mxu0 0.0
      %511 = vmatprep.subr.mxu0 0.0
      %512 = vmatpush1.msra.mxu0 0.0
      %513 = vmatprep.subr.mxu0 0.0
      %514 = vmatpush1.msra.mxu0 0.0
      %515 = vmatprep.subr.mxu0 0.0
      %516 = vmatpush1.msra.mxu0 0.0
      %517 = vmatprep.subr.mxu0 0.0
      %518 = vmatpush1.msra.mxu0 0.0
      %519 = vmatprep.mubr.f32.mxu0 0.0
      %520 = vmatmul.mubr.f32.gmra.mrb[0].mxu0 %v408
      %v521 = vpop.f32.mrb[0].mxu0
      %v522 = vadd.f32 %v329, %v521
      %v523 = vpop.f32.mrb[0].mxu0
      %524 = vmatprep.mubr.f32.mxu0 0.0
      %525 = vmatmul.mubr.f32.gmra.mrb[0].mxu0 %v411
      %v526 = vpop.f32.mrb[0].mxu0
      %v527 = vadd.f32 %v334, %v526
      %v528 = vpop.f32.mrb[0].mxu0
      %529 = vmatprep.mubr.f32.mxu0 0.0
      %530 = vmatmul.mubr.f32.gmra.mrb[0].mxu0 %v414
      %v531 = vpop.f32.mrb[0].mxu0
      %v532 = vadd.f32 %v339, %v531
      %v533 = vpop.f32.mrb[0].mxu0
      %534 = vmatprep.mubr.f32.mxu0 0.0
      %535 = vmatmul.mubr.f32.gmra.mrb[0].mxu0 %v417
      %v536 = vpop.f32.mrb[0].mxu0
      %v537 = vadd.f32 %v344, %v536
      %v538 = vpop.f32.mrb[0].mxu0
      %539 = vmatprep.mubr.f32.mxu0 0.0
      %540 = vmatmul.mubr.f32.gmra.mrb[0].mxu0 %v420
      %v541 = vpop.f32.mrb[0].mxu0
      %v542 = vadd.f32 %v349, %v541
      %v543 = vpop.f32.mrb[0].mxu0
      %544 = vmatprep.mubr.f32.mxu0 0.0
      %545 = vmatmul.mubr.f32.gmra.mrb[0].mxu0 %v423
      %v546 = vpop.f32.mrb[0].mxu0
      %v547 = vadd.f32 %v354, %v546
      %v548 = vpop.f32.mrb[0].mxu0
      %549 = vmatprep.mubr.f32.mxu0 0.0
      %550 = vmatmul.mubr.f32.gmra.mrb[0].mxu0 %v426
      %v551 = vpop.f32.mrb[0].mxu0
      %v552 = vadd.f32 %v359, %v551
      %v553 = vpop.f32.mrb[0].mxu0
      %554 = vmatprep.mubr.f32.mxu0 0.0
      %555 = vmatmul.mubr.f32.gmra.mrb[0].mxu0 %v429
      %v556 = vpop.f32.mrb[0].mxu0
      %v557 = vadd.f32 %v364, %v556
      %v558 = vpop.f32.mrb[0].mxu0
      %559 = vmatprep.mubr.f32.mxu0 0.0
      %560 = vmatmul.mubr.f32.gmra.mrb[0].mxu0 %v432
      %v561 = vpop.f32.mrb[0].mxu0
      %v562 = vadd.f32 %v369, %v561
      %v563 = vpop.f32.mrb[0].mxu0
      %564 = vmatprep.mubr.f32.mxu0 0.0
      %565 = vmatmul.mubr.f32.gmra.mrb[0].mxu0 %v435
      %v566 = vpop.f32.mrb[0].mxu0
      %v567 = vadd.f32 %v374, %v566
      %v568 = vpop.f32.mrb[0].mxu0
      %569 = vmatprep.mubr.f32.mxu0 0.0
      %570 = vmatmul.mubr.f32.gmra.mrb[0].mxu0 %v438
      %v571 = vpop.f32.mrb[0].mxu0
      %v572 = vadd.f32 %v379, %v571
      %v573 = vpop.f32.mrb[0].mxu0
      %574 = vmatprep.mubr.f32.mxu0 0.0
      %575 = vmatmul.mubr.f32.gmra.mrb[0].mxu0 %v441
      %v576 = vpop.f32.mrb[0].mxu0
      %v577 = vadd.f32 %v384, %v576
      %v578 = vpop.f32.mrb[0].mxu0
      %579 = vmatprep.mubr.f32.mxu0 0.0
      %580 = vmatmul.mubr.f32.gmra.mrb[0].mxu0 %v444
      %v581 = vpop.f32.mrb[0].mxu0
      %v582 = vadd.f32 %v389, %v581
      %v583 = vpop.f32.mrb[0].mxu0
      %584 = vmatprep.mubr.f32.mxu0 0.0
      %585 = vmatmul.mubr.f32.gmra.mrb[0].mxu0 %v447
      %v586 = vpop.f32.mrb[0].mxu0
      %v587 = vadd.f32 %v394, %v586
      %v588 = vpop.f32.mrb[0].mxu0
      %589 = vmatprep.mubr.f32.mxu0 0.0
      %590 = vmatmul.mubr.f32.gmra.mrb[0].mxu0 %v450
      %v591 = vpop.f32.mrb[0].mxu0
      %v592 = vadd.f32 %v399, %v591
      %v593 = vpop.f32.mrb[0].mxu0
      %594 = vmatprep.mubr.f32.mxu0 0.0
      %595 = vmatmul.mubr.f32.gmra.mrb[0].mxu0 %v453
      %v596 = vpop.f32.mrb[0].mxu0
      %v597 = vadd.f32 %v404, %v596
      %v598 = vpop.f32.mrb[0].mxu0
      %599 = vdwg.mxu0
      %v600 = vld [vmem:[%s138 + $0x2] sm:$0xff]
      %v601 = vld [vmem:[%s138 + $0xa] sm:$0xff]
      %v602 = vld [vmem:[%s138 + $0x1a] sm:$0xff]
      %v603 = vld [vmem:[%s138 + $0x22] sm:$0xff]
      %v604 = vld [vmem:[%s138 + $0x32] sm:$0xff]
      %v605 = vld [vmem:[%s138 + $0x3a] sm:$0xff]
      %v606 = vld [vmem:[%s138 + $0x4a] sm:$0xff]
      %v607 = vld [vmem:[%s138 + $0x52] sm:$0xff]
      %v608 = vld [vmem:[%s138 + $0x62] sm:$0xff]
      %v609 = vld [vmem:[%s138 + $0x6a] sm:$0xff]
      %v610 = vld [vmem:[%s138 + $0x7a] sm:$0xff]
      %v611 = vld [vmem:[%s138 + $0x82] sm:$0xff]
      %v612 = vld [vmem:[%s138 + $0x92] sm:$0xff]
      %v613 = vld [vmem:[%s138 + $0x9a] sm:$0xff]
      %v614 = vld [vmem:[%s138 + $0xaa] sm:$0xff]
      %v615 = vld [vmem:[%s138 + $0xb2] sm:$0xff]
      %v616 = vld [vmem:[%s1 + $0x80] sm:$0xff]
      %v617 = vld [vmem:[%s1 + $0x88] sm:$0xff]
      %v618 = vld [vmem:[%s1 + $0x90] sm:$0xff]
      %v619 = vld [vmem:[%s1 + $0x98] sm:$0xff]
      %v620 = vld [vmem:[%s1 + $0xa0] sm:$0xff]
      %v621 = vld [vmem:[%s1 + $0xa8] sm:$0xff]
      %v622 = vld [vmem:[%s1 + $0xb0] sm:$0xff]
      %v623 = vld [vmem:[%s1 + $0xb8] sm:$0xff]
      %v625 = vsel %vm213, %v600, 0
      %v628 = vsel %vm213, %v601, 0
      %v631 = vsel %vm213, %v602, 0
      %v634 = vsel %vm213, %v603, 0
      %v637 = vsel %vm213, %v604, 0
      %v640 = vsel %vm213, %v605, 0
      %v643 = vsel %vm213, %v606, 0
      %v646 = vsel %vm213, %v607, 0
      %v649 = vsel %vm213, %v608, 0
      %v652 = vsel %vm213, %v609, 0
      %v655 = vsel %vm213, %v610, 0
      %v658 = vsel %vm213, %v611, 0
      %v661 = vsel %vm213, %v612, 0
      %v664 = vsel %vm213, %v613, 0
      %v667 = vsel %vm213, %v614, 0
      %v670 = vsel %vm213, %v615, 0
      %672 = vmatprep.subr.mxu0 0.0
      %673 = vmatpush1.msra.mxu0 %v616
      %674 = vmatprep.subr.mxu0 0.0
      %675 = vmatpush1.msra.mxu0 %v617
      %676 = vmatprep.subr.mxu0 0.0
      %677 = vmatpush1.msra.mxu0 %v618
      %678 = vmatprep.subr.mxu0 0.0
      %679 = vmatpush1.msra.mxu0 %v619
      %680 = vmatprep.subr.mxu0 0.0
      %681 = vmatpush1.msra.mxu0 %v620
      %682 = vmatprep.subr.mxu0 0.0
      %683 = vmatpush1.msra.mxu0 %v621
      %684 = vmatprep.subr.mxu0 0.0
      %685 = vmatpush1.msra.mxu0 %v622
      %686 = vmatprep.subr.mxu0 0.0
      %687 = vmatpush1.msra.mxu0 %v623
      %688 = vmatprep.subr.mxu0 0.0
      %689 = vmatpush1.msra.mxu0 0.0
      %690 = vmatprep.subr.mxu0 0.0
      %691 = vmatpush1.msra.mxu0 0.0
      %692 = vmatprep.subr.mxu0 0.0
      %693 = vmatpush1.msra.mxu0 0.0
      %694 = vmatprep.subr.mxu0 0.0
      %695 = vmatpush1.msra.mxu0 0.0
      %696 = vmatprep.subr.mxu0 0.0
      %697 = vmatpush1.msra.mxu0 0.0
      %698 = vmatprep.subr.mxu0 0.0
      %699 = vmatpush1.msra.mxu0 0.0
      %700 = vmatprep.subr.mxu0 0.0
      %701 = vmatpush1.msra.mxu0 0.0
      %702 = vmatprep.subr.mxu0 0.0
      %703 = vmatpush1.msra.mxu0 0.0
      %704 = vmatprep.subr.mxu0 0.0
      %705 = vmatpush1.msra.mxu0 0.0
      %706 = vmatprep.subr.mxu0 0.0
      %707 = vmatpush1.msra.mxu0 0.0
      %708 = vmatprep.subr.mxu0 0.0
      %709 = vmatpush1.msra.mxu0 0.0
      %710 = vmatprep.subr.mxu0 0.0
      %711 = vmatpush1.msra.mxu0 0.0
      %712 = vmatprep.subr.mxu0 0.0
      %713 = vmatpush1.msra.mxu0 0.0
      %714 = vmatprep.subr.mxu0 0.0
      %715 = vmatpush1.msra.mxu0 0.0
      %716 = vmatprep.subr.mxu0 0.0
      %717 = vmatpush1.msra.mxu0 0.0
      %718 = vmatprep.subr.mxu0 0.0
      %719 = vmatpush1.msra.mxu0 0.0
      %720 = vmatprep.subr.mxu0 0.0
      %721 = vmatpush1.msra.mxu0 0.0
      %722 = vmatprep.subr.mxu0 0.0
      %723 = vmatpush1.msra.mxu0 0.0
      %724 = vmatprep.subr.mxu0 0.0
      %725 = vmatpush1.msra.mxu0 0.0
      %726 = vmatprep.subr.mxu0 0.0
      %727 = vmatpush1.msra.mxu0 0.0
      %728 = vmatprep.subr.mxu0 0.0
      %729 = vmatpush1.msra.mxu0 0.0
      %730 = vmatprep.subr.mxu0 0.0
      %731 = vmatpush1.msra.mxu0 0.0
      %732 = vmatprep.subr.mxu0 0.0
      %733 = vmatpush1.msra.mxu0 0.0
      %734 = vmatprep.subr.mxu0 0.0
      %735 = vmatpush1.msra.mxu0 0.0
      %736 = vmatprep.mubr.f32.mxu0 0.0
      %737 = vmatmul.mubr.f32.gmra.mrb[0].mxu0 %v625
      %v738 = vpop.f32.mrb[0].mxu0
      %v739 = vadd.f32 0.0, %v738
      %v740 = vpop.f32.mrb[0].mxu0
      %741 = vmatprep.mubr.f32.mxu0 0.0
      %742 = vmatmul.mubr.f32.gmra.mrb[0].mxu0 %v628
      %v743 = vpop.f32.mrb[0].mxu0
      %v744 = vadd.f32 0.0, %v743
      %v745 = vpop.f32.mrb[0].mxu0
      %746 = vmatprep.mubr.f32.mxu0 0.0
      %747 = vmatmul.mubr.f32.gmra.mrb[0].mxu0 %v631
      %v748 = vpop.f32.mrb[0].mxu0
      %v749 = vadd.f32 0.0, %v748
      %v750 = vpop.f32.mrb[0].mxu0
      %751 = vmatprep.mubr.f32.mxu0 0.0
      %752 = vmatmul.mubr.f32.gmra.mrb[0].mxu0 %v634
      %v753 = vpop.f32.mrb[0].mxu0
      %v754 = vadd.f32 0.0, %v753
      %v755 = vpop.f32.mrb[0].mxu0
      %756 = vmatprep.mubr.f32.mxu0 0.0
      %757 = vmatmul.mubr.f32.gmra.mrb[0].mxu0 %v637
      %v758 = vpop.f32.mrb[0].mxu0
      %v759 = vadd.f32 0.0, %v758
      %v760 = vpop.f32.mrb[0].mxu0
      %761 = vmatprep.mubr.f32.mxu0 0.0
      %762 = vmatmul.mubr.f32.gmra.mrb[0].mxu0 %v640
      %v763 = vpop.f32.mrb[0].mxu0
      %v764 = vadd.f32 0.0, %v763
      %v765 = vpop.f32.mrb[0].mxu0
      %766 = vmatprep.mubr.f32.mxu0 0.0
      %767 = vmatmul.mubr.f32.gmra.mrb[0].mxu0 %v643
      %v768 = vpop.f32.mrb[0].mxu0
      %v769 = vadd.f32 0.0, %v768
      %v770 = vpop.f32.mrb[0].mxu0
      %771 = vmatprep.mubr.f32.mxu0 0.0
      %772 = vmatmul.mubr.f32.gmra.mrb[0].mxu0 %v646
      %v773 = vpop.f32.mrb[0].mxu0
      %v774 = vadd.f32 0.0, %v773
      %v775 = vpop.f32.mrb[0].mxu0
      %776 = vmatprep.mubr.f32.mxu0 0.0
      %777 = vmatmul.mubr.f32.gmra.mrb[0].mxu0 %v649
      %v778 = vpop.f32.mrb[0].mxu0
      %v779 = vadd.f32 0.0, %v778
      %v780 = vpop.f32.mrb[0].mxu0
      %781 = vmatprep.mubr.f32.mxu0 0.0
      %782 = vmatmul.mubr.f32.gmra.mrb[0].mxu0 %v652
      %v783 = vpop.f32.mrb[0].mxu0
      %v784 = vadd.f32 0.0, %v783
      %v785 = vpop.f32.mrb[0].mxu0
      %786 = vmatprep.mubr.f32.mxu0 0.0
      %787 = vmatmul.mubr.f32.gmra.mrb[0].mxu0 %v655
      %v788 = vpop.f32.mrb[0].mxu0
      %v789 = vadd.f32 0.0, %v788
      %v790 = vpop.f32.mrb[0].mxu0
      %791 = vmatprep.mubr.f32.mxu0 0.0
      %792 = vmatmul.mubr.f32.gmra.mrb[0].mxu0 %v658
      %v793 = vpop.f32.mrb[0].mxu0
      %v794 = vadd.f32 0.0, %v793
      %v795 = vpop.f32.mrb[0].mxu0
      %796 = vmatprep.mubr.f32.mxu0 0.0
      %797 = vmatmul.mubr.f32.gmra.mrb[0].mxu0 %v661
      %v798 = vpop.f32.mrb[0].mxu0
      %v799 = vadd.f32 0.0, %v798
      %v800 = vpop.f32.mrb[0].mxu0
      %801 = vmatprep.mubr.f32.mxu0 0.0
      %802 = vmatmul.mubr.f32.gmra.mrb[0].mxu0 %v664
      %v803 = vpop.f32.mrb[0].mxu0
      %v804 = vadd.f32 0.0, %v803
      %v805 = vpop.f32.mrb[0].mxu0
      %806 = vmatprep.mubr.f32.mxu0 0.0
      %807 = vmatmul.mubr.f32.gmra.mrb[0].mxu0 %v667
      %v808 = vpop.f32.mrb[0].mxu0
      %v809 = vadd.f32 0.0, %v808
      %v810 = vpop.f32.mrb[0].mxu0
      %811 = vmatprep.mubr.f32.mxu0 0.0
      %812 = vmatmul.mubr.f32.gmra.mrb[0].mxu0 %v670
      %v813 = vpop.f32.mrb[0].mxu0
      %v814 = vadd.f32 0.0, %v813
      %v815 = vpop.f32.mrb[0].mxu0
      %816 = vdwg.mxu0
      %v817 = vadd.f32 %v522, %v739
      %v818 = vadd.f32 %v527, %v744
      %v819 = vadd.f32 %v532, %v749
      %v820 = vadd.f32 %v537, %v754
      %v821 = vadd.f32 %v542, %v759
      %v822 = vadd.f32 %v547, %v764
      %v823 = vadd.f32 %v552, %v769
      %v824 = vadd.f32 %v557, %v774
      %v825 = vadd.f32 %v562, %v779
      %v826 = vadd.f32 %v567, %v784
      %v827 = vadd.f32 %v572, %v789
      %v828 = vadd.f32 %v577, %v794
      %v829 = vadd.f32 %v582, %v799
      %v830 = vadd.f32 %v587, %v804
      %v831 = vadd.f32 %v592, %v809
      %v832 = vadd.f32 %v597, %v814
      %v833 = vld [vmem:[%s1 + $0x580] sm:$0x1]
      %v834 = vlaneseq
      %v835 = vshrl.u32 %v834, 7
      %v836 = vsub.s32 0, %v835
      %v837 = vrot.slane %v833, %v836
      %v838 = vadd.f32 %v817, %v837
      %v839 = vadd.f32 %v818, %v837
      %v840 = vadd.f32 %v819, %v837
      %v841 = vadd.f32 %v820, %v837
      %v842 = vadd.f32 %v821, %v837
      %v843 = vadd.f32 %v822, %v837
      %v844 = vadd.f32 %v823, %v837
      %v845 = vadd.f32 %v824, %v837
      %v846 = vadd.f32 %v825, %v837
      %v847 = vadd.f32 %v826, %v837
      %v848 = vadd.f32 %v827, %v837
      %v849 = vadd.f32 %v828, %v837
      %v850 = vadd.f32 %v829, %v837
      %v851 = vadd.f32 %v830, %v837
      %v852 = vadd.f32 %v831, %v837
      %v853 = vadd.f32 %v832, %v837
      %v854 = vmax.f32 %v838, 0.0
      %v855 = vmax.f32 %v839, 0.0
      %v856 = vmax.f32 %v840, 0.0
      %v857 = vmax.f32 %v841, 0.0
      %v858 = vmax.f32 %v842, 0.0
      %v859 = vmax.f32 %v843, 0.0
      %v860 = vmax.f32 %v844, 0.0
      %v861 = vmax.f32 %v845, 0.0
      %v862 = vmax.f32 %v846, 0.0
      %v863 = vmax.f32 %v847, 0.0
      %v864 = vmax.f32 %v848, 0.0
      %v865 = vmax.f32 %v849, 0.0
      %v866 = vmax.f32 %v850, 0.0
      %v867 = vmax.f32 %v851, 0.0
      %v868 = vmax.f32 %v852, 0.0
      %v869 = vmax.f32 %v853, 0.0
      %s870 = scalar_lea.vmem [#allocation2], 16
      %871 = vst [vmem:[%s870] sm:$0xff] %v854
      %872 = vst [vmem:[%s870 + $0x8] sm:$0xff] %v855
      %873 = vst [vmem:[%s870 + $0x10] sm:$0xff] %v856
      %874 = vst [vmem:[%s870 + $0x18] sm:$0xff] %v857
      %875 = vst [vmem:[%s870 + $0x20] sm:$0xff] %v858
      %876 = vst [vmem:[%s870 + $0x28] sm:$0xff] %v859
      %877 = vst [vmem:[%s870 + $0x30] sm:$0xff] %v860
      %878 = vst [vmem:[%s870 + $0x38] sm:$0xff] %v861
      %879 = vst [vmem:[%s870 + $0x40] sm:$0xff] %v862
      %880 = vst [vmem:[%s870 + $0x48] sm:$0xff] %v863
      %881 = vst [vmem:[%s870 + $0x50] sm:$0xff] %v864
      %882 = vst [vmem:[%s870 + $0x58] sm:$0xff] %v865
      %883 = vst [vmem:[%s870 + $0x60] sm:$0xff] %v866
      %884 = vst [vmem:[%s870 + $0x68] sm:$0xff] %v867
      %885 = vst [vmem:[%s870 + $0x70] sm:$0xff] %v868
      %886 = vst [vmem:[%s870 + $0x78] sm:$0xff] %v869
      %v887 = vld [vmem:[#allocation2] sm:$0xff]
      %v888 = vld [vmem:[#allocation2 + $0x8] sm:$0xff]
      %v889 = vld [vmem:[#allocation2 + $0x10] sm:$0xff]
      %v890 = vld [vmem:[#allocation2 + $0x18] sm:$0xff]
      %v891 = vld [vmem:[#allocation2 + $0x20] sm:$0xff]
      %v892 = vld [vmem:[#allocation2 + $0x28] sm:$0xff]
      %v893 = vld [vmem:[#allocation2 + $0x30] sm:$0xff]
      %v894 = vld [vmem:[#allocation2 + $0x38] sm:$0xff]
      %v895 = vld [vmem:[#allocation2 + $0x40] sm:$0xff]
      %v896 = vld [vmem:[#allocation2 + $0x48] sm:$0xff]
      %v897 = vld [vmem:[#allocation2 + $0x50] sm:$0xff]
      %v898 = vld [vmem:[#allocation2 + $0x58] sm:$0xff]
      %v899 = vld [vmem:[#allocation2 + $0x60] sm:$0xff]
      %v900 = vld [vmem:[#allocation2 + $0x68] sm:$0xff]
      %v901 = vld [vmem:[#allocation2 + $0x70] sm:$0xff]
      %v902 = vld [vmem:[#allocation2 + $0x78] sm:$0xff]
      %v903 = vld [vmem:[%s1 + $0xc0] sm:$0xff]
      %v904 = vld [vmem:[%s1 + $0xc8] sm:$0xff]
      %v905 = vld [vmem:[%s1 + $0xd0] sm:$0xff]
      %v906 = vld [vmem:[%s1 + $0xd8] sm:$0xff]
      %v907 = vld [vmem:[%s1 + $0xe0] sm:$0xff]
      %v908 = vld [vmem:[%s1 + $0xe8] sm:$0xff]
      %v909 = vld [vmem:[%s1 + $0xf0] sm:$0xff]
      %v910 = vld [vmem:[%s1 + $0xf8] sm:$0xff]
      %v911 = vld [vmem:[%s1 + $0x100] sm:$0xff]
      %v912 = vld [vmem:[%s1 + $0x108] sm:$0xff]
      %v913 = vld [vmem:[%s1 + $0x110] sm:$0xff]
      %v914 = vld [vmem:[%s1 + $0x118] sm:$0xff]
      %v915 = vld [vmem:[%s1 + $0x120] sm:$0xff]
      %v916 = vld [vmem:[%s1 + $0x128] sm:$0xff]
      %v917 = vld [vmem:[%s1 + $0x130] sm:$0xff]
      %v918 = vld [vmem:[%s1 + $0x138] sm:$0xff]
      %v919 = vld [vmem:[%s870] sm:$0xff]
      %v920 = vld [vmem:[%s870 + $0x8] sm:$0xff]
      %v921 = vld [vmem:[%s870 + $0x10] sm:$0xff]
      %v922 = vld [vmem:[%s870 + $0x18] sm:$0xff]
      %v923 = vld [vmem:[%s870 + $0x20] sm:$0xff]
      %v924 = vld [vmem:[%s870 + $0x28] sm:$0xff]
      %v925 = vld [vmem:[%s870 + $0x30] sm:$0xff]
      %v926 = vld [vmem:[%s870 + $0x38] sm:$0xff]
      %v927 = vld [vmem:[%s870 + $0x40] sm:$0xff]
      %v928 = vld [vmem:[%s870 + $0x48] sm:$0xff]
      %v929 = vld [vmem:[%s870 + $0x50] sm:$0xff]
      %v930 = vld [vmem:[%s870 + $0x58] sm:$0xff]
      %v931 = vld [vmem:[%s870 + $0x60] sm:$0xff]
      %v932 = vld [vmem:[%s870 + $0x68] sm:$0xff]
      %v933 = vld [vmem:[%s870 + $0x70] sm:$0xff]
      %v934 = vld [vmem:[%s870 + $0x78] sm:$0xff]
      %v935 = vld [vmem:[%s1 + $0x140] sm:$0xff]
      %v936 = vld [vmem:[%s1 + $0x148] sm:$0xff]
      %v937 = vld [vmem:[%s1 + $0x150] sm:$0xff]
      %v938 = vld [vmem:[%s1 + $0x158] sm:$0xff]
      %v939 = vld [vmem:[%s1 + $0x160] sm:$0xff]
      %v940 = vld [vmem:[%s1 + $0x168] sm:$0xff]
      %v941 = vld [vmem:[%s1 + $0x170] sm:$0xff]
      %v942 = vld [vmem:[%s1 + $0x178] sm:$0xff]
      %v943 = vld [vmem:[%s1 + $0x180] sm:$0xff]
      %v944 = vld [vmem:[%s1 + $0x188] sm:$0xff]
      %v945 = vld [vmem:[%s1 + $0x190] sm:$0xff]
      %v946 = vld [vmem:[%s1 + $0x198] sm:$0xff]
      %v947 = vld [vmem:[%s1 + $0x1a0] sm:$0xff]
      %v948 = vld [vmem:[%s1 + $0x1a8] sm:$0xff]
      %v949 = vld [vmem:[%s1 + $0x1b0] sm:$0xff]
      %v950 = vld [vmem:[%s1 + $0x1b8] sm:$0xff]
      %951 = vmatprep.subr.mxu0 0.0
      %952 = vmatpush1.msra.mxu0 %v935
      %953 = vmatprep.subr.mxu0 0.0
      %954 = vmatpush1.msra.mxu0 %v936
      %955 = vmatprep.subr.mxu0 0.0
      %956 = vmatpush1.msra.mxu0 %v937
      %957 = vmatprep.subr.mxu0 0.0
      %958 = vmatpush1.msra.mxu0 %v938
      %959 = vmatprep.subr.mxu0 0.0
      %960 = vmatpush1.msra.mxu0 %v939
      %961 = vmatprep.subr.mxu0 0.0
      %962 = vmatpush1.msra.mxu0 %v940
      %963 = vmatprep.subr.mxu0 0.0
      %964 = vmatpush1.msra.mxu0 %v941
      %965 = vmatprep.subr.mxu0 0.0
      %966 = vmatpush1.msra.mxu0 %v942
      %967 = vmatprep.subr.mxu0 0.0
      %968 = vmatpush1.msra.mxu0 %v943
      %969 = vmatprep.subr.mxu0 0.0
      %970 = vmatpush1.msra.mxu0 %v944
      %971 = vmatprep.subr.mxu0 0.0
      %972 = vmatpush1.msra.mxu0 %v945
      %973 = vmatprep.subr.mxu0 0.0
      %974 = vmatpush1.msra.mxu0 %v946
      %975 = vmatprep.subr.mxu0 0.0
      %976 = vmatpush1.msra.mxu0 %v947
      %977 = vmatprep.subr.mxu0 0.0
      %978 = vmatpush1.msra.mxu0 %v948
      %979 = vmatprep.subr.mxu0 0.0
      %980 = vmatpush1.msra.mxu0 %v949
      %981 = vmatprep.subr.mxu0 0.0
      %982 = vmatpush1.msra.mxu0 %v950
      %983 = vmatprep.subr.mxu0 0.0
      %984 = vmatpush1.msra.mxu0 0.0
      %985 = vmatprep.subr.mxu0 0.0
      %986 = vmatpush1.msra.mxu0 0.0
      %987 = vmatprep.subr.mxu0 0.0
      %988 = vmatpush1.msra.mxu0 0.0
      %989 = vmatprep.subr.mxu0 0.0
      %990 = vmatpush1.msra.mxu0 0.0
      %991 = vmatprep.subr.mxu0 0.0
      %992 = vmatpush1.msra.mxu0 0.0
      %993 = vmatprep.subr.mxu0 0.0
      %994 = vmatpush1.msra.mxu0 0.0
      %995 = vmatprep.subr.mxu0 0.0
      %996 = vmatpush1.msra.mxu0 0.0
      %997 = vmatprep.subr.mxu0 0.0
      %998 = vmatpush1.msra.mxu0 0.0
      %999 = vmatprep.subr.mxu0 0.0
      %1000 = vmatpush1.msra.mxu0 0.0
      %1001 = vmatprep.subr.mxu0 0.0
      %1002 = vmatpush1.msra.mxu0 0.0
      %1003 = vmatprep.subr.mxu0 0.0
      %1004 = vmatpush1.msra.mxu0 0.0
      %1005 = vmatprep.subr.mxu0 0.0
      %1006 = vmatpush1.msra.mxu0 0.0
      %1007 = vmatprep.subr.mxu0 0.0
      %1008 = vmatpush1.msra.mxu0 0.0
      %1009 = vmatprep.subr.mxu0 0.0
      %1010 = vmatpush1.msra.mxu0 0.0
      %1011 = vmatprep.subr.mxu0 0.0
      %1012 = vmatpush1.msra.mxu0 0.0
      %1013 = vmatprep.subr.mxu0 0.0
      %1014 = vmatpush1.msra.mxu0 0.0
      %1015 = vmatprep.mubr.f32.mxu0 0.0
      %1016 = vmatmul.mubr.f32.gmra.mrb[0].mxu0 %v919
      %v1017 = vpop.f32.mrb[0].mxu0
      %v1018 = vadd.f32 0.0, %v1017
      %v1019 = vpop.f32.mrb[0].mxu0
      %1020 = vmatprep.mubr.f32.mxu0 0.0
      %1021 = vmatmul.mubr.f32.gmra.mrb[0].mxu0 %v920
      %v1022 = vpop.f32.mrb[0].mxu0
      %v1023 = vadd.f32 0.0, %v1022
      %v1024 = vpop.f32.mrb[0].mxu0
      %1025 = vmatprep.mubr.f32.mxu0 0.0
      %1026 = vmatmul.mubr.f32.gmra.mrb[0].mxu0 %v921
      %v1027 = vpop.f32.mrb[0].mxu0
      %v1028 = vadd.f32 0.0, %v1027
      %v1029 = vpop.f32.mrb[0].mxu0
      %1030 = vmatprep.mubr.f32.mxu0 0.0
      %1031 = vmatmul.mubr.f32.gmra.mrb[0].mxu0 %v922
      %v1032 = vpop.f32.mrb[0].mxu0
      %v1033 = vadd.f32 0.0, %v1032
      %v1034 = vpop.f32.mrb[0].mxu0
      %1035 = vmatprep.mubr.f32.mxu0 0.0
      %1036 = vmatmul.mubr.f32.gmra.mrb[0].mxu0 %v923
      %v1037 = vpop.f32.mrb[0].mxu0
      %v1038 = vadd.f32 0.0, %v1037
      %v1039 = vpop.f32.mrb[0].mxu0
      %1040 = vmatprep.mubr.f32.mxu0 0.0
      %1041 = vmatmul.mubr.f32.gmra.mrb[0].mxu0 %v924
      %v1042 = vpop.f32.mrb[0].mxu0
      %v1043 = vadd.f32 0.0, %v1042
      %v1044 = vpop.f32.mrb[0].mxu0
      %1045 = vmatprep.mubr.f32.mxu0 0.0
      %1046 = vmatmul.mubr.f32.gmra.mrb[0].mxu0 %v925
      %v1047 = vpop.f32.mrb[0].mxu0
      %v1048 = vadd.f32 0.0, %v1047
      %v1049 = vpop.f32.mrb[0].mxu0
      %1050 = vmatprep.mubr.f32.mxu0 0.0
      %1051 = vmatmul.mubr.f32.gmra.mrb[0].mxu0 %v926
      %v1052 = vpop.f32.mrb[0].mxu0
      %v1053 = vadd.f32 0.0, %v1052
      %v1054 = vpop.f32.mrb[0].mxu0
      %1055 = vmatprep.mubr.f32.mxu0 0.0
      %1056 = vmatmul.mubr.f32.gmra.mrb[0].mxu0 %v927
      %v1057 = vpop.f32.mrb[0].mxu0
      %v1058 = vadd.f32 0.0, %v1057
      %v1059 = vpop.f32.mrb[0].mxu0
      %1060 = vmatprep.mubr.f32.mxu0 0.0
      %1061 = vmatmul.mubr.f32.gmra.mrb[0].mxu0 %v928
      %v1062 = vpop.f32.mrb[0].mxu0
      %v1063 = vadd.f32 0.0, %v1062
      %v1064 = vpop.f32.mrb[0].mxu0
      %1065 = vmatprep.mubr.f32.mxu0 0.0
      %1066 = vmatmul.mubr.f32.gmra.mrb[0].mxu0 %v929
      %v1067 = vpop.f32.mrb[0].mxu0
      %v1068 = vadd.f32 0.0, %v1067
      %v1069 = vpop.f32.mrb[0].mxu0
      %1070 = vmatprep.mubr.f32.mxu0 0.0
      %1071 = vmatmul.mubr.f32.gmra.mrb[0].mxu0 %v930
      %v1072 = vpop.f32.mrb[0].mxu0
      %v1073 = vadd.f32 0.0, %v1072
      %v1074 = vpop.f32.mrb[0].mxu0
      %1075 = vmatprep.mubr.f32.mxu0 0.0
      %1076 = vmatmul.mubr.f32.gmra.mrb[0].mxu0 %v931
      %v1077 = vpop.f32.mrb[0].mxu0
      %v1078 = vadd.f32 0.0, %v1077
      %v1079 = vpop.f32.mrb[0].mxu0
      %1080 = vmatprep.mubr.f32.mxu0 0.0
      %1081 = vmatmul.mubr.f32.gmra.mrb[0].mxu0 %v932
      %v1082 = vpop.f32.mrb[0].mxu0
      %v1083 = vadd.f32 0.0, %v1082
      %v1084 = vpop.f32.mrb[0].mxu0
      %1085 = vmatprep.mubr.f32.mxu0 0.0
      %1086 = vmatmul.mubr.f32.gmra.mrb[0].mxu0 %v933
      %v1087 = vpop.f32.mrb[0].mxu0
      %v1088 = vadd.f32 0.0, %v1087
      %v1089 = vpop.f32.mrb[0].mxu0
      %1090 = vmatprep.mubr.f32.mxu0 0.0
      %1091 = vmatmul.mubr.f32.gmra.mrb[0].mxu0 %v934
      %v1092 = vpop.f32.mrb[0].mxu0
      %v1093 = vadd.f32 0.0, %v1092
      %v1094 = vpop.f32.mrb[0].mxu0
      %1095 = vdwg.mxu0
      %1096 = vmatprep.subr.mxu0 0.0
      %1097 = vmatpush1.msra.mxu0 %v903
      %1098 = vmatprep.subr.mxu0 0.0
      %1099 = vmatpush1.msra.mxu0 %v904
      %1100 = vmatprep.subr.mxu0 0.0
      %1101 = vmatpush1.msra.mxu0 %v905
      %1102 = vmatprep.subr.mxu0 0.0
      %1103 = vmatpush1.msra.mxu0 %v906
      %1104 = vmatprep.subr.mxu0 0.0
      %1105 = vmatpush1.msra.mxu0 %v907
      %1106 = vmatprep.subr.mxu0 0.0
      %1107 = vmatpush1.msra.mxu0 %v908
      %1108 = vmatprep.subr.mxu0 0.0
      %1109 = vmatpush1.msra.mxu0 %v909
      %1110 = vmatprep.subr.mxu0 0.0
      %1111 = vmatpush1.msra.mxu0 %v910
      %1112 = vmatprep.subr.mxu0 0.0
      %1113 = vmatpush1.msra.mxu0 %v911
      %1114 = vmatprep.subr.mxu0 0.0
      %1115 = vmatpush1.msra.mxu0 %v912
      %1116 = vmatprep.subr.mxu0 0.0
      %1117 = vmatpush1.msra.mxu0 %v913
      %1118 = vmatprep.subr.mxu0 0.0
      %1119 = vmatpush1.msra.mxu0 %v914
      %1120 = vmatprep.subr.mxu0 0.0
      %1121 = vmatpush1.msra.mxu0 %v915
      %1122 = vmatprep.subr.mxu0 0.0
      %1123 = vmatpush1.msra.mxu0 %v916
      %1124 = vmatprep.subr.mxu0 0.0
      %1125 = vmatpush1.msra.mxu0 %v917
      %1126 = vmatprep.subr.mxu0 0.0
      %1127 = vmatpush1.msra.mxu0 %v918
      %1128 = vmatprep.subr.mxu0 0.0
      %1129 = vmatpush1.msra.mxu0 0.0
      %1130 = vmatprep.subr.mxu0 0.0
      %1131 = vmatpush1.msra.mxu0 0.0
      %1132 = vmatprep.subr.mxu0 0.0
      %1133 = vmatpush1.msra.mxu0 0.0
      %1134 = vmatprep.subr.mxu0 0.0
      %1135 = vmatpush1.msra.mxu0 0.0
      %1136 = vmatprep.subr.mxu0 0.0
      %1137 = vmatpush1.msra.mxu0 0.0
      %1138 = vmatprep.subr.mxu0 0.0
      %1139 = vmatpush1.msra.mxu0 0.0
      %1140 = vmatprep.subr.mxu0 0.0
      %1141 = vmatpush1.msra.mxu0 0.0
      %1142 = vmatprep.subr.mxu0 0.0
      %1143 = vmatpush1.msra.mxu0 0.0
      %1144 = vmatprep.subr.mxu0 0.0
      %1145 = vmatpush1.msra.mxu0 0.0
      %1146 = vmatprep.subr.mxu0 0.0
      %1147 = vmatpush1.msra.mxu0 0.0
      %1148 = vmatprep.subr.mxu0 0.0
      %1149 = vmatpush1.msra.mxu0 0.0
      %1150 = vmatprep.subr.mxu0 0.0
      %1151 = vmatpush1.msra.mxu0 0.0
      %1152 = vmatprep.subr.mxu0 0.0
      %1153 = vmatpush1.msra.mxu0 0.0
      %1154 = vmatprep.subr.mxu0 0.0
      %1155 = vmatpush1.msra.mxu0 0.0
      %1156 = vmatprep.subr.mxu0 0.0
      %1157 = vmatpush1.msra.mxu0 0.0
      %1158 = vmatprep.subr.mxu0 0.0
      %1159 = vmatpush1.msra.mxu0 0.0
      %1160 = vmatprep.mubr.f32.mxu0 0.0
      %1161 = vmatmul.mubr.f32.gmra.mrb[0].mxu0 %v887
      %v1162 = vpop.f32.mrb[0].mxu0
      %v1163 = vadd.f32 %v1018, %v1162
      %v1164 = vpop.f32.mrb[0].mxu0
      %1165 = vmatprep.mubr.f32.mxu0 0.0
      %1166 = vmatmul.mubr.f32.gmra.mrb[0].mxu0 %v888
      %v1167 = vpop.f32.mrb[0].mxu0
      %v1168 = vadd.f32 %v1023, %v1167
      %v1169 = vpop.f32.mrb[0].mxu0
      %1170 = vmatprep.mubr.f32.mxu0 0.0
      %1171 = vmatmul.mubr.f32.gmra.mrb[0].mxu0 %v889
      %v1172 = vpop.f32.mrb[0].mxu0
      %v1173 = vadd.f32 %v1028, %v1172
      %v1174 = vpop.f32.mrb[0].mxu0
      %1175 = vmatprep.mubr.f32.mxu0 0.0
      %1176 = vmatmul.mubr.f32.gmra.mrb[0].mxu0 %v890
      %v1177 = vpop.f32.mrb[0].mxu0
      %v1178 = vadd.f32 %v1033, %v1177
      %v1179 = vpop.f32.mrb[0].mxu0
      %1180 = vmatprep.mubr.f32.mxu0 0.0
      %1181 = vmatmul.mubr.f32.gmra.mrb[0].mxu0 %v891
      %v1182 = vpop.f32.mrb[0].mxu0
      %v1183 = vadd.f32 %v1038, %v1182
      %v1184 = vpop.f32.mrb[0].mxu0
      %1185 = vmatprep.mubr.f32.mxu0 0.0
      %1186 = vmatmul.mubr.f32.gmra.mrb[0].mxu0 %v892
      %v1187 = vpop.f32.mrb[0].mxu0
      %v1188 = vadd.f32 %v1043, %v1187
      %v1189 = vpop.f32.mrb[0].mxu0
      %1190 = vmatprep.mubr.f32.mxu0 0.0
      %1191 = vmatmul.mubr.f32.gmra.mrb[0].mxu0 %v893
      %v1192 = vpop.f32.mrb[0].mxu0
      %v1193 = vadd.f32 %v1048, %v1192
      %v1194 = vpop.f32.mrb[0].mxu0
      %1195 = vmatprep.mubr.f32.mxu0 0.0
      %1196 = vmatmul.mubr.f32.gmra.mrb[0].mxu0 %v894
      %v1197 = vpop.f32.mrb[0].mxu0
      %v1198 = vadd.f32 %v1053, %v1197
      %v1199 = vpop.f32.mrb[0].mxu0
      %1200 = vmatprep.mubr.f32.mxu0 0.0
      %1201 = vmatmul.mubr.f32.gmra.mrb[0].mxu0 %v895
      %v1202 = vpop.f32.mrb[0].mxu0
      %v1203 = vadd.f32 %v1058, %v1202
      %v1204 = vpop.f32.mrb[0].mxu0
      %1205 = vmatprep.mubr.f32.mxu0 0.0
      %1206 = vmatmul.mubr.f32.gmra.mrb[0].mxu0 %v896
      %v1207 = vpop.f32.mrb[0].mxu0
      %v1208 = vadd.f32 %v1063, %v1207
      %v1209 = vpop.f32.mrb[0].mxu0
      %1210 = vmatprep.mubr.f32.mxu0 0.0
      %1211 = vmatmul.mubr.f32.gmra.mrb[0].mxu0 %v897
      %v1212 = vpop.f32.mrb[0].mxu0
      %v1213 = vadd.f32 %v1068, %v1212
      %v1214 = vpop.f32.mrb[0].mxu0
      %1215 = vmatprep.mubr.f32.mxu0 0.0
      %1216 = vmatmul.mubr.f32.gmra.mrb[0].mxu0 %v898
      %v1217 = vpop.f32.mrb[0].mxu0
      %v1218 = vadd.f32 %v1073, %v1217
      %v1219 = vpop.f32.mrb[0].mxu0
      %1220 = vmatprep.mubr.f32.mxu0 0.0
      %1221 = vmatmul.mubr.f32.gmra.mrb[0].mxu0 %v899
      %v1222 = vpop.f32.mrb[0].mxu0
      %v1223 = vadd.f32 %v1078, %v1222
      %v1224 = vpop.f32.mrb[0].mxu0
      %1225 = vmatprep.mubr.f32.mxu0 0.0
      %1226 = vmatmul.mubr.f32.gmra.mrb[0].mxu0 %v900
      %v1227 = vpop.f32.mrb[0].mxu0
      %v1228 = vadd.f32 %v1083, %v1227
      %v1229 = vpop.f32.mrb[0].mxu0
      %1230 = vmatprep.mubr.f32.mxu0 0.0
      %1231 = vmatmul.mubr.f32.gmra.mrb[0].mxu0 %v901
      %v1232 = vpop.f32.mrb[0].mxu0
      %v1233 = vadd.f32 %v1088, %v1232
      %v1234 = vpop.f32.mrb[0].mxu0
      %1235 = vmatprep.mubr.f32.mxu0 0.0
      %1236 = vmatmul.mubr.f32.gmra.mrb[0].mxu0 %v902
      %v1237 = vpop.f32.mrb[0].mxu0
      %v1238 = vadd.f32 %v1093, %v1237
      %v1239 = vpop.f32.mrb[0].mxu0
      %1240 = vdwg.mxu0
      %s1241 = scalar_lea.vmem [#allocation2], 32
      %v1242 = vld [vmem:[%s1241] sm:$0xff]
      %v1243 = vld [vmem:[%s1241 + $0x8] sm:$0xff]
      %v1244 = vld [vmem:[%s1241 + $0x10] sm:$0xff]
      %v1245 = vld [vmem:[%s1241 + $0x18] sm:$0xff]
      %v1246 = vld [vmem:[%s1241 + $0x20] sm:$0xff]
      %v1247 = vld [vmem:[%s1241 + $0x28] sm:$0xff]
      %v1248 = vld [vmem:[%s1241 + $0x30] sm:$0xff]
      %v1249 = vld [vmem:[%s1241 + $0x38] sm:$0xff]
      %v1250 = vld [vmem:[%s1241 + $0x40] sm:$0xff]
      %v1251 = vld [vmem:[%s1241 + $0x48] sm:$0xff]
      %v1252 = vld [vmem:[%s1241 + $0x50] sm:$0xff]
      %v1253 = vld [vmem:[%s1241 + $0x58] sm:$0xff]
      %v1254 = vld [vmem:[%s1241 + $0x60] sm:$0xff]
      %v1255 = vld [vmem:[%s1241 + $0x68] sm:$0xff]
      %v1256 = vld [vmem:[%s1241 + $0x70] sm:$0xff]
      %v1257 = vld [vmem:[%s1241 + $0x78] sm:$0xff]
      %v1258 = vld [vmem:[%s1 + $0x1c0] sm:$0xff]
      %v1259 = vld [vmem:[%s1 + $0x1c8] sm:$0xff]
      %v1260 = vld [vmem:[%s1 + $0x1d0] sm:$0xff]
      %v1261 = vld [vmem:[%s1 + $0x1d8] sm:$0xff]
      %v1262 = vld [vmem:[%s1 + $0x1e0] sm:$0xff]
      %v1263 = vld [vmem:[%s1 + $0x1e8] sm:$0xff]
      %v1264 = vld [vmem:[%s1 + $0x1f0] sm:$0xff]
      %v1265 = vld [vmem:[%s1 + $0x1f8] sm:$0xff]
      %v1266 = vld [vmem:[%s1 + $0x200] sm:$0xff]
      %v1267 = vld [vmem:[%s1 + $0x208] sm:$0xff]
      %v1268 = vld [vmem:[%s1 + $0x210] sm:$0xff]
      %v1269 = vld [vmem:[%s1 + $0x218] sm:$0xff]
      %v1270 = vld [vmem:[%s1 + $0x220] sm:$0xff]
      %v1271 = vld [vmem:[%s1 + $0x228] sm:$0xff]
      %v1272 = vld [vmem:[%s1 + $0x230] sm:$0xff]
      %v1273 = vld [vmem:[%s1 + $0x238] sm:$0xff]
      %1274 = vmatprep.subr.mxu0 0.0
      %1275 = vmatpush1.msra.mxu0 %v1258
      %1276 = vmatprep.subr.mxu0 0.0
      %1277 = vmatpush1.msra.mxu0 %v1259
      %1278 = vmatprep.subr.mxu0 0.0
      %1279 = vmatpush1.msra.mxu0 %v1260
      %1280 = vmatprep.subr.mxu0 0.0
      %1281 = vmatpush1.msra.mxu0 %v1261
      %1282 = vmatprep.subr.mxu0 0.0
      %1283 = vmatpush1.msra.mxu0 %v1262
      %1284 = vmatprep.subr.mxu0 0.0
      %1285 = vmatpush1.msra.mxu0 %v1263
      %1286 = vmatprep.subr.mxu0 0.0
      %1287 = vmatpush1.msra.mxu0 %v1264
      %1288 = vmatprep.subr.mxu0 0.0
      %1289 = vmatpush1.msra.mxu0 %v1265
      %1290 = vmatprep.subr.mxu0 0.0
      %1291 = vmatpush1.msra.mxu0 %v1266
      %1292 = vmatprep.subr.mxu0 0.0
      %1293 = vmatpush1.msra.mxu0 %v1267
      %1294 = vmatprep.subr.mxu0 0.0
      %1295 = vmatpush1.msra.mxu0 %v1268
      %1296 = vmatprep.subr.mxu0 0.0
      %1297 = vmatpush1.msra.mxu0 %v1269
      %1298 = vmatprep.subr.mxu0 0.0
      %1299 = vmatpush1.msra.mxu0 %v1270
      %1300 = vmatprep.subr.mxu0 0.0
      %1301 = vmatpush1.msra.mxu0 %v1271
      %1302 = vmatprep.subr.mxu0 0.0
      %1303 = vmatpush1.msra.mxu0 %v1272
      %1304 = vmatprep.subr.mxu0 0.0
      %1305 = vmatpush1.msra.mxu0 %v1273
      %1306 = vmatprep.subr.mxu0 0.0
      %1307 = vmatpush1.msra.mxu0 0.0
      %1308 = vmatprep.subr.mxu0 0.0
      %1309 = vmatpush1.msra.mxu0 0.0
      %1310 = vmatprep.subr.mxu0 0.0
      %1311 = vmatpush1.msra.mxu0 0.0
      %1312 = vmatprep.subr.mxu0 0.0
      %1313 = vmatpush1.msra.mxu0 0.0
      %1314 = vmatprep.subr.mxu0 0.0
      %1315 = vmatpush1.msra.mxu0 0.0
      %1316 = vmatprep.subr.mxu0 0.0
      %1317 = vmatpush1.msra.mxu0 0.0
      %1318 = vmatprep.subr.mxu0 0.0
      %1319 = vmatpush1.msra.mxu0 0.0
      %1320 = vmatprep.subr.mxu0 0.0
      %1321 = vmatpush1.msra.mxu0 0.0
      %1322 = vmatprep.subr.mxu0 0.0
      %1323 = vmatpush1.msra.mxu0 0.0
      %1324 = vmatprep.subr.mxu0 0.0
      %1325 = vmatpush1.msra.mxu0 0.0
      %1326 = vmatprep.subr.mxu0 0.0
      %1327 = vmatpush1.msra.mxu0 0.0
      %1328 = vmatprep.subr.mxu0 0.0
      %1329 = vmatpush1.msra.mxu0 0.0
      %1330 = vmatprep.subr.mxu0 0.0
      %1331 = vmatpush1.msra.mxu0 0.0
      %1332 = vmatprep.subr.mxu0 0.0
      %1333 = vmatpush1.msra.mxu0 0.0
      %1334 = vmatprep.subr.mxu0 0.0
      %1335 = vmatpush1.msra.mxu0 0.0
      %1336 = vmatprep.subr.mxu0 0.0
      %1337 = vmatpush1.msra.mxu0 0.0
      %1338 = vmatprep.mubr.f32.mxu0 0.0
      %1339 = vmatmul.mubr.f32.gmra.mrb[0].mxu0 %v1242
      %v1340 = vpop.f32.mrb[0].mxu0
      %v1341 = vadd.f32 0.0, %v1340
      %v1342 = vpop.f32.mrb[0].mxu0
      %1343 = vmatprep.mubr.f32.mxu0 0.0
      %1344 = vmatmul.mubr.f32.gmra.mrb[0].mxu0 %v1243
      %v1345 = vpop.f32.mrb[0].mxu0
      %v1346 = vadd.f32 0.0, %v1345
      %v1347 = vpop.f32.mrb[0].mxu0
      %1348 = vmatprep.mubr.f32.mxu0 0.0
      %1349 = vmatmul.mubr.f32.gmra.mrb[0].mxu0 %v1244
      %v1350 = vpop.f32.mrb[0].mxu0
      %v1351 = vadd.f32 0.0, %v1350
      %v1352 = vpop.f32.mrb[0].mxu0
      %1353 = vmatprep.mubr.f32.mxu0 0.0
      %1354 = vmatmul.mubr.f32.gmra.mrb[0].mxu0 %v1245
      %v1355 = vpop.f32.mrb[0].mxu0
      %v1356 = vadd.f32 0.0, %v1355
      %v1357 = vpop.f32.mrb[0].mxu0
      %1358 = vmatprep.mubr.f32.mxu0 0.0
      %1359 = vmatmul.mubr.f32.gmra.mrb[0].mxu0 %v1246
      %v1360 = vpop.f32.mrb[0].mxu0
      %v1361 = vadd.f32 0.0, %v1360
      %v1362 = vpop.f32.mrb[0].mxu0
      %1363 = vmatprep.mubr.f32.mxu0 0.0
      %1364 = vmatmul.mubr.f32.gmra.mrb[0].mxu0 %v1247
      %v1365 = vpop.f32.mrb[0].mxu0
      %v1366 = vadd.f32 0.0, %v1365
      %v1367 = vpop.f32.mrb[0].mxu0
      %1368 = vmatprep.mubr.f32.mxu0 0.0
      %1369 = vmatmul.mubr.f32.gmra.mrb[0].mxu0 %v1248
      %v1370 = vpop.f32.mrb[0].mxu0
      %v1371 = vadd.f32 0.0, %v1370
      %v1372 = vpop.f32.mrb[0].mxu0
      %1373 = vmatprep.mubr.f32.mxu0 0.0
      %1374 = vmatmul.mubr.f32.gmra.mrb[0].mxu0 %v1249
      %v1375 = vpop.f32.mrb[0].mxu0
      %v1376 = vadd.f32 0.0, %v1375
      %v1377 = vpop.f32.mrb[0].mxu0
      %1378 = vmatprep.mubr.f32.mxu0 0.0
      %1379 = vmatmul.mubr.f32.gmra.mrb[0].mxu0 %v1250
      %v1380 = vpop.f32.mrb[0].mxu0
      %v1381 = vadd.f32 0.0, %v1380
      %v1382 = vpop.f32.mrb[0].mxu0
      %1383 = vmatprep.mubr.f32.mxu0 0.0
      %1384 = vmatmul.mubr.f32.gmra.mrb[0].mxu0 %v1251
      %v1385 = vpop.f32.mrb[0].mxu0
      %v1386 = vadd.f32 0.0, %v1385
      %v1387 = vpop.f32.mrb[0].mxu0
      %1388 = vmatprep.mubr.f32.mxu0 0.0
      %1389 = vmatmul.mubr.f32.gmra.mrb[0].mxu0 %v1252
      %v1390 = vpop.f32.mrb[0].mxu0
      %v1391 = vadd.f32 0.0, %v1390
      %v1392 = vpop.f32.mrb[0].mxu0
      %1393 = vmatprep.mubr.f32.mxu0 0.0
      %1394 = vmatmul.mubr.f32.gmra.mrb[0].mxu0 %v1253
      %v1395 = vpop.f32.mrb[0].mxu0
      %v1396 = vadd.f32 0.0, %v1395
      %v1397 = vpop.f32.mrb[0].mxu0
      %1398 = vmatprep.mubr.f32.mxu0 0.0
      %1399 = vmatmul.mubr.f32.gmra.mrb[0].mxu0 %v1254
      %v1400 = vpop.f32.mrb[0].mxu0
      %v1401 = vadd.f32 0.0, %v1400
      %v1402 = vpop.f32.mrb[0].mxu0
      %1403 = vmatprep.mubr.f32.mxu0 0.0
      %1404 = vmatmul.mubr.f32.gmra.mrb[0].mxu0 %v1255
      %v1405 = vpop.f32.mrb[0].mxu0
      %v1406 = vadd.f32 0.0, %v1405
      %v1407 = vpop.f32.mrb[0].mxu0
      %1408 = vmatprep.mubr.f32.mxu0 0.0
      %1409 = vmatmul.mubr.f32.gmra.mrb[0].mxu0 %v1256
      %v1410 = vpop.f32.mrb[0].mxu0
      %v1411 = vadd.f32 0.0, %v1410
      %v1412 = vpop.f32.mrb[0].mxu0
      %1413 = vmatprep.mubr.f32.mxu0 0.0
      %1414 = vmatmul.mubr.f32.gmra.mrb[0].mxu0 %v1257
      %v1415 = vpop.f32.mrb[0].mxu0
      %v1416 = vadd.f32 0.0, %v1415
      %v1417 = vpop.f32.mrb[0].mxu0
      %1418 = vdwg.mxu0
      %v1419 = vadd.f32 %v1163, %v1341
      %v1420 = vadd.f32 %v1168, %v1346
      %v1421 = vadd.f32 %v1173, %v1351
      %v1422 = vadd.f32 %v1178, %v1356
      %v1423 = vadd.f32 %v1183, %v1361
      %v1424 = vadd.f32 %v1188, %v1366
      %v1425 = vadd.f32 %v1193, %v1371
      %v1426 = vadd.f32 %v1198, %v1376
      %v1427 = vadd.f32 %v1203, %v1381
      %v1428 = vadd.f32 %v1208, %v1386
      %v1429 = vadd.f32 %v1213, %v1391
      %v1430 = vadd.f32 %v1218, %v1396
      %v1431 = vadd.f32 %v1223, %v1401
      %v1432 = vadd.f32 %v1228, %v1406
      %v1433 = vadd.f32 %v1233, %v1411
      %v1434 = vadd.f32 %v1238, %v1416
      %v1435 = vld [vmem:[%s1 + $0x581] sm:$0x1]
      %v1436 = vlaneseq
      %v1437 = vshrl.u32 %v1436, 7
      %v1438 = vsub.s32 0, %v1437
      %v1439 = vrot.slane %v1435, %v1438
      %v1440 = vadd.f32 %v1419, %v1439
      %v1441 = vadd.f32 %v1420, %v1439
      %v1442 = vadd.f32 %v1421, %v1439
      %v1443 = vadd.f32 %v1422, %v1439
      %v1444 = vadd.f32 %v1423, %v1439
      %v1445 = vadd.f32 %v1424, %v1439
      %v1446 = vadd.f32 %v1425, %v1439
      %v1447 = vadd.f32 %v1426, %v1439
      %v1448 = vadd.f32 %v1427, %v1439
      %v1449 = vadd.f32 %v1428, %v1439
      %v1450 = vadd.f32 %v1429, %v1439
      %v1451 = vadd.f32 %v1430, %v1439
      %v1452 = vadd.f32 %v1431, %v1439
      %v1453 = vadd.f32 %v1432, %v1439
      %v1454 = vadd.f32 %v1433, %v1439
      %v1455 = vadd.f32 %v1434, %v1439
      %v1456 = vmax.f32 %v1440, 0.0
      %v1457 = vmax.f32 %v1441, 0.0
      %v1458 = vmax.f32 %v1442, 0.0
      %v1459 = vmax.f32 %v1443, 0.0
      %v1460 = vmax.f32 %v1444, 0.0
      %v1461 = vmax.f32 %v1445, 0.0
      %v1462 = vmax.f32 %v1446, 0.0
      %v1463 = vmax.f32 %v1447, 0.0
      %v1464 = vmax.f32 %v1448, 0.0
      %v1465 = vmax.f32 %v1449, 0.0
      %v1466 = vmax.f32 %v1450, 0.0
      %v1467 = vmax.f32 %v1451, 0.0
      %v1468 = vmax.f32 %v1452, 0.0
      %v1469 = vmax.f32 %v1453, 0.0
      %v1470 = vmax.f32 %v1454, 0.0
      %v1471 = vmax.f32 %v1455, 0.0
      %1472 = vst [vmem:[#allocation3 + $0x1] sm:$0xff] %v1456
      %1473 = vst [vmem:[#allocation3 + $0x9] sm:$0xff] %v1457
      %1474 = vst [vmem:[#allocation3 + $0x19] sm:$0xff] %v1458
      %1475 = vst [vmem:[#allocation3 + $0x21] sm:$0xff] %v1459
      %1476 = vst [vmem:[#allocation3 + $0x31] sm:$0xff] %v1460
      %1477 = vst [vmem:[#allocation3 + $0x39] sm:$0xff] %v1461
      %1478 = vst [vmem:[#allocation3 + $0x49] sm:$0xff] %v1462
      %1479 = vst [vmem:[#allocation3 + $0x51] sm:$0xff] %v1463
      %1480 = vst [vmem:[#allocation3 + $0x61] sm:$0xff] %v1464
      %1481 = vst [vmem:[#allocation3 + $0x69] sm:$0xff] %v1465
      %1482 = vst [vmem:[#allocation3 + $0x79] sm:$0xff] %v1466
      %1483 = vst [vmem:[#allocation3 + $0x81] sm:$0xff] %v1467
      %1484 = vst [vmem:[#allocation3 + $0x91] sm:$0xff] %v1468
      %1485 = vst [vmem:[#allocation3 + $0x99] sm:$0xff] %v1469
      %1486 = vst [vmem:[#allocation3 + $0xa9] sm:$0xff] %v1470
      %1487 = vst [vmem:[#allocation3 + $0xb1] sm:$0xff] %v1471
      %v1488 = vld [vmem:[#allocation3] sm:$0xff]
      %v1489 = vld [vmem:[#allocation3 + $0x8] sm:$0xff]
      %v1490 = vld [vmem:[#allocation3 + $0x18] sm:$0xff]
      %v1491 = vld [vmem:[#allocation3 + $0x20] sm:$0xff]
      %v1492 = vld [vmem:[#allocation3 + $0x30] sm:$0xff]
      %v1493 = vld [vmem:[#allocation3 + $0x38] sm:$0xff]
      %v1494 = vld [vmem:[#allocation3 + $0x48] sm:$0xff]
      %v1495 = vld [vmem:[#allocation3 + $0x50] sm:$0xff]
      %v1496 = vld [vmem:[#allocation3 + $0x60] sm:$0xff]
      %v1497 = vld [vmem:[#allocation3 + $0x68] sm:$0xff]
      %v1498 = vld [vmem:[#allocation3 + $0x78] sm:$0xff]
      %v1499 = vld [vmem:[#allocation3 + $0x80] sm:$0xff]
      %v1500 = vld [vmem:[#allocation3 + $0x90] sm:$0xff]
      %v1501 = vld [vmem:[#allocation3 + $0x98] sm:$0xff]
      %v1502 = vld [vmem:[#allocation3 + $0xa8] sm:$0xff]
      %v1503 = vld [vmem:[#allocation3 + $0xb0] sm:$0xff]
      %v1504 = vld [vmem:[%s1 + $0x240] sm:$0xff]
      %v1505 = vld [vmem:[%s1 + $0x248] sm:$0xff]
      %v1506 = vld [vmem:[%s1 + $0x250] sm:$0xff]
      %v1507 = vld [vmem:[%s1 + $0x258] sm:$0xff]
      %v1508 = vld [vmem:[%s1 + $0x260] sm:$0xff]
      %v1509 = vld [vmem:[%s1 + $0x268] sm:$0xff]
      %v1510 = vld [vmem:[%s1 + $0x270] sm:$0xff]
      %v1511 = vld [vmem:[%s1 + $0x278] sm:$0xff]
      %v1512 = vld [vmem:[%s1 + $0x280] sm:$0xff]
      %v1513 = vld [vmem:[%s1 + $0x288] sm:$0xff]
      %v1514 = vld [vmem:[%s1 + $0x290] sm:$0xff]
      %v1515 = vld [vmem:[%s1 + $0x298] sm:$0xff]
      %v1516 = vld [vmem:[%s1 + $0x2a0] sm:$0xff]
      %v1517 = vld [vmem:[%s1 + $0x2a8] sm:$0xff]
      %v1518 = vld [vmem:[%s1 + $0x2b0] sm:$0xff]
      %v1519 = vld [vmem:[%s1 + $0x2b8] sm:$0xff]
      %v1520 = vld [vmem:[#allocation3 + $0x1] sm:$0xff]
      %v1521 = vld [vmem:[#allocation3 + $0x9] sm:$0xff]
      %v1522 = vld [vmem:[#allocation3 + $0x19] sm:$0xff]
      %v1523 = vld [vmem:[#allocation3 + $0x21] sm:$0xff]
      %v1524 = vld [vmem:[#allocation3 + $0x31] sm:$0xff]
      %v1525 = vld [vmem:[#allocation3 + $0x39] sm:$0xff]
      %v1526 = vld [vmem:[#allocation3 + $0x49] sm:$0xff]
      %v1527 = vld [vmem:[#allocation3 + $0x51] sm:$0xff]
      %v1528 = vld [vmem:[#allocation3 + $0x61] sm:$0xff]
      %v1529 = vld [vmem:[#allocation3 + $0x69] sm:$0xff]
      %v1530 = vld [vmem:[#allocation3 + $0x79] sm:$0xff]
      %v1531 = vld [vmem:[#allocation3 + $0x81] sm:$0xff]
      %v1532 = vld [vmem:[#allocation3 + $0x91] sm:$0xff]
      %v1533 = vld [vmem:[#allocation3 + $0x99] sm:$0xff]
      %v1534 = vld [vmem:[#allocation3 + $0xa9] sm:$0xff]
      %v1535 = vld [vmem:[#allocation3 + $0xb1] sm:$0xff]
      %v1536 = vld [vmem:[%s1 + $0x2c0] sm:$0xff]
      %v1537 = vld [vmem:[%s1 + $0x2c8] sm:$0xff]
      %v1538 = vld [vmem:[%s1 + $0x2d0] sm:$0xff]
      %v1539 = vld [vmem:[%s1 + $0x2d8] sm:$0xff]
      %v1540 = vld [vmem:[%s1 + $0x2e0] sm:$0xff]
      %v1541 = vld [vmem:[%s1 + $0x2e8] sm:$0xff]
      %v1542 = vld [vmem:[%s1 + $0x2f0] sm:$0xff]
      %v1543 = vld [vmem:[%s1 + $0x2f8] sm:$0xff]
      %v1544 = vld [vmem:[%s1 + $0x300] sm:$0xff]
      %v1545 = vld [vmem:[%s1 + $0x308] sm:$0xff]
      %v1546 = vld [vmem:[%s1 + $0x310] sm:$0xff]
      %v1547 = vld [vmem:[%s1 + $0x318] sm:$0xff]
      %v1548 = vld [vmem:[%s1 + $0x320] sm:$0xff]
      %v1549 = vld [vmem:[%s1 + $0x328] sm:$0xff]
      %v1550 = vld [vmem:[%s1 + $0x330] sm:$0xff]
      %v1551 = vld [vmem:[%s1 + $0x338] sm:$0xff]
      %1552 = vmatprep.subr.mxu0 0.0
      %1553 = vmatpush1.msra.mxu0 %v1536
      %1554 = vmatprep.subr.mxu0 0.0
      %1555 = vmatpush1.msra.mxu0 %v1537
      %1556 = vmatprep.subr.mxu0 0.0
      %1557 = vmatpush1.msra.mxu0 %v1538
      %1558 = vmatprep.subr.mxu0 0.0
      %1559 = vmatpush1.msra.mxu0 %v1539
      %1560 = vmatprep.subr.mxu0 0.0
      %1561 = vmatpush1.msra.mxu0 %v1540
      %1562 = vmatprep.subr.mxu0 0.0
      %1563 = vmatpush1.msra.mxu0 %v1541
      %1564 = vmatprep.subr.mxu0 0.0
      %1565 = vmatpush1.msra.mxu0 %v1542
      %1566 = vmatprep.subr.mxu0 0.0
      %1567 = vmatpush1.msra.mxu0 %v1543
      %1568 = vmatprep.subr.mxu0 0.0
      %1569 = vmatpush1.msra.mxu0 %v1544
      %1570 = vmatprep.subr.mxu0 0.0
      %1571 = vmatpush1.msra.mxu0 %v1545
      %1572 = vmatprep.subr.mxu0 0.0
      %1573 = vmatpush1.msra.mxu0 %v1546
      %1574 = vmatprep.subr.mxu0 0.0
      %1575 = vmatpush1.msra.mxu0 %v1547
      %1576 = vmatprep.subr.mxu0 0.0
      %1577 = vmatpush1.msra.mxu0 %v1548
      %1578 = vmatprep.subr.mxu0 0.0
      %1579 = vmatpush1.msra.mxu0 %v1549
      %1580 = vmatprep.subr.mxu0 0.0
      %1581 = vmatpush1.msra.mxu0 %v1550
      %1582 = vmatprep.subr.mxu0 0.0
      %1583 = vmatpush1.msra.mxu0 %v1551
      %1584 = vmatprep.subr.mxu0 0.0
      %1585 = vmatpush1.msra.mxu0 0.0
      %1586 = vmatprep.subr.mxu0 0.0
      %1587 = vmatpush1.msra.mxu0 0.0
      %1588 = vmatprep.subr.mxu0 0.0
      %1589 = vmatpush1.msra.mxu0 0.0
      %1590 = vmatprep.subr.mxu0 0.0
      %1591 = vmatpush1.msra.mxu0 0.0
      %1592 = vmatprep.subr.mxu0 0.0
      %1593 = vmatpush1.msra.mxu0 0.0
      %1594 = vmatprep.subr.mxu0 0.0
      %1595 = vmatpush1.msra.mxu0 0.0
      %1596 = vmatprep.subr.mxu0 0.0
      %1597 = vmatpush1.msra.mxu0 0.0
      %1598 = vmatprep.subr.mxu0 0.0
      %1599 = vmatpush1.msra.mxu0 0.0
      %1600 = vmatprep.subr.mxu0 0.0
      %1601 = vmatpush1.msra.mxu0 0.0
      %1602 = vmatprep.subr.mxu0 0.0
      %1603 = vmatpush1.msra.mxu0 0.0
      %1604 = vmatprep.subr.mxu0 0.0
      %1605 = vmatpush1.msra.mxu0 0.0
      %1606 = vmatprep.subr.mxu0 0.0
      %1607 = vmatpush1.msra.mxu0 0.0
      %1608 = vmatprep.subr.mxu0 0.0
      %1609 = vmatpush1.msra.mxu0 0.0
      %1610 = vmatprep.subr.mxu0 0.0
      %1611 = vmatpush1.msra.mxu0 0.0
      %1612 = vmatprep.subr.mxu0 0.0
      %1613 = vmatpush1.msra.mxu0 0.0
      %1614 = vmatprep.subr.mxu0 0.0
      %1615 = vmatpush1.msra.mxu0 0.0
      %1616 = vmatprep.mubr.f32.mxu0 0.0
      %1617 = vmatmul.mubr.f32.gmra.mrb[0].mxu0 %v1520
      %v1618 = vpop.f32.mrb[0].mxu0
      %v1619 = vadd.f32 0.0, %v1618
      %v1620 = vpop.f32.mrb[0].mxu0
      %1621 = vmatprep.mubr.f32.mxu0 0.0
      %1622 = vmatmul.mubr.f32.gmra.mrb[0].mxu0 %v1521
      %v1623 = vpop.f32.mrb[0].mxu0
      %v1624 = vadd.f32 0.0, %v1623
      %v1625 = vpop.f32.mrb[0].mxu0
      %1626 = vmatprep.mubr.f32.mxu0 0.0
      %1627 = vmatmul.mubr.f32.gmra.mrb[0].mxu0 %v1522
      %v1628 = vpop.f32.mrb[0].mxu0
      %v1629 = vadd.f32 0.0, %v1628
      %v1630 = vpop.f32.mrb[0].mxu0
      %1631 = vmatprep.mubr.f32.mxu0 0.0
      %1632 = vmatmul.mubr.f32.gmra.mrb[0].mxu0 %v1523
      %v1633 = vpop.f32.mrb[0].mxu0
      %v1634 = vadd.f32 0.0, %v1633
      %v1635 = vpop.f32.mrb[0].mxu0
      %1636 = vmatprep.mubr.f32.mxu0 0.0
      %1637 = vmatmul.mubr.f32.gmra.mrb[0].mxu0 %v1524
      %v1638 = vpop.f32.mrb[0].mxu0
      %v1639 = vadd.f32 0.0, %v1638
      %v1640 = vpop.f32.mrb[0].mxu0
      %1641 = vmatprep.mubr.f32.mxu0 0.0
      %1642 = vmatmul.mubr.f32.gmra.mrb[0].mxu0 %v1525
      %v1643 = vpop.f32.mrb[0].mxu0
      %v1644 = vadd.f32 0.0, %v1643
      %v1645 = vpop.f32.mrb[0].mxu0
      %1646 = vmatprep.mubr.f32.mxu0 0.0
      %1647 = vmatmul.mubr.f32.gmra.mrb[0].mxu0 %v1526
      %v1648 = vpop.f32.mrb[0].mxu0
      %v1649 = vadd.f32 0.0, %v1648
      %v1650 = vpop.f32.mrb[0].mxu0
      %1651 = vmatprep.mubr.f32.mxu0 0.0
      %1652 = vmatmul.mubr.f32.gmra.mrb[0].mxu0 %v1527
      %v1653 = vpop.f32.mrb[0].mxu0
      %v1654 = vadd.f32 0.0, %v1653
      %v1655 = vpop.f32.mrb[0].mxu0
      %1656 = vmatprep.mubr.f32.mxu0 0.0
      %1657 = vmatmul.mubr.f32.gmra.mrb[0].mxu0 %v1528
      %v1658 = vpop.f32.mrb[0].mxu0
      %v1659 = vadd.f32 0.0, %v1658
      %v1660 = vpop.f32.mrb[0].mxu0
      %1661 = vmatprep.mubr.f32.mxu0 0.0
      %1662 = vmatmul.mubr.f32.gmra.mrb[0].mxu0 %v1529
      %v1663 = vpop.f32.mrb[0].mxu0
      %v1664 = vadd.f32 0.0, %v1663
      %v1665 = vpop.f32.mrb[0].mxu0
      %1666 = vmatprep.mubr.f32.mxu0 0.0
      %1667 = vmatmul.mubr.f32.gmra.mrb[0].mxu0 %v1530
      %v1668 = vpop.f32.mrb[0].mxu0
      %v1669 = vadd.f32 0.0, %v1668
      %v1670 = vpop.f32.mrb[0].mxu0
      %1671 = vmatprep.mubr.f32.mxu0 0.0
      %1672 = vmatmul.mubr.f32.gmra.mrb[0].mxu0 %v1531
      %v1673 = vpop.f32.mrb[0].mxu0
      %v1674 = vadd.f32 0.0, %v1673
      %v1675 = vpop.f32.mrb[0].mxu0
      %1676 = vmatprep.mubr.f32.mxu0 0.0
      %1677 = vmatmul.mubr.f32.gmra.mrb[0].mxu0 %v1532
      %v1678 = vpop.f32.mrb[0].mxu0
      %v1679 = vadd.f32 0.0, %v1678
      %v1680 = vpop.f32.mrb[0].mxu0
      %1681 = vmatprep.mubr.f32.mxu0 0.0
      %1682 = vmatmul.mubr.f32.gmra.mrb[0].mxu0 %v1533
      %v1683 = vpop.f32.mrb[0].mxu0
      %v1684 = vadd.f32 0.0, %v1683
      %v1685 = vpop.f32.mrb[0].mxu0
      %1686 = vmatprep.mubr.f32.mxu0 0.0
      %1687 = vmatmul.mubr.f32.gmra.mrb[0].mxu0 %v1534
      %v1688 = vpop.f32.mrb[0].mxu0
      %v1689 = vadd.f32 0.0, %v1688
      %v1690 = vpop.f32.mrb[0].mxu0
      %1691 = vmatprep.mubr.f32.mxu0 0.0
      %1692 = vmatmul.mubr.f32.gmra.mrb[0].mxu0 %v1535
      %v1693 = vpop.f32.mrb[0].mxu0
      %v1694 = vadd.f32 0.0, %v1693
      %v1695 = vpop.f32.mrb[0].mxu0
      %1696 = vdwg.mxu0
      %1697 = vmatprep.subr.mxu0 0.0
      %1698 = vmatpush1.msra.mxu0 %v1504
      %1699 = vmatprep.subr.mxu0 0.0
      %1700 = vmatpush1.msra.mxu0 %v1505
      %1701 = vmatprep.subr.mxu0 0.0
      %1702 = vmatpush1.msra.mxu0 %v1506
      %1703 = vmatprep.subr.mxu0 0.0
      %1704 = vmatpush1.msra.mxu0 %v1507
      %1705 = vmatprep.subr.mxu0 0.0
      %1706 = vmatpush1.msra.mxu0 %v1508
      %1707 = vmatprep.subr.mxu0 0.0
      %1708 = vmatpush1.msra.mxu0 %v1509
      %1709 = vmatprep.subr.mxu0 0.0
      %1710 = vmatpush1.msra.mxu0 %v1510
      %1711 = vmatprep.subr.mxu0 0.0
      %1712 = vmatpush1.msra.mxu0 %v1511
      %1713 = vmatprep.subr.mxu0 0.0
      %1714 = vmatpush1.msra.mxu0 %v1512
      %1715 = vmatprep.subr.mxu0 0.0
      %1716 = vmatpush1.msra.mxu0 %v1513
      %1717 = vmatprep.subr.mxu0 0.0
      %1718 = vmatpush1.msra.mxu0 %v1514
      %1719 = vmatprep.subr.mxu0 0.0
      %1720 = vmatpush1.msra.mxu0 %v1515
      %1721 = vmatprep.subr.mxu0 0.0
      %1722 = vmatpush1.msra.mxu0 %v1516
      %1723 = vmatprep.subr.mxu0 0.0
      %1724 = vmatpush1.msra.mxu0 %v1517
      %1725 = vmatprep.subr.mxu0 0.0
      %1726 = vmatpush1.msra.mxu0 %v1518
      %1727 = vmatprep.subr.mxu0 0.0
      %1728 = vmatpush1.msra.mxu0 %v1519
      %1729 = vmatprep.subr.mxu0 0.0
      %1730 = vmatpush1.msra.mxu0 0.0
      %1731 = vmatprep.subr.mxu0 0.0
      %1732 = vmatpush1.msra.mxu0 0.0
      %1733 = vmatprep.subr.mxu0 0.0
      %1734 = vmatpush1.msra.mxu0 0.0
      %1735 = vmatprep.subr.mxu0 0.0
      %1736 = vmatpush1.msra.mxu0 0.0
      %1737 = vmatprep.subr.mxu0 0.0
      %1738 = vmatpush1.msra.mxu0 0.0
      %1739 = vmatprep.subr.mxu0 0.0
      %1740 = vmatpush1.msra.mxu0 0.0
      %1741 = vmatprep.subr.mxu0 0.0
      %1742 = vmatpush1.msra.mxu0 0.0
      %1743 = vmatprep.subr.mxu0 0.0
      %1744 = vmatpush1.msra.mxu0 0.0
      %1745 = vmatprep.subr.mxu0 0.0
      %1746 = vmatpush1.msra.mxu0 0.0
      %1747 = vmatprep.subr.mxu0 0.0
      %1748 = vmatpush1.msra.mxu0 0.0
      %1749 = vmatprep.subr.mxu0 0.0
      %1750 = vmatpush1.msra.mxu0 0.0
      %1751 = vmatprep.subr.mxu0 0.0
      %1752 = vmatpush1.msra.mxu0 0.0
      %1753 = vmatprep.subr.mxu0 0.0
      %1754 = vmatpush1.msra.mxu0 0.0
      %1755 = vmatprep.subr.mxu0 0.0
      %1756 = vmatpush1.msra.mxu0 0.0
      %1757 = vmatprep.subr.mxu0 0.0
      %1758 = vmatpush1.msra.mxu0 0.0
      %1759 = vmatprep.subr.mxu0 0.0
      %1760 = vmatpush1.msra.mxu0 0.0
      %1761 = vmatprep.mubr.f32.mxu0 0.0
      %1762 = vmatmul.mubr.f32.gmra.mrb[0].mxu0 %v1488
      %v1763 = vpop.f32.mrb[0].mxu0
      %v1764 = vadd.f32 %v1619, %v1763
      %v1765 = vpop.f32.mrb[0].mxu0
      %1766 = vmatprep.mubr.f32.mxu0 0.0
      %1767 = vmatmul.mubr.f32.gmra.mrb[0].mxu0 %v1489
      %v1768 = vpop.f32.mrb[0].mxu0
      %v1769 = vadd.f32 %v1624, %v1768
      %v1770 = vpop.f32.mrb[0].mxu0
      %1771 = vmatprep.mubr.f32.mxu0 0.0
      %1772 = vmatmul.mubr.f32.gmra.mrb[0].mxu0 %v1490
      %v1773 = vpop.f32.mrb[0].mxu0
      %v1774 = vadd.f32 %v1629, %v1773
      %v1775 = vpop.f32.mrb[0].mxu0
      %1776 = vmatprep.mubr.f32.mxu0 0.0
      %1777 = vmatmul.mubr.f32.gmra.mrb[0].mxu0 %v1491
      %v1778 = vpop.f32.mrb[0].mxu0
      %v1779 = vadd.f32 %v1634, %v1778
      %v1780 = vpop.f32.mrb[0].mxu0
      %1781 = vmatprep.mubr.f32.mxu0 0.0
      %1782 = vmatmul.mubr.f32.gmra.mrb[0].mxu0 %v1492
      %v1783 = vpop.f32.mrb[0].mxu0
      %v1784 = vadd.f32 %v1639, %v1783
      %v1785 = vpop.f32.mrb[0].mxu0
      %1786 = vmatprep.mubr.f32.mxu0 0.0
      %1787 = vmatmul.mubr.f32.gmra.mrb[0].mxu0 %v1493
      %v1788 = vpop.f32.mrb[0].mxu0
      %v1789 = vadd.f32 %v1644, %v1788
      %v1790 = vpop.f32.mrb[0].mxu0
      %1791 = vmatprep.mubr.f32.mxu0 0.0
      %1792 = vmatmul.mubr.f32.gmra.mrb[0].mxu0 %v1494
      %v1793 = vpop.f32.mrb[0].mxu0
      %v1794 = vadd.f32 %v1649, %v1793
      %v1795 = vpop.f32.mrb[0].mxu0
      %1796 = vmatprep.mubr.f32.mxu0 0.0
      %1797 = vmatmul.mubr.f32.gmra.mrb[0].mxu0 %v1495
      %v1798 = vpop.f32.mrb[0].mxu0
      %v1799 = vadd.f32 %v1654, %v1798
      %v1800 = vpop.f32.mrb[0].mxu0
      %1801 = vmatprep.mubr.f32.mxu0 0.0
      %1802 = vmatmul.mubr.f32.gmra.mrb[0].mxu0 %v1496
      %v1803 = vpop.f32.mrb[0].mxu0
      %v1804 = vadd.f32 %v1659, %v1803
      %v1805 = vpop.f32.mrb[0].mxu0
      %1806 = vmatprep.mubr.f32.mxu0 0.0
      %1807 = vmatmul.mubr.f32.gmra.mrb[0].mxu0 %v1497
      %v1808 = vpop.f32.mrb[0].mxu0
      %v1809 = vadd.f32 %v1664, %v1808
      %v1810 = vpop.f32.mrb[0].mxu0
      %1811 = vmatprep.mubr.f32.mxu0 0.0
      %1812 = vmatmul.mubr.f32.gmra.mrb[0].mxu0 %v1498
      %v1813 = vpop.f32.mrb[0].mxu0
      %v1814 = vadd.f32 %v1669, %v1813
      %v1815 = vpop.f32.mrb[0].mxu0
      %1816 = vmatprep.mubr.f32.mxu0 0.0
      %1817 = vmatmul.mubr.f32.gmra.mrb[0].mxu0 %v1499
      %v1818 = vpop.f32.mrb[0].mxu0
      %v1819 = vadd.f32 %v1674, %v1818
      %v1820 = vpop.f32.mrb[0].mxu0
      %1821 = vmatprep.mubr.f32.mxu0 0.0
      %1822 = vmatmul.mubr.f32.gmra.mrb[0].mxu0 %v1500
      %v1823 = vpop.f32.mrb[0].mxu0
      %v1824 = vadd.f32 %v1679, %v1823
      %v1825 = vpop.f32.mrb[0].mxu0
      %1826 = vmatprep.mubr.f32.mxu0 0.0
      %1827 = vmatmul.mubr.f32.gmra.mrb[0].mxu0 %v1501
      %v1828 = vpop.f32.mrb[0].mxu0
      %v1829 = vadd.f32 %v1684, %v1828
      %v1830 = vpop.f32.mrb[0].mxu0
      %1831 = vmatprep.mubr.f32.mxu0 0.0
      %1832 = vmatmul.mubr.f32.gmra.mrb[0].mxu0 %v1502
      %v1833 = vpop.f32.mrb[0].mxu0
      %v1834 = vadd.f32 %v1689, %v1833
      %v1835 = vpop.f32.mrb[0].mxu0
      %1836 = vmatprep.mubr.f32.mxu0 0.0
      %1837 = vmatmul.mubr.f32.gmra.mrb[0].mxu0 %v1503
      %v1838 = vpop.f32.mrb[0].mxu0
      %v1839 = vadd.f32 %v1694, %v1838
      %v1840 = vpop.f32.mrb[0].mxu0
      %1841 = vdwg.mxu0
      %v1842 = vld [vmem:[#allocation3 + $0x2] sm:$0xff]
      %v1843 = vld [vmem:[#allocation3 + $0xa] sm:$0xff]
      %v1844 = vld [vmem:[#allocation3 + $0x1a] sm:$0xff]
      %v1845 = vld [vmem:[#allocation3 + $0x22] sm:$0xff]
      %v1846 = vld [vmem:[#allocation3 + $0x32] sm:$0xff]
      %v1847 = vld [vmem:[#allocation3 + $0x3a] sm:$0xff]
      %v1848 = vld [vmem:[#allocation3 + $0x4a] sm:$0xff]
      %v1849 = vld [vmem:[#allocation3 + $0x52] sm:$0xff]
      %v1850 = vld [vmem:[#allocation3 + $0x62] sm:$0xff]
      %v1851 = vld [vmem:[#allocation3 + $0x6a] sm:$0xff]
      %v1852 = vld [vmem:[#allocation3 + $0x7a] sm:$0xff]
      %v1853 = vld [vmem:[#allocation3 + $0x82] sm:$0xff]
      %v1854 = vld [vmem:[#allocation3 + $0x92] sm:$0xff]
      %v1855 = vld [vmem:[#allocation3 + $0x9a] sm:$0xff]
      %v1856 = vld [vmem:[#allocation3 + $0xaa] sm:$0xff]
      %v1857 = vld [vmem:[#allocation3 + $0xb2] sm:$0xff]
      %v1858 = vld [vmem:[%s1 + $0x340] sm:$0xff]
      %v1859 = vld [vmem:[%s1 + $0x348] sm:$0xff]
      %v1860 = vld [vmem:[%s1 + $0x350] sm:$0xff]
      %v1861 = vld [vmem:[%s1 + $0x358] sm:$0xff]
      %v1862 = vld [vmem:[%s1 + $0x360] sm:$0xff]
      %v1863 = vld [vmem:[%s1 + $0x368] sm:$0xff]
      %v1864 = vld [vmem:[%s1 + $0x370] sm:$0xff]
      %v1865 = vld [vmem:[%s1 + $0x378] sm:$0xff]
      %v1866 = vld [vmem:[%s1 + $0x380] sm:$0xff]
      %v1867 = vld [vmem:[%s1 + $0x388] sm:$0xff]
      %v1868 = vld [vmem:[%s1 + $0x390] sm:$0xff]
      %v1869 = vld [vmem:[%s1 + $0x398] sm:$0xff]
      %v1870 = vld [vmem:[%s1 + $0x3a0] sm:$0xff]
      %v1871 = vld [vmem:[%s1 + $0x3a8] sm:$0xff]
      %v1872 = vld [vmem:[%s1 + $0x3b0] sm:$0xff]
      %v1873 = vld [vmem:[%s1 + $0x3b8] sm:$0xff]
      %1874 = vmatprep.subr.mxu0 0.0
      %1875 = vmatpush1.msra.mxu0 %v1858
      %1876 = vmatprep.subr.mxu0 0.0
      %1877 = vmatpush1.msra.mxu0 %v1859
      %1878 = vmatprep.subr.mxu0 0.0
      %1879 = vmatpush1.msra.mxu0 %v1860
      %1880 = vmatprep.subr.mxu0 0.0
      %1881 = vmatpush1.msra.mxu0 %v1861
      %1882 = vmatprep.subr.mxu0 0.0
      %1883 = vmatpush1.msra.mxu0 %v1862
      %1884 = vmatprep.subr.mxu0 0.0
      %1885 = vmatpush1.msra.mxu0 %v1863
      %1886 = vmatprep.subr.mxu0 0.0
      %1887 = vmatpush1.msra.mxu0 %v1864
      %1888 = vmatprep.subr.mxu0 0.0
      %1889 = vmatpush1.msra.mxu0 %v1865
      %1890 = vmatprep.subr.mxu0 0.0
      %1891 = vmatpush1.msra.mxu0 %v1866
      %1892 = vmatprep.subr.mxu0 0.0
      %1893 = vmatpush1.msra.mxu0 %v1867
      %1894 = vmatprep.subr.mxu0 0.0
      %1895 = vmatpush1.msra.mxu0 %v1868
      %1896 = vmatprep.subr.mxu0 0.0
      %1897 = vmatpush1.msra.mxu0 %v1869
      %1898 = vmatprep.subr.mxu0 0.0
      %1899 = vmatpush1.msra.mxu0 %v1870
      %1900 = vmatprep.subr.mxu0 0.0
      %1901 = vmatpush1.msra.mxu0 %v1871
      %1902 = vmatprep.subr.mxu0 0.0
      %1903 = vmatpush1.msra.mxu0 %v1872
      %1904 = vmatprep.subr.mxu0 0.0
      %1905 = vmatpush1.msra.mxu0 %v1873
      %1906 = vmatprep.subr.mxu0 0.0
      %1907 = vmatpush1.msra.mxu0 0.0
      %1908 = vmatprep.subr.mxu0 0.0
      %1909 = vmatpush1.msra.mxu0 0.0
      %1910 = vmatprep.subr.mxu0 0.0
      %1911 = vmatpush1.msra.mxu0 0.0
      %1912 = vmatprep.subr.mxu0 0.0
      %1913 = vmatpush1.msra.mxu0 0.0
      %1914 = vmatprep.subr.mxu0 0.0
      %1915 = vmatpush1.msra.mxu0 0.0
      %1916 = vmatprep.subr.mxu0 0.0
      %1917 = vmatpush1.msra.mxu0 0.0
      %1918 = vmatprep.subr.mxu0 0.0
      %1919 = vmatpush1.msra.mxu0 0.0
      %1920 = vmatprep.subr.mxu0 0.0
      %1921 = vmatpush1.msra.mxu0 0.0
      %1922 = vmatprep.subr.mxu0 0.0
      %1923 = vmatpush1.msra.mxu0 0.0
      %1924 = vmatprep.subr.mxu0 0.0
      %1925 = vmatpush1.msra.mxu0 0.0
      %1926 = vmatprep.subr.mxu0 0.0
      %1927 = vmatpush1.msra.mxu0 0.0
      %1928 = vmatprep.subr.mxu0 0.0
      %1929 = vmatpush1.msra.mxu0 0.0
      %1930 = vmatprep.subr.mxu0 0.0
      %1931 = vmatpush1.msra.mxu0 0.0
      %1932 = vmatprep.subr.mxu0 0.0
      %1933 = vmatpush1.msra.mxu0 0.0
      %1934 = vmatprep.subr.mxu0 0.0
      %1935 = vmatpush1.msra.mxu0 0.0
      %1936 = vmatprep.subr.mxu0 0.0
      %1937 = vmatpush1.msra.mxu0 0.0
      %1938 = vmatprep.mubr.f32.mxu0 0.0
      %1939 = vmatmul.mubr.f32.gmra.mrb[0].mxu0 %v1842
      %v1940 = vpop.f32.mrb[0].mxu0
      %v1941 = vadd.f32 0.0, %v1940
      %v1942 = vpop.f32.mrb[0].mxu0
      %1943 = vmatprep.mubr.f32.mxu0 0.0
      %1944 = vmatmul.mubr.f32.gmra.mrb[0].mxu0 %v1843
      %v1945 = vpop.f32.mrb[0].mxu0
      %v1946 = vadd.f32 0.0, %v1945
      %v1947 = vpop.f32.mrb[0].mxu0
      %1948 = vmatprep.mubr.f32.mxu0 0.0
      %1949 = vmatmul.mubr.f32.gmra.mrb[0].mxu0 %v1844
      %v1950 = vpop.f32.mrb[0].mxu0
      %v1951 = vadd.f32 0.0, %v1950
      %v1952 = vpop.f32.mrb[0].mxu0
      %1953 = vmatprep.mubr.f32.mxu0 0.0
      %1954 = vmatmul.mubr.f32.gmra.mrb[0].mxu0 %v1845
      %v1955 = vpop.f32.mrb[0].mxu0
      %v1956 = vadd.f32 0.0, %v1955
      %v1957 = vpop.f32.mrb[0].mxu0
      %1958 = vmatprep.mubr.f32.mxu0 0.0
      %1959 = vmatmul.mubr.f32.gmra.mrb[0].mxu0 %v1846
      %v1960 = vpop.f32.mrb[0].mxu0
      %v1961 = vadd.f32 0.0, %v1960
      %v1962 = vpop.f32.mrb[0].mxu0
      %1963 = vmatprep.mubr.f32.mxu0 0.0
      %1964 = vmatmul.mubr.f32.gmra.mrb[0].mxu0 %v1847
      %v1965 = vpop.f32.mrb[0].mxu0
      %v1966 = vadd.f32 0.0, %v1965
      %v1967 = vpop.f32.mrb[0].mxu0
      %1968 = vmatprep.mubr.f32.mxu0 0.0
      %1969 = vmatmul.mubr.f32.gmra.mrb[0].mxu0 %v1848
      %v1970 = vpop.f32.mrb[0].mxu0
      %v1971 = vadd.f32 0.0, %v1970
      %v1972 = vpop.f32.mrb[0].mxu0
      %1973 = vmatprep.mubr.f32.mxu0 0.0
      %1974 = vmatmul.mubr.f32.gmra.mrb[0].mxu0 %v1849
      %v1975 = vpop.f32.mrb[0].mxu0
      %v1976 = vadd.f32 0.0, %v1975
      %v1977 = vpop.f32.mrb[0].mxu0
      %1978 = vmatprep.mubr.f32.mxu0 0.0
      %1979 = vmatmul.mubr.f32.gmra.mrb[0].mxu0 %v1850
      %v1980 = vpop.f32.mrb[0].mxu0
      %v1981 = vadd.f32 0.0, %v1980
      %v1982 = vpop.f32.mrb[0].mxu0
      %1983 = vmatprep.mubr.f32.mxu0 0.0
      %1984 = vmatmul.mubr.f32.gmra.mrb[0].mxu0 %v1851
      %v1985 = vpop.f32.mrb[0].mxu0
      %v1986 = vadd.f32 0.0, %v1985
      %v1987 = vpop.f32.mrb[0].mxu0
      %1988 = vmatprep.mubr.f32.mxu0 0.0
      %1989 = vmatmul.mubr.f32.gmra.mrb[0].mxu0 %v1852
      %v1990 = vpop.f32.mrb[0].mxu0
      %v1991 = vadd.f32 0.0, %v1990
      %v1992 = vpop.f32.mrb[0].mxu0
      %1993 = vmatprep.mubr.f32.mxu0 0.0
      %1994 = vmatmul.mubr.f32.gmra.mrb[0].mxu0 %v1853
      %v1995 = vpop.f32.mrb[0].mxu0
      %v1996 = vadd.f32 0.0, %v1995
      %v1997 = vpop.f32.mrb[0].mxu0
      %1998 = vmatprep.mubr.f32.mxu0 0.0
      %1999 = vmatmul.mubr.f32.gmra.mrb[0].mxu0 %v1854
      %v2000 = vpop.f32.mrb[0].mxu0
      %v2001 = vadd.f32 0.0, %v2000
      %v2002 = vpop.f32.mrb[0].mxu0
      %2003 = vmatprep.mubr.f32.mxu0 0.0
      %2004 = vmatmul.mubr.f32.gmra.mrb[0].mxu0 %v1855
      %v2005 = vpop.f32.mrb[0].mxu0
      %v2006 = vadd.f32 0.0, %v2005
      %v2007 = vpop.f32.mrb[0].mxu0
      %2008 = vmatprep.mubr.f32.mxu0 0.0
      %2009 = vmatmul.mubr.f32.gmra.mrb[0].mxu0 %v1856
      %v2010 = vpop.f32.mrb[0].mxu0
      %v2011 = vadd.f32 0.0, %v2010
      %v2012 = vpop.f32.mrb[0].mxu0
      %2013 = vmatprep.mubr.f32.mxu0 0.0
      %2014 = vmatmul.mubr.f32.gmra.mrb[0].mxu0 %v1857
      %v2015 = vpop.f32.mrb[0].mxu0
      %v2016 = vadd.f32 0.0, %v2015
      %v2017 = vpop.f32.mrb[0].mxu0
      %2018 = vdwg.mxu0
      %v2019 = vadd.f32 %v1764, %v1941
      %v2020 = vadd.f32 %v1769, %v1946
      %v2021 = vadd.f32 %v1774, %v1951
      %v2022 = vadd.f32 %v1779, %v1956
      %v2023 = vadd.f32 %v1784, %v1961
      %v2024 = vadd.f32 %v1789, %v1966
      %v2025 = vadd.f32 %v1794, %v1971
      %v2026 = vadd.f32 %v1799, %v1976
      %v2027 = vadd.f32 %v1804, %v1981
      %v2028 = vadd.f32 %v1809, %v1986
      %v2029 = vadd.f32 %v1814, %v1991
      %v2030 = vadd.f32 %v1819, %v1996
      %v2031 = vadd.f32 %v1824, %v2001
      %v2032 = vadd.f32 %v1829, %v2006
      %v2033 = vadd.f32 %v1834, %v2011
      %v2034 = vadd.f32 %v1839, %v2016
      %v2035 = vld [vmem:[%s1 + $0x582] sm:$0x1]
      %v2036 = vlaneseq
      %v2037 = vshrl.u32 %v2036, 7
      %v2038 = vsub.s32 0, %v2037
      %v2039 = vrot.slane %v2035, %v2038
      %v2040 = vadd.f32 %v2019, %v2039
      %v2041 = vadd.f32 %v2020, %v2039
      %v2042 = vadd.f32 %v2021, %v2039
      %v2043 = vadd.f32 %v2022, %v2039
      %v2044 = vadd.f32 %v2023, %v2039
      %v2045 = vadd.f32 %v2024, %v2039
      %v2046 = vadd.f32 %v2025, %v2039
      %v2047 = vadd.f32 %v2026, %v2039
      %v2048 = vadd.f32 %v2027, %v2039
      %v2049 = vadd.f32 %v2028, %v2039
      %v2050 = vadd.f32 %v2029, %v2039
      %v2051 = vadd.f32 %v2030, %v2039
      %v2052 = vadd.f32 %v2031, %v2039
      %v2053 = vadd.f32 %v2032, %v2039
      %v2054 = vadd.f32 %v2033, %v2039
      %v2055 = vadd.f32 %v2034, %v2039
      %v2056 = vmax.f32 %v2040, 0.0
      %v2057 = vmax.f32 %v2041, 0.0
      %v2058 = vmax.f32 %v2042, 0.0
      %v2059 = vmax.f32 %v2043, 0.0
      %v2060 = vmax.f32 %v2044, 0.0
      %v2061 = vmax.f32 %v2045, 0.0
      %v2062 = vmax.f32 %v2046, 0.0
      %v2063 = vmax.f32 %v2047, 0.0
      %v2064 = vmax.f32 %v2048, 0.0
      %v2065 = vmax.f32 %v2049, 0.0
      %v2066 = vmax.f32 %v2050, 0.0
      %v2067 = vmax.f32 %v2051, 0.0
      %v2068 = vmax.f32 %v2052, 0.0
      %v2069 = vmax.f32 %v2053, 0.0
      %v2070 = vmax.f32 %v2054, 0.0
      %v2071 = vmax.f32 %v2055, 0.0
      %2072 = vst [vmem:[%s870] sm:$0xff] %v2056
      %2073 = vst [vmem:[%s870 + $0x8] sm:$0xff] %v2057
      %2074 = vst [vmem:[%s870 + $0x10] sm:$0xff] %v2058
      %2075 = vst [vmem:[%s870 + $0x18] sm:$0xff] %v2059
      %2076 = vst [vmem:[%s870 + $0x20] sm:$0xff] %v2060
      %2077 = vst [vmem:[%s870 + $0x28] sm:$0xff] %v2061
      %2078 = vst [vmem:[%s870 + $0x30] sm:$0xff] %v2062
      %2079 = vst [vmem:[%s870 + $0x38] sm:$0xff] %v2063
      %2080 = vst [vmem:[%s870 + $0x40] sm:$0xff] %v2064
      %2081 = vst [vmem:[%s870 + $0x48] sm:$0xff] %v2065
      %2082 = vst [vmem:[%s870 + $0x50] sm:$0xff] %v2066
      %2083 = vst [vmem:[%s870 + $0x58] sm:$0xff] %v2067
      %2084 = vst [vmem:[%s870 + $0x60] sm:$0xff] %v2068
      %2085 = vst [vmem:[%s870 + $0x68] sm:$0xff] %v2069
      %2086 = vst [vmem:[%s870 + $0x70] sm:$0xff] %v2070
      %2087 = vst [vmem:[%s870 + $0x78] sm:$0xff] %v2071
      %v2088 = vld [vmem:[#allocation2] sm:$0xff]
      %v2089 = vld [vmem:[#allocation2 + $0x8] sm:$0xff]
      %v2090 = vld [vmem:[#allocation2 + $0x10] sm:$0xff]
      %v2091 = vld [vmem:[#allocation2 + $0x18] sm:$0xff]
      %v2092 = vld [vmem:[#allocation2 + $0x20] sm:$0xff]
      %v2093 = vld [vmem:[#allocation2 + $0x28] sm:$0xff]
      %v2094 = vld [vmem:[#allocation2 + $0x30] sm:$0xff]
      %v2095 = vld [vmem:[#allocation2 + $0x38] sm:$0xff]
      %v2096 = vld [vmem:[#allocation2 + $0x40] sm:$0xff]
      %v2097 = vld [vmem:[#allocation2 + $0x48] sm:$0xff]
      %v2098 = vld [vmem:[#allocation2 + $0x50] sm:$0xff]
      %v2099 = vld [vmem:[#allocation2 + $0x58] sm:$0xff]
      %v2100 = vld [vmem:[#allocation2 + $0x60] sm:$0xff]
      %v2101 = vld [vmem:[#allocation2 + $0x68] sm:$0xff]
      %v2102 = vld [vmem:[#allocation2 + $0x70] sm:$0xff]
      %v2103 = vld [vmem:[#allocation2 + $0x78] sm:$0xff]
      %v2104 = vld [vmem:[%s1 + $0x3c0] sm:$0xff]
      %v2105 = vld [vmem:[%s1 + $0x3c8] sm:$0xff]
      %v2106 = vld [vmem:[%s1 + $0x3d0] sm:$0xff]
      %v2107 = vld [vmem:[%s1 + $0x3d8] sm:$0xff]
      %v2108 = vld [vmem:[%s1 + $0x3e0] sm:$0xff]
      %v2109 = vld [vmem:[%s1 + $0x3e8] sm:$0xff]
      %v2110 = vld [vmem:[%s1 + $0x3f0] sm:$0xff]
      %v2111 = vld [vmem:[%s1 + $0x3f8] sm:$0xff]
      %v2112 = vld [vmem:[%s1 + $0x400] sm:$0xff]
      %v2113 = vld [vmem:[%s1 + $0x408] sm:$0xff]
      %v2114 = vld [vmem:[%s1 + $0x410] sm:$0xff]
      %v2115 = vld [vmem:[%s1 + $0x418] sm:$0xff]
      %v2116 = vld [vmem:[%s1 + $0x420] sm:$0xff]
      %v2117 = vld [vmem:[%s1 + $0x428] sm:$0xff]
      %v2118 = vld [vmem:[%s1 + $0x430] sm:$0xff]
      %v2119 = vld [vmem:[%s1 + $0x438] sm:$0xff]
      %v2120 = vld [vmem:[%s870] sm:$0xff]
      %v2121 = vld [vmem:[%s870 + $0x8] sm:$0xff]
      %v2122 = vld [vmem:[%s870 + $0x10] sm:$0xff]
      %v2123 = vld [vmem:[%s870 + $0x18] sm:$0xff]
      %v2124 = vld [vmem:[%s870 + $0x20] sm:$0xff]
      %v2125 = vld [vmem:[%s870 + $0x28] sm:$0xff]
      %v2126 = vld [vmem:[%s870 + $0x30] sm:$0xff]
      %v2127 = vld [vmem:[%s870 + $0x38] sm:$0xff]
      %v2128 = vld [vmem:[%s870 + $0x40] sm:$0xff]
      %v2129 = vld [vmem:[%s870 + $0x48] sm:$0xff]
      %v2130 = vld [vmem:[%s870 + $0x50] sm:$0xff]
      %v2131 = vld [vmem:[%s870 + $0x58] sm:$0xff]
      %v2132 = vld [vmem:[%s870 + $0x60] sm:$0xff]
      %v2133 = vld [vmem:[%s870 + $0x68] sm:$0xff]
      %v2134 = vld [vmem:[%s870 + $0x70] sm:$0xff]
      %v2135 = vld [vmem:[%s870 + $0x78] sm:$0xff]
      %v2136 = vld [vmem:[%s1 + $0x440] sm:$0xff]
      %v2137 = vld [vmem:[%s1 + $0x448] sm:$0xff]
      %v2138 = vld [vmem:[%s1 + $0x450] sm:$0xff]
      %v2139 = vld [vmem:[%s1 + $0x458] sm:$0xff]
      %v2140 = vld [vmem:[%s1 + $0x460] sm:$0xff]
      %v2141 = vld [vmem:[%s1 + $0x468] sm:$0xff]
      %v2142 = vld [vmem:[%s1 + $0x470] sm:$0xff]
      %v2143 = vld [vmem:[%s1 + $0x478] sm:$0xff]
      %v2144 = vld [vmem:[%s1 + $0x480] sm:$0xff]
      %v2145 = vld [vmem:[%s1 + $0x488] sm:$0xff]
      %v2146 = vld [vmem:[%s1 + $0x490] sm:$0xff]
      %v2147 = vld [vmem:[%s1 + $0x498] sm:$0xff]
      %v2148 = vld [vmem:[%s1 + $0x4a0] sm:$0xff]
      %v2149 = vld [vmem:[%s1 + $0x4a8] sm:$0xff]
      %v2150 = vld [vmem:[%s1 + $0x4b0] sm:$0xff]
      %v2151 = vld [vmem:[%s1 + $0x4b8] sm:$0xff]
      %2152 = vmatprep.subr.mxu0 0.0
      %2153 = vmatpush1.msra.mxu0 %v2136
      %2154 = vmatprep.subr.mxu0 0.0
      %2155 = vmatpush1.msra.mxu0 %v2137
      %2156 = vmatprep.subr.mxu0 0.0
      %2157 = vmatpush1.msra.mxu0 %v2138
      %2158 = vmatprep.subr.mxu0 0.0
      %2159 = vmatpush1.msra.mxu0 %v2139
      %2160 = vmatprep.subr.mxu0 0.0
      %2161 = vmatpush1.msra.mxu0 %v2140
      %2162 = vmatprep.subr.mxu0 0.0
      %2163 = vmatpush1.msra.mxu0 %v2141
      %2164 = vmatprep.subr.mxu0 0.0
      %2165 = vmatpush1.msra.mxu0 %v2142
      %2166 = vmatprep.subr.mxu0 0.0
      %2167 = vmatpush1.msra.mxu0 %v2143
      %2168 = vmatprep.subr.mxu0 0.0
      %2169 = vmatpush1.msra.mxu0 %v2144
      %2170 = vmatprep.subr.mxu0 0.0
      %2171 = vmatpush1.msra.mxu0 %v2145
      %2172 = vmatprep.subr.mxu0 0.0
      %2173 = vmatpush1.msra.mxu0 %v2146
      %2174 = vmatprep.subr.mxu0 0.0
      %2175 = vmatpush1.msra.mxu0 %v2147
      %2176 = vmatprep.subr.mxu0 0.0
      %2177 = vmatpush1.msra.mxu0 %v2148
      %2178 = vmatprep.subr.mxu0 0.0
      %2179 = vmatpush1.msra.mxu0 %v2149
      %2180 = vmatprep.subr.mxu0 0.0
      %2181 = vmatpush1.msra.mxu0 %v2150
      %2182 = vmatprep.subr.mxu0 0.0
      %2183 = vmatpush1.msra.mxu0 %v2151
      %2184 = vmatprep.subr.mxu0 0.0
      %2185 = vmatpush1.msra.mxu0 0.0
      %2186 = vmatprep.subr.mxu0 0.0
      %2187 = vmatpush1.msra.mxu0 0.0
      %2188 = vmatprep.subr.mxu0 0.0
      %2189 = vmatpush1.msra.mxu0 0.0
      %2190 = vmatprep.subr.mxu0 0.0
      %2191 = vmatpush1.msra.mxu0 0.0
      %2192 = vmatprep.subr.mxu0 0.0
      %2193 = vmatpush1.msra.mxu0 0.0
      %2194 = vmatprep.subr.mxu0 0.0
      %2195 = vmatpush1.msra.mxu0 0.0
      %2196 = vmatprep.subr.mxu0 0.0
      %2197 = vmatpush1.msra.mxu0 0.0
      %2198 = vmatprep.subr.mxu0 0.0
      %2199 = vmatpush1.msra.mxu0 0.0
      %2200 = vmatprep.subr.mxu0 0.0
      %2201 = vmatpush1.msra.mxu0 0.0
      %2202 = vmatprep.subr.mxu0 0.0
      %2203 = vmatpush1.msra.mxu0 0.0
      %2204 = vmatprep.subr.mxu0 0.0
      %2205 = vmatpush1.msra.mxu0 0.0
      %2206 = vmatprep.subr.mxu0 0.0
      %2207 = vmatpush1.msra.mxu0 0.0
      %2208 = vmatprep.subr.mxu0 0.0
      %2209 = vmatpush1.msra.mxu0 0.0
      %2210 = vmatprep.subr.mxu0 0.0
      %2211 = vmatpush1.msra.mxu0 0.0
      %2212 = vmatprep.subr.mxu0 0.0
      %2213 = vmatpush1.msra.mxu0 0.0
      %2214 = vmatprep.subr.mxu0 0.0
      %2215 = vmatpush1.msra.mxu0 0.0
      %2216 = vmatprep.mubr.f32.mxu0 0.0
      %2217 = vmatmul.mubr.f32.gmra.mrb[0].mxu0 %v2120
      %v2218 = vpop.f32.mrb[0].mxu0
      %v2219 = vadd.f32 0.0, %v2218
      %v2220 = vpop.f32.mrb[0].mxu0
      %2221 = vmatprep.mubr.f32.mxu0 0.0
      %2222 = vmatmul.mubr.f32.gmra.mrb[0].mxu0 %v2121
      %v2223 = vpop.f32.mrb[0].mxu0
      %v2224 = vadd.f32 0.0, %v2223
      %v2225 = vpop.f32.mrb[0].mxu0
      %2226 = vmatprep.mubr.f32.mxu0 0.0
      %2227 = vmatmul.mubr.f32.gmra.mrb[0].mxu0 %v2122
      %v2228 = vpop.f32.mrb[0].mxu0
      %v2229 = vadd.f32 0.0, %v2228
      %v2230 = vpop.f32.mrb[0].mxu0
      %2231 = vmatprep.mubr.f32.mxu0 0.0
      %2232 = vmatmul.mubr.f32.gmra.mrb[0].mxu0 %v2123
      %v2233 = vpop.f32.mrb[0].mxu0
      %v2234 = vadd.f32 0.0, %v2233
      %v2235 = vpop.f32.mrb[0].mxu0
      %2236 = vmatprep.mubr.f32.mxu0 0.0
      %2237 = vmatmul.mubr.f32.gmra.mrb[0].mxu0 %v2124
      %v2238 = vpop.f32.mrb[0].mxu0
      %v2239 = vadd.f32 0.0, %v2238
      %v2240 = vpop.f32.mrb[0].mxu0
      %2241 = vmatprep.mubr.f32.mxu0 0.0
      %2242 = vmatmul.mubr.f32.gmra.mrb[0].mxu0 %v2125
      %v2243 = vpop.f32.mrb[0].mxu0
      %v2244 = vadd.f32 0.0, %v2243
      %v2245 = vpop.f32.mrb[0].mxu0
      %2246 = vmatprep.mubr.f32.mxu0 0.0
      %2247 = vmatmul.mubr.f32.gmra.mrb[0].mxu0 %v2126
      %v2248 = vpop.f32.mrb[0].mxu0
      %v2249 = vadd.f32 0.0, %v2248
      %v2250 = vpop.f32.mrb[0].mxu0
      %2251 = vmatprep.mubr.f32.mxu0 0.0
      %2252 = vmatmul.mubr.f32.gmra.mrb[0].mxu0 %v2127
      %v2253 = vpop.f32.mrb[0].mxu0
      %v2254 = vadd.f32 0.0, %v2253
      %v2255 = vpop.f32.mrb[0].mxu0
      %2256 = vmatprep.mubr.f32.mxu0 0.0
      %2257 = vmatmul.mubr.f32.gmra.mrb[0].mxu0 %v2128
      %v2258 = vpop.f32.mrb[0].mxu0
      %v2259 = vadd.f32 0.0, %v2258
      %v2260 = vpop.f32.mrb[0].mxu0
      %2261 = vmatprep.mubr.f32.mxu0 0.0
      %2262 = vmatmul.mubr.f32.gmra.mrb[0].mxu0 %v2129
      %v2263 = vpop.f32.mrb[0].mxu0
      %v2264 = vadd.f32 0.0, %v2263
      %v2265 = vpop.f32.mrb[0].mxu0
      %2266 = vmatprep.mubr.f32.mxu0 0.0
      %2267 = vmatmul.mubr.f32.gmra.mrb[0].mxu0 %v2130
      %v2268 = vpop.f32.mrb[0].mxu0
      %v2269 = vadd.f32 0.0, %v2268
      %v2270 = vpop.f32.mrb[0].mxu0
      %2271 = vmatprep.mubr.f32.mxu0 0.0
      %2272 = vmatmul.mubr.f32.gmra.mrb[0].mxu0 %v2131
      %v2273 = vpop.f32.mrb[0].mxu0
      %v2274 = vadd.f32 0.0, %v2273
      %v2275 = vpop.f32.mrb[0].mxu0
      %2276 = vmatprep.mubr.f32.mxu0 0.0
      %2277 = vmatmul.mubr.f32.gmra.mrb[0].mxu0 %v2132
      %v2278 = vpop.f32.mrb[0].mxu0
      %v2279 = vadd.f32 0.0, %v2278
      %v2280 = vpop.f32.mrb[0].mxu0
      %2281 = vmatprep.mubr.f32.mxu0 0.0
      %2282 = vmatmul.mubr.f32.gmra.mrb[0].mxu0 %v2133
      %v2283 = vpop.f32.mrb[0].mxu0
      %v2284 = vadd.f32 0.0, %v2283
      %v2285 = vpop.f32.mrb[0].mxu0
      %2286 = vmatprep.mubr.f32.mxu0 0.0
      %2287 = vmatmul.mubr.f32.gmra.mrb[0].mxu0 %v2134
      %v2288 = vpop.f32.mrb[0].mxu0
      %v2289 = vadd.f32 0.0, %v2288
      %v2290 = vpop.f32.mrb[0].mxu0
      %2291 = vmatprep.mubr.f32.mxu0 0.0
      %2292 = vmatmul.mubr.f32.gmra.mrb[0].mxu0 %v2135
      %v2293 = vpop.f32.mrb[0].mxu0
      %v2294 = vadd.f32 0.0, %v2293
      %v2295 = vpop.f32.mrb[0].mxu0
      %2296 = vdwg.mxu0
      %2297 = vmatprep.subr.mxu0 0.0
      %2298 = vmatpush1.msra.mxu0 %v2104
      %2299 = vmatprep.subr.mxu0 0.0
      %2300 = vmatpush1.msra.mxu0 %v2105
      %2301 = vmatprep.subr.mxu0 0.0
      %2302 = vmatpush1.msra.mxu0 %v2106
      %2303 = vmatprep.subr.mxu0 0.0
      %2304 = vmatpush1.msra.mxu0 %v2107
      %2305 = vmatprep.subr.mxu0 0.0
      %2306 = vmatpush1.msra.mxu0 %v2108
      %2307 = vmatprep.subr.mxu0 0.0
      %2308 = vmatpush1.msra.mxu0 %v2109
      %2309 = vmatprep.subr.mxu0 0.0
      %2310 = vmatpush1.msra.mxu0 %v2110
      %2311 = vmatprep.subr.mxu0 0.0
      %2312 = vmatpush1.msra.mxu0 %v2111
      %2313 = vmatprep.subr.mxu0 0.0
      %2314 = vmatpush1.msra.mxu0 %v2112
      %2315 = vmatprep.subr.mxu0 0.0
      %2316 = vmatpush1.msra.mxu0 %v2113
      %2317 = vmatprep.subr.mxu0 0.0
      %2318 = vmatpush1.msra.mxu0 %v2114
      %2319 = vmatprep.subr.mxu0 0.0
      %2320 = vmatpush1.msra.mxu0 %v2115
      %2321 = vmatprep.subr.mxu0 0.0
      %2322 = vmatpush1.msra.mxu0 %v2116
      %2323 = vmatprep.subr.mxu0 0.0
      %2324 = vmatpush1.msra.mxu0 %v2117
      %2325 = vmatprep.subr.mxu0 0.0
      %2326 = vmatpush1.msra.mxu0 %v2118
      %2327 = vmatprep.subr.mxu0 0.0
      %2328 = vmatpush1.msra.mxu0 %v2119
      %2329 = vmatprep.subr.mxu0 0.0
      %2330 = vmatpush1.msra.mxu0 0.0
      %2331 = vmatprep.subr.mxu0 0.0
      %2332 = vmatpush1.msra.mxu0 0.0
      %2333 = vmatprep.subr.mxu0 0.0
      %2334 = vmatpush1.msra.mxu0 0.0
      %2335 = vmatprep.subr.mxu0 0.0
      %2336 = vmatpush1.msra.mxu0 0.0
      %2337 = vmatprep.subr.mxu0 0.0
      %2338 = vmatpush1.msra.mxu0 0.0
      %2339 = vmatprep.subr.mxu0 0.0
      %2340 = vmatpush1.msra.mxu0 0.0
      %2341 = vmatprep.subr.mxu0 0.0
      %2342 = vmatpush1.msra.mxu0 0.0
      %2343 = vmatprep.subr.mxu0 0.0
      %2344 = vmatpush1.msra.mxu0 0.0
      %2345 = vmatprep.subr.mxu0 0.0
      %2346 = vmatpush1.msra.mxu0 0.0
      %2347 = vmatprep.subr.mxu0 0.0
      %2348 = vmatpush1.msra.mxu0 0.0
      %2349 = vmatprep.subr.mxu0 0.0
      %2350 = vmatpush1.msra.mxu0 0.0
      %2351 = vmatprep.subr.mxu0 0.0
      %2352 = vmatpush1.msra.mxu0 0.0
      %2353 = vmatprep.subr.mxu0 0.0
      %2354 = vmatpush1.msra.mxu0 0.0
      %2355 = vmatprep.subr.mxu0 0.0
      %2356 = vmatpush1.msra.mxu0 0.0
      %2357 = vmatprep.subr.mxu0 0.0
      %2358 = vmatpush1.msra.mxu0 0.0
      %2359 = vmatprep.subr.mxu0 0.0
      %2360 = vmatpush1.msra.mxu0 0.0
      %2361 = vmatprep.mubr.f32.mxu0 0.0
      %2362 = vmatmul.mubr.f32.gmra.mrb[0].mxu0 %v2088
      %v2363 = vpop.f32.mrb[0].mxu0
      %v2364 = vadd.f32 %v2219, %v2363
      %v2365 = vpop.f32.mrb[0].mxu0
      %2366 = vmatprep.mubr.f32.mxu0 0.0
      %2367 = vmatmul.mubr.f32.gmra.mrb[0].mxu0 %v2089
      %v2368 = vpop.f32.mrb[0].mxu0
      %v2369 = vadd.f32 %v2224, %v2368
      %v2370 = vpop.f32.mrb[0].mxu0
      %2371 = vmatprep.mubr.f32.mxu0 0.0
      %2372 = vmatmul.mubr.f32.gmra.mrb[0].mxu0 %v2090
      %v2373 = vpop.f32.mrb[0].mxu0
      %v2374 = vadd.f32 %v2229, %v2373
      %v2375 = vpop.f32.mrb[0].mxu0
      %2376 = vmatprep.mubr.f32.mxu0 0.0
      %2377 = vmatmul.mubr.f32.gmra.mrb[0].mxu0 %v2091
      %v2378 = vpop.f32.mrb[0].mxu0
      %v2379 = vadd.f32 %v2234, %v2378
      %v2380 = vpop.f32.mrb[0].mxu0
      %2381 = vmatprep.mubr.f32.mxu0 0.0
      %2382 = vmatmul.mubr.f32.gmra.mrb[0].mxu0 %v2092
      %v2383 = vpop.f32.mrb[0].mxu0
      %v2384 = vadd.f32 %v2239, %v2383
      %v2385 = vpop.f32.mrb[0].mxu0
      %2386 = vmatprep.mubr.f32.mxu0 0.0
      %2387 = vmatmul.mubr.f32.gmra.mrb[0].mxu0 %v2093
      %v2388 = vpop.f32.mrb[0].mxu0
      %v2389 = vadd.f32 %v2244, %v2388
      %v2390 = vpop.f32.mrb[0].mxu0
      %2391 = vmatprep.mubr.f32.mxu0 0.0
      %2392 = vmatmul.mubr.f32.gmra.mrb[0].mxu0 %v2094
      %v2393 = vpop.f32.mrb[0].mxu0
      %v2394 = vadd.f32 %v2249, %v2393
      %v2395 = vpop.f32.mrb[0].mxu0
      %2396 = vmatprep.mubr.f32.mxu0 0.0
      %2397 = vmatmul.mubr.f32.gmra.mrb[0].mxu0 %v2095
      %v2398 = vpop.f32.mrb[0].mxu0
      %v2399 = vadd.f32 %v2254, %v2398
      %v2400 = vpop.f32.mrb[0].mxu0
      %2401 = vmatprep.mubr.f32.mxu0 0.0
      %2402 = vmatmul.mubr.f32.gmra.mrb[0].mxu0 %v2096
      %v2403 = vpop.f32.mrb[0].mxu0
      %v2404 = vadd.f32 %v2259, %v2403
      %v2405 = vpop.f32.mrb[0].mxu0
      %2406 = vmatprep.mubr.f32.mxu0 0.0
      %2407 = vmatmul.mubr.f32.gmra.mrb[0].mxu0 %v2097
      %v2408 = vpop.f32.mrb[0].mxu0
      %v2409 = vadd.f32 %v2264, %v2408
      %v2410 = vpop.f32.mrb[0].mxu0
      %2411 = vmatprep.mubr.f32.mxu0 0.0
      %2412 = vmatmul.mubr.f32.gmra.mrb[0].mxu0 %v2098
      %v2413 = vpop.f32.mrb[0].mxu0
      %v2414 = vadd.f32 %v2269, %v2413
      %v2415 = vpop.f32.mrb[0].mxu0
      %2416 = vmatprep.mubr.f32.mxu0 0.0
      %2417 = vmatmul.mubr.f32.gmra.mrb[0].mxu0 %v2099
      %v2418 = vpop.f32.mrb[0].mxu0
      %v2419 = vadd.f32 %v2274, %v2418
      %v2420 = vpop.f32.mrb[0].mxu0
      %2421 = vmatprep.mubr.f32.mxu0 0.0
      %2422 = vmatmul.mubr.f32.gmra.mrb[0].mxu0 %v2100
      %v2423 = vpop.f32.mrb[0].mxu0
      %v2424 = vadd.f32 %v2279, %v2423
      %v2425 = vpop.f32.mrb[0].mxu0
      %2426 = vmatprep.mubr.f32.mxu0 0.0
      %2427 = vmatmul.mubr.f32.gmra.mrb[0].mxu0 %v2101
      %v2428 = vpop.f32.mrb[0].mxu0
      %v2429 = vadd.f32 %v2284, %v2428
      %v2430 = vpop.f32.mrb[0].mxu0
      %2431 = vmatprep.mubr.f32.mxu0 0.0
      %2432 = vmatmul.mubr.f32.gmra.mrb[0].mxu0 %v2102
      %v2433 = vpop.f32.mrb[0].mxu0
      %v2434 = vadd.f32 %v2289, %v2433
      %v2435 = vpop.f32.mrb[0].mxu0
      %2436 = vmatprep.mubr.f32.mxu0 0.0
      %2437 = vmatmul.mubr.f32.gmra.mrb[0].mxu0 %v2103
      %v2438 = vpop.f32.mrb[0].mxu0
      %v2439 = vadd.f32 %v2294, %v2438
      %v2440 = vpop.f32.mrb[0].mxu0
      %2441 = vdwg.mxu0
      %v2442 = vld [vmem:[%s1241] sm:$0xff]
      %v2443 = vld [vmem:[%s1241 + $0x8] sm:$0xff]
      %v2444 = vld [vmem:[%s1241 + $0x10] sm:$0xff]
      %v2445 = vld [vmem:[%s1241 + $0x18] sm:$0xff]
      %v2446 = vld [vmem:[%s1241 + $0x20] sm:$0xff]
      %v2447 = vld [vmem:[%s1241 + $0x28] sm:$0xff]
      %v2448 = vld [vmem:[%s1241 + $0x30] sm:$0xff]
      %v2449 = vld [vmem:[%s1241 + $0x38] sm:$0xff]
      %v2450 = vld [vmem:[%s1241 + $0x40] sm:$0xff]
      %v2451 = vld [vmem:[%s1241 + $0x48] sm:$0xff]
      %v2452 = vld [vmem:[%s1241 + $0x50] sm:$0xff]
      %v2453 = vld [vmem:[%s1241 + $0x58] sm:$0xff]
      %v2454 = vld [vmem:[%s1241 + $0x60] sm:$0xff]
      %v2455 = vld [vmem:[%s1241 + $0x68] sm:$0xff]
      %v2456 = vld [vmem:[%s1241 + $0x70] sm:$0xff]
      %v2457 = vld [vmem:[%s1241 + $0x78] sm:$0xff]
      %v2458 = vld [vmem:[%s1 + $0x4c0] sm:$0xff]
      %v2459 = vld [vmem:[%s1 + $0x4c8] sm:$0xff]
      %v2460 = vld [vmem:[%s1 + $0x4d0] sm:$0xff]
      %v2461 = vld [vmem:[%s1 + $0x4d8] sm:$0xff]
      %v2462 = vld [vmem:[%s1 + $0x4e0] sm:$0xff]
      %v2463 = vld [vmem:[%s1 + $0x4e8] sm:$0xff]
      %v2464 = vld [vmem:[%s1 + $0x4f0] sm:$0xff]
      %v2465 = vld [vmem:[%s1 + $0x4f8] sm:$0xff]
      %v2466 = vld [vmem:[%s1 + $0x500] sm:$0xff]
      %v2467 = vld [vmem:[%s1 + $0x508] sm:$0xff]
      %v2468 = vld [vmem:[%s1 + $0x510] sm:$0xff]
      %v2469 = vld [vmem:[%s1 + $0x518] sm:$0xff]
      %v2470 = vld [vmem:[%s1 + $0x520] sm:$0xff]
      %v2471 = vld [vmem:[%s1 + $0x528] sm:$0xff]
      %v2472 = vld [vmem:[%s1 + $0x530] sm:$0xff]
      %v2473 = vld [vmem:[%s1 + $0x538] sm:$0xff]
      %2474 = vmatprep.subr.mxu0 0.0
      %2475 = vmatpush1.msra.mxu0 %v2458
      %2476 = vmatprep.subr.mxu0 0.0
      %2477 = vmatpush1.msra.mxu0 %v2459
      %2478 = vmatprep.subr.mxu0 0.0
      %2479 = vmatpush1.msra.mxu0 %v2460
      %2480 = vmatprep.subr.mxu0 0.0
      %2481 = vmatpush1.msra.mxu0 %v2461
      %2482 = vmatprep.subr.mxu0 0.0
      %2483 = vmatpush1.msra.mxu0 %v2462
      %2484 = vmatprep.subr.mxu0 0.0
      %2485 = vmatpush1.msra.mxu0 %v2463
      %2486 = vmatprep.subr.mxu0 0.0
      %2487 = vmatpush1.msra.mxu0 %v2464
      %2488 = vmatprep.subr.mxu0 0.0
      %2489 = vmatpush1.msra.mxu0 %v2465
      %2490 = vmatprep.subr.mxu0 0.0
      %2491 = vmatpush1.msra.mxu0 %v2466
      %2492 = vmatprep.subr.mxu0 0.0
      %2493 = vmatpush1.msra.mxu0 %v2467
      %2494 = vmatprep.subr.mxu0 0.0
      %2495 = vmatpush1.msra.mxu0 %v2468
      %2496 = vmatprep.subr.mxu0 0.0
      %2497 = vmatpush1.msra.mxu0 %v2469
      %2498 = vmatprep.subr.mxu0 0.0
      %2499 = vmatpush1.msra.mxu0 %v2470
      %2500 = vmatprep.subr.mxu0 0.0
      %2501 = vmatpush1.msra.mxu0 %v2471
      %2502 = vmatprep.subr.mxu0 0.0
      %2503 = vmatpush1.msra.mxu0 %v2472
      %2504 = vmatprep.subr.mxu0 0.0
      %2505 = vmatpush1.msra.mxu0 %v2473
      %2506 = vmatprep.subr.mxu0 0.0
      %2507 = vmatpush1.msra.mxu0 0.0
      %2508 = vmatprep.subr.mxu0 0.0
      %2509 = vmatpush1.msra.mxu0 0.0
      %2510 = vmatprep.subr.mxu0 0.0
      %2511 = vmatpush1.msra.mxu0 0.0
      %2512 = vmatprep.subr.mxu0 0.0
      %2513 = vmatpush1.msra.mxu0 0.0
      %2514 = vmatprep.subr.mxu0 0.0
      %2515 = vmatpush1.msra.mxu0 0.0
      %2516 = vmatprep.subr.mxu0 0.0
      %2517 = vmatpush1.msra.mxu0 0.0
      %2518 = vmatprep.subr.mxu0 0.0
      %2519 = vmatpush1.msra.mxu0 0.0
      %2520 = vmatprep.subr.mxu0 0.0
      %2521 = vmatpush1.msra.mxu0 0.0
      %2522 = vmatprep.subr.mxu0 0.0
      %2523 = vmatpush1.msra.mxu0 0.0
      %2524 = vmatprep.subr.mxu0 0.0
      %2525 = vmatpush1.msra.mxu0 0.0
      %2526 = vmatprep.subr.mxu0 0.0
      %2527 = vmatpush1.msra.mxu0 0.0
      %2528 = vmatprep.subr.mxu0 0.0
      %2529 = vmatpush1.msra.mxu0 0.0
      %2530 = vmatprep.subr.mxu0 0.0
      %2531 = vmatpush1.msra.mxu0 0.0
      %2532 = vmatprep.subr.mxu0 0.0
      %2533 = vmatpush1.msra.mxu0 0.0
      %2534 = vmatprep.subr.mxu0 0.0
      %2535 = vmatpush1.msra.mxu0 0.0
      %2536 = vmatprep.subr.mxu0 0.0
      %2537 = vmatpush1.msra.mxu0 0.0
      %2538 = vmatprep.mubr.f32.mxu0 0.0
      %2539 = vmatmul.mubr.f32.gmra.mrb[0].mxu0 %v2442
      %v2540 = vpop.f32.mrb[0].mxu0
      %v2541 = vadd.f32 0.0, %v2540
      %v2542 = vpop.f32.mrb[0].mxu0
      %2543 = vmatprep.mubr.f32.mxu0 0.0
      %2544 = vmatmul.mubr.f32.gmra.mrb[0].mxu0 %v2443
      %v2545 = vpop.f32.mrb[0].mxu0
      %v2546 = vadd.f32 0.0, %v2545
      %v2547 = vpop.f32.mrb[0].mxu0
      %2548 = vmatprep.mubr.f32.mxu0 0.0
      %2549 = vmatmul.mubr.f32.gmra.mrb[0].mxu0 %v2444
      %v2550 = vpop.f32.mrb[0].mxu0
      %v2551 = vadd.f32 0.0, %v2550
      %v2552 = vpop.f32.mrb[0].mxu0
      %2553 = vmatprep.mubr.f32.mxu0 0.0
      %2554 = vmatmul.mubr.f32.gmra.mrb[0].mxu0 %v2445
      %v2555 = vpop.f32.mrb[0].mxu0
      %v2556 = vadd.f32 0.0, %v2555
      %v2557 = vpop.f32.mrb[0].mxu0
      %2558 = vmatprep.mubr.f32.mxu0 0.0
      %2559 = vmatmul.mubr.f32.gmra.mrb[0].mxu0 %v2446
      %v2560 = vpop.f32.mrb[0].mxu0
      %v2561 = vadd.f32 0.0, %v2560
      %v2562 = vpop.f32.mrb[0].mxu0
      %2563 = vmatprep.mubr.f32.mxu0 0.0
      %2564 = vmatmul.mubr.f32.gmra.mrb[0].mxu0 %v2447
      %v2565 = vpop.f32.mrb[0].mxu0
      %v2566 = vadd.f32 0.0, %v2565
      %v2567 = vpop.f32.mrb[0].mxu0
      %2568 = vmatprep.mubr.f32.mxu0 0.0
      %2569 = vmatmul.mubr.f32.gmra.mrb[0].mxu0 %v2448
      %v2570 = vpop.f32.mrb[0].mxu0
      %v2571 = vadd.f32 0.0, %v2570
      %v2572 = vpop.f32.mrb[0].mxu0
      %2573 = vmatprep.mubr.f32.mxu0 0.0
      %2574 = vmatmul.mubr.f32.gmra.mrb[0].mxu0 %v2449
      %v2575 = vpop.f32.mrb[0].mxu0
      %v2576 = vadd.f32 0.0, %v2575
      %v2577 = vpop.f32.mrb[0].mxu0
      %2578 = vmatprep.mubr.f32.mxu0 0.0
      %2579 = vmatmul.mubr.f32.gmra.mrb[0].mxu0 %v2450
      %v2580 = vpop.f32.mrb[0].mxu0
      %v2581 = vadd.f32 0.0, %v2580
      %v2582 = vpop.f32.mrb[0].mxu0
      %2583 = vmatprep.mubr.f32.mxu0 0.0
      %2584 = vmatmul.mubr.f32.gmra.mrb[0].mxu0 %v2451
      %v2585 = vpop.f32.mrb[0].mxu0
      %v2586 = vadd.f32 0.0, %v2585
      %v2587 = vpop.f32.mrb[0].mxu0
      %2588 = vmatprep.mubr.f32.mxu0 0.0
      %2589 = vmatmul.mubr.f32.gmra.mrb[0].mxu0 %v2452
      %v2590 = vpop.f32.mrb[0].mxu0
      %v2591 = vadd.f32 0.0, %v2590
      %v2592 = vpop.f32.mrb[0].mxu0
      %2593 = vmatprep.mubr.f32.mxu0 0.0
      %2594 = vmatmul.mubr.f32.gmra.mrb[0].mxu0 %v2453
      %v2595 = vpop.f32.mrb[0].mxu0
      %v2596 = vadd.f32 0.0, %v2595
      %v2597 = vpop.f32.mrb[0].mxu0
      %2598 = vmatprep.mubr.f32.mxu0 0.0
      %2599 = vmatmul.mubr.f32.gmra.mrb[0].mxu0 %v2454
      %v2600 = vpop.f32.mrb[0].mxu0
      %v2601 = vadd.f32 0.0, %v2600
      %v2602 = vpop.f32.mrb[0].mxu0
      %2603 = vmatprep.mubr.f32.mxu0 0.0
      %2604 = vmatmul.mubr.f32.gmra.mrb[0].mxu0 %v2455
      %v2605 = vpop.f32.mrb[0].mxu0
      %v2606 = vadd.f32 0.0, %v2605
      %v2607 = vpop.f32.mrb[0].mxu0
      %2608 = vmatprep.mubr.f32.mxu0 0.0
      %2609 = vmatmul.mubr.f32.gmra.mrb[0].mxu0 %v2456
      %v2610 = vpop.f32.mrb[0].mxu0
      %v2611 = vadd.f32 0.0, %v2610
      %v2612 = vpop.f32.mrb[0].mxu0
      %2613 = vmatprep.mubr.f32.mxu0 0.0
      %2614 = vmatmul.mubr.f32.gmra.mrb[0].mxu0 %v2457
      %v2615 = vpop.f32.mrb[0].mxu0
      %v2616 = vadd.f32 0.0, %v2615
      %v2617 = vpop.f32.mrb[0].mxu0
      %2618 = vdwg.mxu0
      %v2619 = vadd.f32 %v2364, %v2541
      %v2620 = vadd.f32 %v2369, %v2546
      %v2621 = vadd.f32 %v2374, %v2551
      %v2622 = vadd.f32 %v2379, %v2556
      %v2623 = vadd.f32 %v2384, %v2561
      %v2624 = vadd.f32 %v2389, %v2566
      %v2625 = vadd.f32 %v2394, %v2571
      %v2626 = vadd.f32 %v2399, %v2576
      %v2627 = vadd.f32 %v2404, %v2581
      %v2628 = vadd.f32 %v2409, %v2586
      %v2629 = vadd.f32 %v2414, %v2591
      %v2630 = vadd.f32 %v2419, %v2596
      %v2631 = vadd.f32 %v2424, %v2601
      %v2632 = vadd.f32 %v2429, %v2606
      %v2633 = vadd.f32 %v2434, %v2611
      %v2634 = vadd.f32 %v2439, %v2616
      %v2635 = vld [vmem:[%s1 + $0x583] sm:$0x1]
      %v2636 = vlaneseq
      %v2637 = vshrl.u32 %v2636, 7
      %v2638 = vsub.s32 0, %v2637
      %v2639 = vrot.slane %v2635, %v2638
      %v2640 = vadd.f32 %v2619, %v2639
      %v2641 = vadd.f32 %v2620, %v2639
      %v2642 = vadd.f32 %v2621, %v2639
      %v2643 = vadd.f32 %v2622, %v2639
      %v2644 = vadd.f32 %v2623, %v2639
      %v2645 = vadd.f32 %v2624, %v2639
      %v2646 = vadd.f32 %v2625, %v2639
      %v2647 = vadd.f32 %v2626, %v2639
      %v2648 = vadd.f32 %v2627, %v2639
      %v2649 = vadd.f32 %v2628, %v2639
      %v2650 = vadd.f32 %v2629, %v2639
      %v2651 = vadd.f32 %v2630, %v2639
      %v2652 = vadd.f32 %v2631, %v2639
      %v2653 = vadd.f32 %v2632, %v2639
      %v2654 = vadd.f32 %v2633, %v2639
      %v2655 = vadd.f32 %v2634, %v2639
      %v2656 = vmax.f32 %v2640, 0.0
      %v2657 = vmax.f32 %v2641, 0.0
      %v2658 = vmax.f32 %v2642, 0.0
      %v2659 = vmax.f32 %v2643, 0.0
      %v2660 = vmax.f32 %v2644, 0.0
      %v2661 = vmax.f32 %v2645, 0.0
      %v2662 = vmax.f32 %v2646, 0.0
      %v2663 = vmax.f32 %v2647, 0.0
      %v2664 = vmax.f32 %v2648, 0.0
      %v2665 = vmax.f32 %v2649, 0.0
      %v2666 = vmax.f32 %v2650, 0.0
      %v2667 = vmax.f32 %v2651, 0.0
      %v2668 = vmax.f32 %v2652, 0.0
      %v2669 = vmax.f32 %v2653, 0.0
      %v2670 = vmax.f32 %v2654, 0.0
      %v2671 = vmax.f32 %v2655, 0.0
      %v2672 = vld [vmem:[%s138 + $0x1] sm:$0xff]
      %v2673 = vld [vmem:[%s138 + $0x9] sm:$0xff]
      %v2674 = vld [vmem:[%s138 + $0x19] sm:$0xff]
      %v2675 = vld [vmem:[%s138 + $0x21] sm:$0xff]
      %v2676 = vld [vmem:[%s138 + $0x31] sm:$0xff]
      %v2677 = vld [vmem:[%s138 + $0x39] sm:$0xff]
      %v2678 = vld [vmem:[%s138 + $0x49] sm:$0xff]
      %v2679 = vld [vmem:[%s138 + $0x51] sm:$0xff]
      %v2680 = vld [vmem:[%s138 + $0x61] sm:$0xff]
      %v2681 = vld [vmem:[%s138 + $0x69] sm:$0xff]
      %v2682 = vld [vmem:[%s138 + $0x79] sm:$0xff]
      %v2683 = vld [vmem:[%s138 + $0x81] sm:$0xff]
      %v2684 = vld [vmem:[%s138 + $0x91] sm:$0xff]
      %v2685 = vld [vmem:[%s138 + $0x99] sm:$0xff]
      %v2686 = vld [vmem:[%s138 + $0xa9] sm:$0xff]
      %v2687 = vld [vmem:[%s138 + $0xb1] sm:$0xff]
      %v2688 = vld [vmem:[%s1 + $0x540] sm:$0xff]
      %v2689 = vld [vmem:[%s1 + $0x548] sm:$0xff]
      %v2690 = vld [vmem:[%s1 + $0x550] sm:$0xff]
      %v2691 = vld [vmem:[%s1 + $0x558] sm:$0xff]
      %v2692 = vld [vmem:[%s1 + $0x560] sm:$0xff]
      %v2693 = vld [vmem:[%s1 + $0x568] sm:$0xff]
      %v2694 = vld [vmem:[%s1 + $0x570] sm:$0xff]
      %v2695 = vld [vmem:[%s1 + $0x578] sm:$0xff]
      %v2696 = vld [vmem:[%s1 + $0x584] sm:$0x1]
      %v2697 = vlaneseq
      %v2698 = vshrl.u32 %v2697, 7
      %v2699 = vsub.s32 0, %v2698
      %v2700 = vrot.slane %v2696, %v2699
      %v2702 = vsel %vm213, %v2672, 0
      %v2705 = vsel %vm213, %v2673, 0
      %v2708 = vsel %vm213, %v2674, 0
      %v2711 = vsel %vm213, %v2675, 0
      %v2714 = vsel %vm213, %v2676, 0
      %v2717 = vsel %vm213, %v2677, 0
      %v2720 = vsel %vm213, %v2678, 0
      %v2723 = vsel %vm213, %v2679, 0
      %v2726 = vsel %vm213, %v2680, 0
      %v2729 = vsel %vm213, %v2681, 0
      %v2732 = vsel %vm213, %v2682, 0
      %v2735 = vsel %vm213, %v2683, 0
      %v2738 = vsel %vm213, %v2684, 0
      %v2741 = vsel %vm213, %v2685, 0
      %v2744 = vsel %vm213, %v2686, 0
      %v2747 = vsel %vm213, %v2687, 0
      %2749 = vmatprep.subr.mxu0 0.0
      %2750 = vmatpush1.msra.mxu0 %v2688
      %2751 = vmatprep.subr.mxu0 0.0
      %2752 = vmatpush1.msra.mxu0 %v2689
      %2753 = vmatprep.subr.mxu0 0.0
      %2754 = vmatpush1.msra.mxu0 %v2690
      %2755 = vmatprep.subr.mxu0 0.0
      %2756 = vmatpush1.msra.mxu0 %v2691
      %2757 = vmatprep.subr.mxu0 0.0
      %2758 = vmatpush1.msra.mxu0 %v2692
      %2759 = vmatprep.subr.mxu0 0.0
      %2760 = vmatpush1.msra.mxu0 %v2693
      %2761 = vmatprep.subr.mxu0 0.0
      %2762 = vmatpush1.msra.mxu0 %v2694
      %2763 = vmatprep.subr.mxu0 0.0
      %2764 = vmatpush1.msra.mxu0 %v2695
      %2765 = vmatprep.subr.mxu0 0.0
      %2766 = vmatpush1.msra.mxu0 0.0
      %2767 = vmatprep.subr.mxu0 0.0
      %2768 = vmatpush1.msra.mxu0 0.0
      %2769 = vmatprep.subr.mxu0 0.0
      %2770 = vmatpush1.msra.mxu0 0.0
      %2771 = vmatprep.subr.mxu0 0.0
      %2772 = vmatpush1.msra.mxu0 0.0
      %2773 = vmatprep.subr.mxu0 0.0
      %2774 = vmatpush1.msra.mxu0 0.0
      %2775 = vmatprep.subr.mxu0 0.0
      %2776 = vmatpush1.msra.mxu0 0.0
      %2777 = vmatprep.subr.mxu0 0.0
      %2778 = vmatpush1.msra.mxu0 0.0
      %2779 = vmatprep.subr.mxu0 0.0
      %2780 = vmatpush1.msra.mxu0 0.0
      %2781 = vmatprep.subr.mxu0 0.0
      %2782 = vmatpush1.msra.mxu0 0.0
      %2783 = vmatprep.subr.mxu0 0.0
      %2784 = vmatpush1.msra.mxu0 0.0
      %2785 = vmatprep.subr.mxu0 0.0
      %2786 = vmatpush1.msra.mxu0 0.0
      %2787 = vmatprep.subr.mxu0 0.0
      %2788 = vmatpush1.msra.mxu0 0.0
      %2789 = vmatprep.subr.mxu0 0.0
      %2790 = vmatpush1.msra.mxu0 0.0
      %2791 = vmatprep.subr.mxu0 0.0
      %2792 = vmatpush1.msra.mxu0 0.0
      %2793 = vmatprep.subr.mxu0 0.0
      %2794 = vmatpush1.msra.mxu0 0.0
      %2795 = vmatprep.subr.mxu0 0.0
      %2796 = vmatpush1.msra.mxu0 0.0
      %2797 = vmatprep.subr.mxu0 0.0
      %2798 = vmatpush1.msra.mxu0 0.0
      %2799 = vmatprep.subr.mxu0 0.0
      %2800 = vmatpush1.msra.mxu0 0.0
      %2801 = vmatprep.subr.mxu0 0.0
      %2802 = vmatpush1.msra.mxu0 0.0
      %2803 = vmatprep.subr.mxu0 0.0
      %2804 = vmatpush1.msra.mxu0 0.0
      %2805 = vmatprep.subr.mxu0 0.0
      %2806 = vmatpush1.msra.mxu0 0.0
      %2807 = vmatprep.subr.mxu0 0.0
      %2808 = vmatpush1.msra.mxu0 0.0
      %2809 = vmatprep.subr.mxu0 0.0
      %2810 = vmatpush1.msra.mxu0 0.0
      %2811 = vmatprep.subr.mxu0 0.0
      %2812 = vmatpush1.msra.mxu0 0.0
      %2813 = vmatprep.mubr.f32.mxu0 0.0
      %2814 = vmatmul.mubr.f32.gmra.mrb[0].mxu0 %v2702
      %v2815 = vpop.f32.mrb[0].mxu0
      %v2816 = vadd.f32 %v2700, %v2815
      %v2817 = vpop.f32.mrb[0].mxu0
      %2818 = vmatprep.mubr.f32.mxu0 0.0
      %2819 = vmatmul.mubr.f32.gmra.mrb[0].mxu0 %v2705
      %v2820 = vpop.f32.mrb[0].mxu0
      %v2821 = vadd.f32 %v2700, %v2820
      %v2822 = vpop.f32.mrb[0].mxu0
      %2823 = vmatprep.mubr.f32.mxu0 0.0
      %2824 = vmatmul.mubr.f32.gmra.mrb[0].mxu0 %v2708
      %v2825 = vpop.f32.mrb[0].mxu0
      %v2826 = vadd.f32 %v2700, %v2825
      %v2827 = vpop.f32.mrb[0].mxu0
      %2828 = vmatprep.mubr.f32.mxu0 0.0
      %2829 = vmatmul.mubr.f32.gmra.mrb[0].mxu0 %v2711
      %v2830 = vpop.f32.mrb[0].mxu0
      %v2831 = vadd.f32 %v2700, %v2830
      %v2832 = vpop.f32.mrb[0].mxu0
      %2833 = vmatprep.mubr.f32.mxu0 0.0
      %2834 = vmatmul.mubr.f32.gmra.mrb[0].mxu0 %v2714
      %v2835 = vpop.f32.mrb[0].mxu0
      %v2836 = vadd.f32 %v2700, %v2835
      %v2837 = vpop.f32.mrb[0].mxu0
      %2838 = vmatprep.mubr.f32.mxu0 0.0
      %2839 = vmatmul.mubr.f32.gmra.mrb[0].mxu0 %v2717
      %v2840 = vpop.f32.mrb[0].mxu0
      %v2841 = vadd.f32 %v2700, %v2840
      %v2842 = vpop.f32.mrb[0].mxu0
      %2843 = vmatprep.mubr.f32.mxu0 0.0
      %2844 = vmatmul.mubr.f32.gmra.mrb[0].mxu0 %v2720
      %v2845 = vpop.f32.mrb[0].mxu0
      %v2846 = vadd.f32 %v2700, %v2845
      %v2847 = vpop.f32.mrb[0].mxu0
      %2848 = vmatprep.mubr.f32.mxu0 0.0
      %2849 = vmatmul.mubr.f32.gmra.mrb[0].mxu0 %v2723
      %v2850 = vpop.f32.mrb[0].mxu0
      %v2851 = vadd.f32 %v2700, %v2850
      %v2852 = vpop.f32.mrb[0].mxu0
      %2853 = vmatprep.mubr.f32.mxu0 0.0
      %2854 = vmatmul.mubr.f32.gmra.mrb[0].mxu0 %v2726
      %v2855 = vpop.f32.mrb[0].mxu0
      %v2856 = vadd.f32 %v2700, %v2855
      %v2857 = vpop.f32.mrb[0].mxu0
      %2858 = vmatprep.mubr.f32.mxu0 0.0
      %2859 = vmatmul.mubr.f32.gmra.mrb[0].mxu0 %v2729
      %v2860 = vpop.f32.mrb[0].mxu0
      %v2861 = vadd.f32 %v2700, %v2860
      %v2862 = vpop.f32.mrb[0].mxu0
      %2863 = vmatprep.mubr.f32.mxu0 0.0
      %2864 = vmatmul.mubr.f32.gmra.mrb[0].mxu0 %v2732
      %v2865 = vpop.f32.mrb[0].mxu0
      %v2866 = vadd.f32 %v2700, %v2865
      %v2867 = vpop.f32.mrb[0].mxu0
      %2868 = vmatprep.mubr.f32.mxu0 0.0
      %2869 = vmatmul.mubr.f32.gmra.mrb[0].mxu0 %v2735
      %v2870 = vpop.f32.mrb[0].mxu0
      %v2871 = vadd.f32 %v2700, %v2870
      %v2872 = vpop.f32.mrb[0].mxu0
      %2873 = vmatprep.mubr.f32.mxu0 0.0
      %2874 = vmatmul.mubr.f32.gmra.mrb[0].mxu0 %v2738
      %v2875 = vpop.f32.mrb[0].mxu0
      %v2876 = vadd.f32 %v2700, %v2875
      %v2877 = vpop.f32.mrb[0].mxu0
      %2878 = vmatprep.mubr.f32.mxu0 0.0
      %2879 = vmatmul.mubr.f32.gmra.mrb[0].mxu0 %v2741
      %v2880 = vpop.f32.mrb[0].mxu0
      %v2881 = vadd.f32 %v2700, %v2880
      %v2882 = vpop.f32.mrb[0].mxu0
      %2883 = vmatprep.mubr.f32.mxu0 0.0
      %2884 = vmatmul.mubr.f32.gmra.mrb[0].mxu0 %v2744
      %v2885 = vpop.f32.mrb[0].mxu0
      %v2886 = vadd.f32 %v2700, %v2885
      %v2887 = vpop.f32.mrb[0].mxu0
      %2888 = vmatprep.mubr.f32.mxu0 0.0
      %2889 = vmatmul.mubr.f32.gmra.mrb[0].mxu0 %v2747
      %v2890 = vpop.f32.mrb[0].mxu0
      %v2891 = vadd.f32 %v2700, %v2890
      %v2892 = vpop.f32.mrb[0].mxu0
      %2893 = vdwg.mxu0
      %v2894 = vadd.f32 %v2656, %v2816
      %v2895 = vadd.f32 %v2657, %v2821
      %v2896 = vadd.f32 %v2658, %v2826
      %v2897 = vadd.f32 %v2659, %v2831
      %v2898 = vadd.f32 %v2660, %v2836
      %v2899 = vadd.f32 %v2661, %v2841
      %v2900 = vadd.f32 %v2662, %v2846
      %v2901 = vadd.f32 %v2663, %v2851
      %v2902 = vadd.f32 %v2664, %v2856
      %v2903 = vadd.f32 %v2665, %v2861
      %v2904 = vadd.f32 %v2666, %v2866
      %v2905 = vadd.f32 %v2667, %v2871
      %v2906 = vadd.f32 %v2668, %v2876
      %v2907 = vadd.f32 %v2669, %v2881
      %v2908 = vadd.f32 %v2670, %v2886
      %v2909 = vadd.f32 %v2671, %v2891
      %v2910 = vmax.f32 %v2894, 0.0
      %v2911 = vmax.f32 %v2895, 0.0
      %v2912 = vmax.f32 %v2896, 0.0
      %v2913 = vmax.f32 %v2897, 0.0
      %v2914 = vmax.f32 %v2898, 0.0
      %v2915 = vmax.f32 %v2899, 0.0
      %v2916 = vmax.f32 %v2900, 0.0
      %v2917 = vmax.f32 %v2901, 0.0
      %v2918 = vmax.f32 %v2902, 0.0
      %v2919 = vmax.f32 %v2903, 0.0
      %v2920 = vmax.f32 %v2904, 0.0
      %v2921 = vmax.f32 %v2905, 0.0
      %v2922 = vmax.f32 %v2906, 0.0
      %v2923 = vmax.f32 %v2907, 0.0
      %v2924 = vmax.f32 %v2908, 0.0
      %v2925 = vmax.f32 %v2909, 0.0
      %2926 = vst [vmem:[%s143] sm:$0xff] %v2910
      %2927 = vst [vmem:[%s143 + $0x8] sm:$0xff] %v2911
      %2928 = vst [vmem:[%s143 + $0x10] sm:$0xff] %v2912
      %2929 = vst [vmem:[%s143 + $0x18] sm:$0xff] %v2913
      %2930 = vst [vmem:[%s143 + $0x20] sm:$0xff] %v2914
      %2931 = vst [vmem:[%s143 + $0x28] sm:$0xff] %v2915
      %2932 = vst [vmem:[%s143 + $0x30] sm:$0xff] %v2916
      %2933 = vst [vmem:[%s143 + $0x38] sm:$0xff] %v2917
      %2934 = vst [vmem:[%s143 + $0x40] sm:$0xff] %v2918
      %2935 = vst [vmem:[%s143 + $0x48] sm:$0xff] %v2919
      %2936 = vst [vmem:[%s143 + $0x50] sm:$0xff] %v2920
      %2937 = vst [vmem:[%s143 + $0x58] sm:$0xff] %v2921
      %2938 = vst [vmem:[%s143 + $0x60] sm:$0xff] %v2922
      %2939 = vst [vmem:[%s143 + $0x68] sm:$0xff] %v2923
      %2940 = vst [vmem:[%s143 + $0x70] sm:$0xff] %v2924
      %2941 = vst [vmem:[%s143 + $0x78] sm:$0xff] %v2925
      %p2942 = scmp.lt.s32.totalorder %s13, 1
      %s2943 = scalar_select %p2942, %s13, 1
      %s2944 = smul.addr %s2943, 16
      %s2945 = smul.addr %s2944, 8
      %s2946 = scalar_lea.vmem %s2, %s2945
      // Predicated region
      $region29: #{residual_block_forward.1} parent=27 // pred_check
        %p2947 = pneg %p78
      $region30: #{residual_block_forward.1} parent=27 // pred_check_branch
        %2949 = sbr.rel (%p2947) target = $region32
      $region31: #{residual_block_forward.1} parent=27 // pred_region
        _
      $region32: #{residual_block_forward.1} parent=27 // pred_fallthru
        _
    $region28: #{residual_block_forward.1} parent=5 // pred_fallthru
      _
    %p2950 = scmp.le.s32.totalorder 2, %s8
    // Predicated region
    $region33: #{residual_block_forward.1} parent=5 // pred_check
      %p2951 = pneg %p2950
    $region34: #{residual_block_forward.1} parent=5 // pred_check_branch
      %2953 = sbr.rel (%p2951) target = $region36
    $region35: #{residual_block_forward.1} parent=5 // pred_region
      %s2954 = ssub.s32 %s8, 2
      // Predicated region
      $region37: #{residual_block_forward.1} parent=35 // pred_check
        %p2955 = pneg %p84
      $region38: #{residual_block_forward.1} parent=35 // pred_check_branch
        %2957 = sbr.rel (%p2955) target = $region40
      $region39: #{residual_block_forward.1} parent=35 // pred_region
        %p2958 = scmp.lt.s32.totalorder %s14, 1
        %s2959 = scalar_select %p2958, %s14, 1
        %s2960 = smul.addr %s2959, 16
        %s2961 = smul.addr %s2960, 8
        %s2962 = scalar_lea.vmem %s2, %s2961
      $region40: #{residual_block_forward.1} parent=35 // pred_fallthru
        _
    $region36: #{residual_block_forward.1} parent=5 // pred_fallthru
      _
  $region6: #{residual_block_forward.1} parent=0 // loop_footer
    %s12 = sadd.s32 1, %s8
  $region7: #{residual_block_forward.1} parent=0 // loop_footer_branch
    %7 = sbr.rel target = $region3
  $region8: #{residual_block_forward.1} parent=0 // loop_exit
    _

</llo_original>
